<compile_context>
chip_gen: v6e
topology: v6e:2x2x1
jax: 0.10.0
libtpu: 0.0.40
codegen_flags: <defaults>
</compile_context>

<pallas_src>
from functools import partial

import jax
import jax.numpy as jnp
from jax.experimental import pallas as pl
from jax.experimental.pallas import tpu as pltpu


def _default_vmem_limit_bytes():
    """~85% of physical VMEM, capped at 100 MiB (v5e/v6e: 100 MiB, v7x: ~54 MiB)."""
    cap = 64 * 1024 * 1024
    try:
        cap = int(pltpu.get_tpu_info().vmem_capacity_bytes)
    except Exception:
        pass  # conservative default if the query is unavailable
    return min(int(cap * 0.85), 100 * 1024 * 1024)


def _const_spec(shape):
    """Grid-invariant whole-array block, single-buffered.

    Constant-index blocks are double-buffered by default, doubling the VMEM
    footprint of weights that never change over the grid; Buffered(1) halves
    it at no perf cost (critical at real OPT sizes, esp. on v7x's 64 MiB).
    """
    nd = len(shape)
    index_map = lambda *_: (0,) * nd
    try:
        return pl.BlockSpec(shape, index_map, pipeline_mode=pl.Buffered(1))
    except (TypeError, AttributeError):
        # Older/newer API without pipeline_mode: fall back to default buffering.
        return pl.BlockSpec(shape, index_map)


def _pick_tile(dim, preferred):
    """Largest tile <= preferred that divides dim (tiles are multiples of 8)."""
    if dim <= preferred:
        return dim
    for cand in (preferred, 512, 256, 128, 64, 32, 16, 8):
        if cand <= preferred and dim % cand == 0:
            return cand
    raise ValueError(
        f"sequence length {dim} has no tile divisor <= {preferred}; pad the "
        "sequence (e.g. to a multiple of 128) before calling the kernel.")


# --------------------- Kernel 1: fused QKV projection -------------------------
def _qkv_proj_kernel(x_ref, w_ref, b_ref, q_ref, k_ref, v_ref, *, num_heads):
    """One (TT, E) @ (E, 3E) MXU matmul (f32 accumulate + f32 bias), then the
    (TT, E) -> (H, TT, D) head split/swap per output is done in-kernel (XLU,
    hidden under the matmul) so Q/K/V land head-major in HBM and kernel 2
    needs no transpose at all.  The 1/sqrt(head_dim) scaling is pre-folded
    into the Q columns of w/b by the wrapper."""
    x = x_ref[0]                                               # (TT, E)
    tt, e = x.shape
    d = e // num_heads

    y = jnp.dot(x, w_ref[...], preferred_element_type=jnp.float32)
    y = y + b_ref[0]                                           # (TT, 3E) f32

    def to_heads(cols):                                        # (TT, E) -> (H, TT, D)
        return jnp.transpose(cols.reshape(tt, num_heads, d), (1, 0, 2))

    q_ref[0] = to_heads(y[:, :e]).astype(q_ref.dtype)
    k_ref[0] = to_heads(y[:, e:2 * e]).astype(k_ref.dtype)
    v_ref[0] = to_heads(y[:, 2 * e:]).astype(v_ref.dtype)


# -------------- Kernel 2: flash attention + fused output projection -----------
def _flash_attn_kernel(q_ref, k_ref, v_ref, wo_ref, bo_ref, o_ref,
                       m_scr, l_scr, acc_scr, *, exp_dtype, approx_recip):
    ki = pl.program_id(2)

    @pl.when(ki == 0)
    def _init():
        m_scr[...] = jnp.full(m_scr.shape, -jnp.inf, dtype=m_scr.dtype)
        l_scr[...] = jnp.zeros(l_scr.shape, dtype=l_scr.dtype)
        acc_scr[...] = jnp.zeros(acc_scr.shape, dtype=acc_scr.dtype)

    q = q_ref[0]                                               # (H, TQ, D)
    k = k_ref[0]                                               # (H, TK, D)
    v = v_ref[0]                                               # (H, TK, D)

    # Head-batched scores; contraction on the trailing dim (no transpose).
    s = jnp.einsum('hqd,hkd->hqk', q, k,
                   preferred_element_type=jnp.float32)         # (H, TQ, TK) f32

    m_prev = m_scr[...]
    m_new = jnp.maximum(m_prev, s.max(axis=-1, keepdims=True))
    alpha = jnp.exp(m_prev - m_new)
    # exp in bf16 on the bf16 path (EUP is the binding slot at head_dim 64 on
    # v6e/v7x); running stats m/l/acc stay f32.  exp_dtype is f32 on v5e /
    # during f32 verification.
    p = jnp.exp((s - m_new).astype(exp_dtype))
    l_scr[...] = alpha * l_scr[...] + p.astype(jnp.float32).sum(
        axis=-1, keepdims=True)
    acc_scr[...] = alpha * acc_scr[...] + jnp.einsum(
        'hqk,hkd->hqd', p.astype(v.dtype), v,
        preferred_element_type=jnp.float32)
    m_scr[...] = m_new
    # TODO(synk): lane-dense (H, TQ, 128) m/l scratch would remove the masked
    # partial vld/vst on the running stats (minor; most visible on v5e).

    @pl.when(ki == pl.num_programs(2) - 1)
    def _finalize():
        h, tq, d = acc_scr.shape
        inv_l = pl.reciprocal(l_scr[...], approx=approx_recip)  # EUP, not VALU
        o_heads = acc_scr[...] * inv_l                          # (H, TQ, D) f32
        # Merge heads and do ONE K=E matmul against the plain (E, E) out_proj
        # weight (fills the MXU; replaces H small K=D dots + H f32 adds).
        o_flat = jnp.transpose(o_heads, (1, 0, 2)).reshape(tq, h * d)
        out = jnp.dot(o_flat.astype(wo_ref.dtype), wo_ref[...],
                      preferred_element_type=jnp.float32) + bo_ref[0]
        o_ref[0] = out.astype(o_ref.dtype)                      # lane-dense (TQ, E)


# ------------------------------- Wrapper --------------------------------------
def opt_gated_attention(x, wqk, bqk, wv, bv, wo, bo, *, num_heads,
                        compute_dtype=jnp.bfloat16,
                        q_tile=256, kv_tile=128, proj_tile=256,
                        softmax_exp_dtype=None, vmem_limit_bytes=None):
    """OPTGatedAttention forward (self-attention, no mask, no cache).

    Weights are (in_features, out_features): y = x @ W + b.  `wqk` is the
    fused QK weight (E, 2E), `bqk` its bias (2E,).
    """
    B, T, E = x.shape
    D = E // num_heads
    if D * num_heads != E:
        raise ValueError("embed_dim must be divisible by num_heads")
    scaling = D ** -0.5
    cdt = jnp.dtype(compute_dtype)
    f32 = jnp.dtype(jnp.float32)
    if softmax_exp_dtype is None:
        softmax_exp_dtype = cdt      # pass jnp.float32 explicitly on v5e
    if vmem_limit_bytes is None:
        vmem_limit_bytes = _default_vmem_limit_bytes()

    # One-time weight prep (outside the kernels): split fused QK params, fold
    # the query scaling into the Q columns, and re-fuse Q/K/V into a single
    # (E, 3E) weight so kernel 1 issues one wide-N MXU matmul.
    w_qkv = jnp.concatenate(
        [wqk[:, :E] * scaling, wqk[:, E:], wv], axis=1).astype(cdt)      # (E, 3E)
    b_qkv = jnp.concatenate(
        [bqk[:E] * scaling, bqk[E:], bv]).astype(jnp.float32).reshape(1, 3 * E)

    xc = x.astype(cdt)
    woc = wo.astype(cdt)
    bof = jnp.asarray(bo, jnp.float32).reshape(1, E)

    # ---- Kernel 1: fused QKV projection, head-major (B, H, T, D) outputs ----
    tt = _pick_tile(T, proj_tile)
    # TODO(synk): for large E (OPT-2.7B+ on v7x) add a grid axis over the 3E
    # output features with (E, tn) weight blocks instead of one resident
    # (E, 3E) weight.
    qkv_shape = jax.ShapeDtypeStruct((B, num_heads, T, D), cdt)
    q, k, v = pl.pallas_call(
        partial(_qkv_proj_kernel, num_heads=num_heads),
        out_shape=(qkv_shape,) * 3,
        grid=(B, T // tt),
        in_specs=[
            pl.BlockSpec((1, tt, E), lambda b, t: (b, t, 0)),   # hidden_states
            _const_spec((E, 3 * E)),                            # fused QKV weight
            _const_spec((1, 3 * E)),                            # fused QKV bias (f32)
        ],
        out_specs=(pl.BlockSpec((1, num_heads, tt, D),
                                lambda b, t: (b, 0, t, 0)),) * 3,
        compiler_params=pltpu.CompilerParams(
            dimension_semantics=("parallel", "parallel"),
            vmem_limit_bytes=vmem_limit_bytes),
    )(xc, w_qkv, b_qkv)

    # ---- Kernel 2: flash-style attention + fused output projection ---------
    tq = _pick_tile(T, q_tile)
    tk = _pick_tile(T, kv_tile)
    approx_recip = cdt != f32       # exact divide when verifying in f32

    # TODO(synk): on v5e/v6e (128 MiB VMEM) hold K/V T-resident per batch
    # (constant index map) when 2*T*E*2B fits, cutting K/V HBM reads by T/tq;
    # sweep pl.Buffered(3) on the K/V specs once tiles are finalized.
    out = pl.pallas_call(
        partial(_flash_attn_kernel, exp_dtype=jnp.dtype(softmax_exp_dtype),
                approx_recip=approx_recip),
        out_shape=jax.ShapeDtypeStruct((B, T, E), x.dtype),
        grid=(B, T // tq, T // tk),
        in_specs=[
            pl.BlockSpec((1, num_heads, tq, D), lambda b, qi, ki: (b, 0, qi, 0)),
            pl.BlockSpec((1, num_heads, tk, D), lambda b, qi, ki: (b, 0, ki, 0)),
            pl.BlockSpec((1, num_heads, tk, D), lambda b, qi, ki: (b, 0, ki, 0)),
            _const_spec((E, E)),                    # out_proj weight (plain E,E)
            _const_spec((1, E)),                    # out_proj bias (f32)
        ],
        out_specs=pl.BlockSpec((1, tq, E), lambda b, qi, ki: (b, qi, 0)),
        scratch_shapes=[
            pltpu.VMEM((num_heads, tq, 1), jnp.float32),   # running max  m
            pltpu.VMEM((num_heads, tq, 1), jnp.float32),   # running sum  l
            pltpu.VMEM((num_heads, tq, D), jnp.float32),   # output accum acc
        ],
        compiler_params=pltpu.CompilerParams(
            # keep B*(T/tq) >= 2 (and ideally even) so both v7x TCs get work
            dimension_semantics=("parallel", "parallel", "arbitrary"),
            vmem_limit_bytes=vmem_limit_bytes),
    )(q, k, v, woc, bof)
    return out


# ------------------------------- Reference ------------------------------------
def _reference(x, wqk, bqk, wv, bv, wo, bo, *, num_heads):
    """Pure-JAX replica of the PyTorch forward (self-attention, no mask/cache)."""
    B, T, E = x.shape
    D = E // num_heads
    scaling = D ** -0.5
    qk = x @ wqk + bqk
    q = qk[..., :E] * scaling
    k = qk[..., E:]
    v = x @ wv + bv
    shape_heads = lambda t: t.reshape(B, T, num_heads, D).transpose(0, 2, 1, 3)
    qh, kh, vh = shape_heads(q), shape_heads(k), shape_heads(v)
    s = jnp.einsum('bhtd,bhsd->bhts', qh, kh)
    p = jax.nn.softmax(s, axis=-1)
    o = jnp.einsum('bhts,bhsd->bhtd', p, vh)
    o = o.transpose(0, 2, 1, 3).reshape(B, T, E)
    return o @ wo + bo


if __name__ == "__main__":
    # head_dim = 128 (lane-dense stores), 2x2x2 flash grid at tile=128.
    B, T, E, H = 2, 256, 256, 2

    key = jax.random.PRNGKey(0)
    ks = jax.random.split(key, 7)
    scale = 0.1
    x   = jax.random.normal(ks[0], (B, T, E), jnp.float32)
    wqk = jax.random.normal(ks[1], (E, 2 * E), jnp.float32) * scale
    bqk = jax.random.normal(ks[2], (2 * E,), jnp.float32) * scale
    wv  = jax.random.normal(ks[3], (E, E), jnp.float32) * scale
    bv  = jax.random.normal(ks[4], (E,), jnp.float32) * scale
    wo  = jax.random.normal(ks[5], (E, E), jnp.float32) * scale
    bo  = jax.random.normal(ks[6], (E,), jnp.float32) * scale

    ref = _reference(x, wqk, bqk, wv, bv, wo, bo, num_heads=H)

    # f32 verification run (exercises the multi-tile online-softmax loop with
    # exact reciprocal / f32 exp).  Tolerances account for XLA's default TPU
    # f32-matmul precision in the pure-JAX reference; structural bugs would
    # produce O(1) errors and still be caught.
    out_f32 = opt_gated_attention(x, wqk, bqk, wv, bv, wo, bo, num_heads=H,
                                  compute_dtype=jnp.float32,
                                  q_tile=128, kv_tile=128, proj_tile=128)
    out_f32 = jax.block_until_ready(out_f32)
    assert out_f32.shape == (B, T, E)
    diff32 = jnp.abs(out_f32 - ref)
    max32, mean32 = float(jnp.max(diff32)), float(jnp.mean(diff32))
    assert max32 < 0.15 and mean32 < 0.03, \
        f"f32 path: max abs diff = {max32}, mean abs diff = {mean32}"

    # bf16 performance path (MXU-native weights/activations, bf16 softmax exp,
    # approx reciprocal); compared against the f32 reference.
    out_bf16 = opt_gated_attention(x, wqk, bqk, wv, bv, wo, bo, num_heads=H,
                                   compute_dtype=jnp.bfloat16,
                                   q_tile=128, kv_tile=128, proj_tile=128)
    out_bf16 = jax.block_until_ready(out_bf16)
    diff16 = jnp.abs(out_bf16 - ref)
    max16, mean16 = float(jnp.max(diff16)), float(jnp.mean(diff16))
    assert max16 < 0.35 and mean16 < 0.06, \
        f"bf16 path: max abs diff = {max16}, mean abs diff = {mean16}"

    # TODO(synk): cross-attention / past_key_value / attention_mask /
    # layer_head_mask / output_attentions branches are not implemented (the
    # PyTorch module itself raises NotImplementedError for cross-attn with
    # fused QK); dropout is identity at inference.
    print("KERNEL_OK")
</pallas_src>

<mosaic_0001>
module attributes {stable_mosaic.version = 11 : i64} {
  func.func @_qkv_proj_kernel(%arg0: i32, %arg1: i32, %arg2: memref<1x128x256xf32, #tpu.memory_space<vmem>>, %arg3: memref<256x768xf32, #tpu.memory_space<vmem>>, %arg4: memref<1x768xf32, #tpu.memory_space<vmem>>, %arg5: memref<1x2x128x128xf32, #tpu.memory_space<vmem>>, %arg6: memref<1x2x128x128xf32, #tpu.memory_space<vmem>>, %arg7: memref<1x2x128x128xf32, #tpu.memory_space<vmem>>) attributes {dimension_semantics = [#tpu.dimension_semantics<parallel>, #tpu.dimension_semantics<parallel>], iteration_bounds = array<i64: 2, 2>, scalar_prefetch = 0 : i64, scratch_operands = 0 : i64, tpu.core_type = #tpu.core_type<tc>, window_params = [{transform_indices = @transform_0, window_bounds = array<i64: 1, 128, 256>}, {pipeline_mode = #tpu.pipeline_mode<synchronous>, transform_indices = @transform_1, window_bounds = array<i64: 256, 768>}, {pipeline_mode = #tpu.pipeline_mode<synchronous>, transform_indices = @transform_2, window_bounds = array<i64: 1, 768>}, {transform_indices = @transform_3, window_bounds = array<i64: 1, 2, 128, 128>}, {transform_indices = @transform_4, window_bounds = array<i64: 1, 2, 128, 128>}, {transform_indices = @transform_5, window_bounds = array<i64: 1, 2, 128, 128>}]} {
    %c0 = arith.constant 0 : index
    %c0_0 = arith.constant 0 : index
    %c0_1 = arith.constant 0 : index
    %0 = vector.load %arg2[%c0, %c0_0, %c0_1] : memref<1x128x256xf32, #tpu.memory_space<vmem>>, vector<1x128x256xf32>
    %1 = vector.shape_cast %0 : vector<1x128x256xf32> to vector<128x256xf32>
    %c0_2 = arith.constant 0 : index
    %c0_3 = arith.constant 0 : index
    %2 = vector.load %arg3[%c0_2, %c0_3] : memref<256x768xf32, #tpu.memory_space<vmem>>, vector<256x768xf32>
    %cst = arith.constant dense<0.000000e+00> : vector<128x768xf32>
    %3 = tpu.matmul %1, %2, %cst {dimension_numbers = #tpu.dot_dimension_numbers<[1], [0], [0], [1], [0, 0, 1, 1], [], []>} : vector<128x256xf32>, vector<256x768xf32>, vector<128x768xf32> -> vector<128x768xf32>
    %c0_4 = arith.constant 0 : index
    %c0_5 = arith.constant 0 : index
    %4 = vector.load %arg4[%c0_4, %c0_5] : memref<1x768xf32, #tpu.memory_space<vmem>>, vector<1x768xf32>
    %5 = vector.shape_cast %4 : vector<1x768xf32> to vector<768xf32>
    %6 = vector.shape_cast %5 : vector<768xf32> to vector<1x768xf32>
    %7 = vector.broadcast %6 : vector<1x768xf32> to vector<128x768xf32>
    %8 = arith.addf %3, %7 : vector<128x768xf32>
    %9 = vector.extract_strided_slice %8 {offsets = [0, 0], sizes = [128, 256], strides = [1, 1]} : vector<128x768xf32> to vector<128x256xf32>
    %10 = vector.shape_cast %9 : vector<128x256xf32> to vector<128x2x128xf32>
    %11 = tpu.transpose %10, [1, 0, 2] : vector<128x2x128xf32> -> vector<2x128x128xf32>
    %c0_6 = arith.constant 0 : index
    %c0_7 = arith.constant 0 : index
    %c0_8 = arith.constant 0 : index
    %c0_9 = arith.constant 0 : index
    %12 = vector.load %arg5[%c0_6, %c0_7, %c0_8, %c0_9] : memref<1x2x128x128xf32, #tpu.memory_space<vmem>>, vector<1x2x128x128xf32>
    %13 = vector.shape_cast %12 : vector<1x2x128x128xf32> to vector<2x128x128xf32>
    %14 = vector.shape_cast %11 : vector<2x128x128xf32> to vector<1x2x128x128xf32>
    tpu.vector_store %arg5[%c0_6, %c0_7, %c0_8, %c0_9], %14 {strides = array<i32>} : memref<1x2x128x128xf32, #tpu.memory_space<vmem>>, vector<1x2x128x128xf32>,
    %15 = vector.extract_strided_slice %8 {offsets = [0, 256], sizes = [128, 256], strides = [1, 1]} : vector<128x768xf32> to vector<128x256xf32>
    %16 = vector.shape_cast %15 : vector<128x256xf32> to vector<128x2x128xf32>
    %17 = tpu.transpose %16, [1, 0, 2] : vector<128x2x128xf32> -> vector<2x128x128xf32>
    %c0_10 = arith.constant 0 : index
    %c0_11 = arith.constant 0 : index
    %c0_12 = arith.constant 0 : index
    %c0_13 = arith.constant 0 : index
    %18 = vector.load %arg6[%c0_10, %c0_11, %c0_12, %c0_13] : memref<1x2x128x128xf32, #tpu.memory_space<vmem>>, vector<1x2x128x128xf32>
    %19 = vector.shape_cast %18 : vector<1x2x128x128xf32> to vector<2x128x128xf32>
    %20 = vector.shape_cast %17 : vector<2x128x128xf32> to vector<1x2x128x128xf32>
    tpu.vector_store %arg6[%c0_10, %c0_11, %c0_12, %c0_13], %20 {strides = array<i32>} : memref<1x2x128x128xf32, #tpu.memory_space<vmem>>, vector<1x2x128x128xf32>,
    %21 = vector.extract_strided_slice %8 {offsets = [0, 512], sizes = [128, 256], strides = [1, 1]} : vector<128x768xf32> to vector<128x256xf32>
    %22 = vector.shape_cast %21 : vector<128x256xf32> to vector<128x2x128xf32>
    %23 = tpu.transpose %22, [1, 0, 2] : vector<128x2x128xf32> -> vector<2x128x128xf32>
    %c0_14 = arith.constant 0 : index
    %c0_15 = arith.constant 0 : index
    %c0_16 = arith.constant 0 : index
    %c0_17 = arith.constant 0 : index
    %24 = vector.load %arg7[%c0_14, %c0_15, %c0_16, %c0_17] : memref<1x2x128x128xf32, #tpu.memory_space<vmem>>, vector<1x2x128x128xf32>
    %25 = vector.shape_cast %24 : vector<1x2x128x128xf32> to vector<2x128x128xf32>
    %26 = vector.shape_cast %23 : vector<2x128x128xf32> to vector<1x2x128x128xf32>
    tpu.vector_store %arg7[%c0_14, %c0_15, %c0_16, %c0_17], %26 {strides = array<i32>} : memref<1x2x128x128xf32, #tpu.memory_space<vmem>>, vector<1x2x128x128xf32>,
    return
  }
  func.func @transform_0(%arg0: i32, %arg1: i32) -> (i32, i32, i32) {
    %c0_i32 = arith.constant 0 : i32
    %c0_i32_0 = arith.constant 0 : i32
    return %arg0, %arg1, %c0_i32 : i32, i32, i32
  }
  func.func @transform_1(%arg0: i32, %arg1: i32) -> (i32, i32) {
    %c0_i32 = arith.constant 0 : i32
    %c0_i32_0 = arith.constant 0 : i32
    %c0_i32_1 = arith.constant 0 : i32
    return %c0_i32, %c0_i32_0 : i32, i32
  }
  func.func @transform_2(%arg0: i32, %arg1: i32) -> (i32, i32) {
    %c0_i32 = arith.constant 0 : i32
    %c0_i32_0 = arith.constant 0 : i32
    %c0_i32_1 = arith.constant 0 : i32
    return %c0_i32, %c0_i32_0 : i32, i32
  }
  func.func @transform_3(%arg0: i32, %arg1: i32) -> (i32, i32, i32, i32) {
    %c0_i32 = arith.constant 0 : i32
    %c0_i32_0 = arith.constant 0 : i32
    %c0_i32_1 = arith.constant 0 : i32
    return %arg0, %c0_i32, %arg1, %c0_i32_0 : i32, i32, i32, i32
  }
  func.func @transform_4(%arg0: i32, %arg1: i32) -> (i32, i32, i32, i32) {
    %c0_i32 = arith.constant 0 : i32
    %c0_i32_0 = arith.constant 0 : i32
    %c0_i32_1 = arith.constant 0 : i32
    return %arg0, %c0_i32, %arg1, %c0_i32_0 : i32, i32, i32, i32
  }
  func.func @transform_5(%arg0: i32, %arg1: i32) -> (i32, i32, i32, i32) {
    %c0_i32 = arith.constant 0 : i32
    %c0_i32_0 = arith.constant 0 : i32
    %c0_i32_1 = arith.constant 0 : i32
    return %arg0, %c0_i32, %arg1, %c0_i32_0 : i32, i32, i32, i32
  }
}

</mosaic_0001>

<llo_original>
// kernel: tpu_custom_call.1
$region0: #{tpu_custom_call.1}
  #allocation0 [shape = 'u32[]', space=smem, size = 0x4, offset = 0x4, fixed_abs, tag = 'smem constant byte address 0x4 - core index']
  #allocation1 [shape = 'u32[144,128]{1,0:T(1,128)}', space=vmem, size = 0x12000, scoped, tag = 'internal scratch']
  #allocation12 [shape = 's32[]', space=sflag, size = 0x4, offset = 0, fixed_abs, tag = 'sflag constant byte address 0x0 - dummy sync flag']
  #allocation14 [shape = 's32[]', space=sflag, size = 0x4, offset = 0, fixed_abs, tag = 'sflag constant byte address 0x0 - dummy sync flag']
  #allocation16 [shape = 's32[]', space=sflag, size = 0x4, offset = 0, fixed_abs, tag = 'sflag constant byte address 0x0 - dummy sync flag']
  %s0 = inlined_call_operand.hbm [shape: f32[2,256,256], index: 0, kind: input, shape index: {}]
  %s1 = inlined_call_operand.hbm [shape: f32[256,768], index: 1, kind: input, shape index: {}]
  %s2 = inlined_call_operand.hbm [shape: f32[1,768], index: 2, kind: input, shape index: {}]
  %s3 = inlined_call_operand.hbm [shape: f32[2,2,256,128], index: 3, kind: output, shape index: {0}]
  %s4 = inlined_call_operand.hbm [shape: f32[2,2,256,128], index: 4, kind: output, shape index: {1}]
  %s5 = inlined_call_operand.hbm [shape: f32[2,2,256,128], index: 5, kind: output, shape index: {2}]
  %6 = xla_tuple %s3, %s4, %s5
  %s7 = sld [smem:[#allocation0]]
  $region73: #{tpu_custom_call.1} parent=0
    _
  %s9 = ssub.s32 1, %s7
  %s10 = scalar_select 0, %s9, %s7
  $region1: #{tpu_custom_call.1} parent=0
    #allocation2 [shape = 'u8[262144]{0}', space=vmem, size = 0x40000, scoped, tag = 'input window, operand 0']
    #allocation3 [shape = 's32[2]{0}', space=sflag, size = 0x8, scoped, tag = 'scoped memory for tpu_custom_call.1']
    #allocation4 [shape = 's32[2]{0}', space=sflag, size = 0x8, scoped, tag = 'scoped memory for tpu_custom_call.1']
    #allocation5 [shape = 'u8[786432]{0}', space=vmem, size = 0xc0000, scoped, tag = 'input window, operand 1, single buffered']
    #allocation6 [shape = 's32[1]{0}', space=sflag, size = 0x4, scoped, tag = 'scoped memory for tpu_custom_call.1']
    #allocation7 [shape = 'u8[3072]{0}', space=vmem, size = 0xc00, scoped, tag = 'input window, operand 2, single buffered']
    #allocation8 [shape = 'u8[262144]{0}', space=vmem, size = 0x40000, scoped, tag = 'output window, operand 0']
    #allocation9 [shape = 'u8[262144]{0}', space=vmem, size = 0x40000, scoped, tag = 'output window, operand 1']
    #allocation10 [shape = 's32[2]{0}', space=sflag, size = 0x8, scoped, tag = 'scoped memory for tpu_custom_call.1']
    #allocation11 [shape = 'u8[262144]{0}', space=vmem, size = 0x40000, scoped, tag = 'output window, operand 2']
    %11 = vsyncpa [#allocation3], 0
    %s12 = scalar_lea.sflag [#allocation3], 1
    %13 = vsyncpa %s12, 0
    %14 = vsyncpa [#allocation6], 0
    %15 = vsyncpa [#allocation4], 0
    %s16 = scalar_lea.sflag [#allocation4], 1
    %17 = vsyncpa %s16, 0
    %18 = vsyncpa [#allocation10], 0
    %s19 = scalar_lea.sflag [#allocation10], 1
    %20 = vsyncpa %s19, 0
    loop: start=0, step=1, limit=6
    $region2: #{tpu_custom_call.1} parent=1 // loop_pre_header
      _
    $region3: #{tpu_custom_call.1} parent=1 // loop_header
      %s22 = sphi 0, %s26
      %p23 = scmp.ge.s32.totalorder %s22, 6
      %s29 = sphi 0, %s41
      %s30 = sphi 0, %s37
      %s31 = sphi 0, %s29
      %s32 = sphi 0, %s30
      %s33 = sphi 0, %s31
      %s34 = sphi 0, %s32
      %s46 = sphi 0, %s48
      %s49 = sphi 0, %s46
      %s50 = sphi 0, %s49
      %s66 = sphi 0, %s50
      %s70 = sphi 0, %s70
      %s72 = sphi 0, %s70
      %s73 = sphi 0, %s72
      %s87 = sphi 0, %s73
      %s91 = sphi 0, %s91
      %s93 = sphi 0, %s91
      %s94 = sphi 0, %s93
      %s108 = sphi 0, %s94
      %s116 = sphi 0, %s118
      %s119 = sphi 0, %s116
      %s120 = sphi 0, %s119
      %s136 = sphi 0, %s120
      %s144 = sphi 0, %s146
      %s147 = sphi 0, %s144
      %s148 = sphi 0, %s147
      %s164 = sphi 0, %s148
      %s172 = sphi 0, %s174
      %s175 = sphi 0, %s172
      %s176 = sphi 0, %s175
      %s192 = sphi 0, %s176
    $region4: #{tpu_custom_call.1} parent=1 // loop_header_branch
      %25 = sbr.rel (%p23) target = $region8
    $region5: #{tpu_custom_call.1} parent=1 // loop_body
      %s27 = ssub.s32 %s22, 1
      %s28 = ssub.s32 %s22, 2
      %s35 = sadd.s32 1, %s30
      %p36 = scmp.ge.s32.totalorder %s35, 2
      %s37 = scalar_select %p36, 0, %s35
      %s38 = sadd.s32 1, %s29
      %s39 = scalar_select %p36, %s38, %s29
      %p40 = scmp.ge.s32.totalorder %s39, 2
      %s41 = scalar_select %p40, 0, %s39
      %s42 = ssub.s32 %s29, %s41
      %s43 = ssub.s32 %s30, %s37
      %s44 = sor.u32 %s42, %s43
      %p45 = scmp.eq.s32.totalorder %s44, 0
      %s47 = sadd.s32 %s46, 1
      %s48 = scalar_select %p45, %s46, %s47
      %p51 = pneg %p45
      %p52 = scmp.eq.s32.totalorder %s22, 3
      %p53 = por %p51, %p52
      %p54 = scmp.ne.s32.totalorder %s46, %s49
      %p55 = scmp.eq.s32.totalorder %s22, 0
      %p56 = por %p54, %p55
      %p57 = scmp.ne.s32.totalorder %s46, %s49
      %p58 = scmp.eq.s32.totalorder %s27, 3
      %p59 = por %p57, %p58
      %p60 = scmp.ne.s32.totalorder %s49, %s50
      %p61 = scmp.eq.s32.totalorder %s27, 0
      %p62 = por %p60, %p61
      %p63 = scmp.ne.s32.totalorder %s49, %s50
      %p64 = scmp.eq.s32.totalorder %s28, 3
      %p65 = por %p63, %p64
      %p67 = scmp.ne.s32.totalorder %s50, %s66
      %p68 = scmp.eq.s32.totalorder %s28, 0
      %p69 = por %p67, %p68
      %s71 = sadd.s32 %s70, 1
      %p74 = scmp.eq.s32.totalorder %s22, 3
      %p75 = scmp.ne.s32.totalorder %s70, %s72
      %p76 = scmp.eq.s32.totalorder %s22, 0
      %p77 = por %p75, %p76
      %p78 = scmp.ne.s32.totalorder %s70, %s72
      %p79 = scmp.eq.s32.totalorder %s27, 3
      %p80 = por %p78, %p79
      %p81 = scmp.ne.s32.totalorder %s72, %s73
      %p82 = scmp.eq.s32.totalorder %s27, 0
      %p83 = por %p81, %p82
      %p84 = scmp.ne.s32.totalorder %s72, %s73
      %p85 = scmp.eq.s32.totalorder %s28, 3
      %p86 = por %p84, %p85
      %p88 = scmp.ne.s32.totalorder %s73, %s87
      %p89 = scmp.eq.s32.totalorder %s28, 0
      %p90 = por %p88, %p89
      %s92 = sadd.s32 %s91, 1
      %p95 = scmp.eq.s32.totalorder %s22, 3
      %p96 = scmp.ne.s32.totalorder %s91, %s93
      %p97 = scmp.eq.s32.totalorder %s22, 0
      %p98 = por %p96, %p97
      %p99 = scmp.ne.s32.totalorder %s91, %s93
      %p100 = scmp.eq.s32.totalorder %s27, 3
      %p101 = por %p99, %p100
      %p102 = scmp.ne.s32.totalorder %s93, %s94
      %p103 = scmp.eq.s32.totalorder %s27, 0
      %p104 = por %p102, %p103
      %p105 = scmp.ne.s32.totalorder %s93, %s94
      %p106 = scmp.eq.s32.totalorder %s28, 3
      %p107 = por %p105, %p106
      %p109 = scmp.ne.s32.totalorder %s94, %s108
      %p110 = scmp.eq.s32.totalorder %s28, 0
      %p111 = por %p109, %p110
      %s112 = ssub.s32 %s29, %s41
      %s113 = ssub.s32 %s30, %s37
      %s114 = sor.u32 %s112, %s113
      %p115 = scmp.eq.s32.totalorder %s114, 0
      %s117 = sadd.s32 %s116, 1
      %s118 = scalar_select %p115, %s116, %s117
      %p121 = pneg %p115
      %p122 = scmp.eq.s32.totalorder %s22, 3
      %p123 = por %p121, %p122
      %p124 = scmp.ne.s32.totalorder %s116, %s119
      %p125 = scmp.eq.s32.totalorder %s22, 0
      %p126 = por %p124, %p125
      %p127 = scmp.ne.s32.totalorder %s116, %s119
      %p128 = scmp.eq.s32.totalorder %s27, 3
      %p129 = por %p127, %p128
      %p130 = scmp.ne.s32.totalorder %s119, %s120
      %p131 = scmp.eq.s32.totalorder %s27, 0
      %p132 = por %p130, %p131
      %p133 = scmp.ne.s32.totalorder %s119, %s120
      %p134 = scmp.eq.s32.totalorder %s28, 3
      %p135 = por %p133, %p134
      %p137 = scmp.ne.s32.totalorder %s120, %s136
      %p138 = scmp.eq.s32.totalorder %s28, 0
      %p139 = por %p137, %p138
      %s140 = ssub.s32 %s29, %s41
      %s141 = ssub.s32 %s30, %s37
      %s142 = sor.u32 %s140, %s141
      %p143 = scmp.eq.s32.totalorder %s142, 0
      %s145 = sadd.s32 %s144, 1
      %s146 = scalar_select %p143, %s144, %s145
      %p149 = pneg %p143
      %p150 = scmp.eq.s32.totalorder %s22, 3
      %p151 = por %p149, %p150
      %p152 = scmp.ne.s32.totalorder %s144, %s147
      %p153 = scmp.eq.s32.totalorder %s22, 0
      %p154 = por %p152, %p153
      %p155 = scmp.ne.s32.totalorder %s144, %s147
      %p156 = scmp.eq.s32.totalorder %s27, 3
      %p157 = por %p155, %p156
      %p158 = scmp.ne.s32.totalorder %s147, %s148
      %p159 = scmp.eq.s32.totalorder %s27, 0
      %p160 = por %p158, %p159
      %p161 = scmp.ne.s32.totalorder %s147, %s148
      %p162 = scmp.eq.s32.totalorder %s28, 3
      %p163 = por %p161, %p162
      %p165 = scmp.ne.s32.totalorder %s148, %s164
      %p166 = scmp.eq.s32.totalorder %s28, 0
      %p167 = por %p165, %p166
      %s168 = ssub.s32 %s29, %s41
      %s169 = ssub.s32 %s30, %s37
      %s170 = sor.u32 %s168, %s169
      %p171 = scmp.eq.s32.totalorder %s170, 0
      %s173 = sadd.s32 %s172, 1
      %s174 = scalar_select %p171, %s172, %s173
      %p177 = pneg %p171
      %p178 = scmp.eq.s32.totalorder %s22, 3
      %p179 = por %p177, %p178
      %p180 = scmp.ne.s32.totalorder %s172, %s175
      %p181 = scmp.eq.s32.totalorder %s22, 0
      %p182 = por %p180, %p181
      %p183 = scmp.ne.s32.totalorder %s172, %s175
      %p184 = scmp.eq.s32.totalorder %s27, 3
      %p185 = por %p183, %p184
      %p186 = scmp.ne.s32.totalorder %s175, %s176
      %p187 = scmp.eq.s32.totalorder %s27, 0
      %p188 = por %p186, %p187
      %p189 = scmp.ne.s32.totalorder %s175, %s176
      %p190 = scmp.eq.s32.totalorder %s28, 3
      %p191 = por %p189, %p190
      %p193 = scmp.ne.s32.totalorder %s176, %s192
      %p194 = scmp.eq.s32.totalorder %s28, 0
      %p195 = por %p193, %p194
      %p196 = scmp.le.s32.totalorder 1, %s22
      %p197 = scmp.lt.s32.totalorder %s22, 5
      %p198 = pnand %p196, %p197
      %p199 = pneg %p198
      // Predicated region
      $region9: #{tpu_custom_call.1} parent=5 // pred_check
        _
      $region10: #{tpu_custom_call.1} parent=5 // pred_check_branch
        %201 = sbr.rel (%p198) target = $region12
      $region11: #{tpu_custom_call.1} parent=5 // pred_region
        %s202 = ssub.s32 %s22, 1
        // Predicated region
        $region13: #{tpu_custom_call.1} parent=11 // pred_check
          %p203 = pneg %p83
        $region14: #{tpu_custom_call.1} parent=11 // pred_check_branch
          %205 = sbr.rel (%p203) target = $region16
        $region15: #{tpu_custom_call.1} parent=11 // pred_region
          %s207 = ssub.s32 24576, 24576
          %208 = vsyncadd [#allocation6], %s207
          %s209 = sshll.u32 [#allocation5], 4
          %s210 = int_to_ptr.vmem [resolvable:$true] %s209
          %215 = dma.hbm_to_vmem [thread:$0]  %s1, 24576, %s210, [#allocation6], 768, 768, 48
        $region16: #{tpu_custom_call.1} parent=11 // pred_fallthru
          _
        // Predicated region
        $region17: #{tpu_custom_call.1} parent=11 // pred_check
          %p216 = pneg %p104
        $region18: #{tpu_custom_call.1} parent=11 // pred_check_branch
          %218 = sbr.rel (%p216) target = $region20
        $region19: #{tpu_custom_call.1} parent=11 // pred_region
          %s220 = ssub.s32 96, 96
          %221 = vsyncadd [#allocation6], %s220
          %s223 = sshll.u32 [#allocation7], 4
          %s224 = int_to_ptr.vmem [resolvable:$true] %s223
          %226 = dma.hbm_to_vmem [thread:$0]  %s2, 96, %s224, [#allocation6]
        $region20: #{tpu_custom_call.1} parent=11 // pred_fallthru
          _
      $region12: #{tpu_custom_call.1} parent=5 // pred_fallthru
        _
      %p227 = scmp.lt.s32.totalorder %s22, 4
      // Predicated region
      $region21: #{tpu_custom_call.1} parent=5 // pred_check
        %p228 = pneg %p227
      $region22: #{tpu_custom_call.1} parent=5 // pred_check_branch
        %230 = sbr.rel (%p228) target = $region24
      $region23: #{tpu_custom_call.1} parent=5 // pred_region
        // Predicated region
        $region25: #{tpu_custom_call.1} parent=23 // pred_check
          %p231 = pneg %p56
        $region26: #{tpu_custom_call.1} parent=23 // pred_check_branch
          %233 = sbr.rel (%p231) target = $region28
        $region27: #{tpu_custom_call.1} parent=23 // pred_region
          %s234 = sand.u32 %s46, 1
          %s235 = scalar_lea.sflag [#allocation3], %s234
          %s236 = sand.u32 %s46, 1
          %s237 = smul.addr %s236, 256
          %s238 = scalar_lea.vmem [#allocation2], %s237
          %s239 = smul.u32 16, %s30
          %s241 = ssub.s32 4096, 4096
          %242 = vsyncadd %s235, %s241
          %s243 = smul.addr %s239, 2
          %s244 = smul.addr %s29, 64
          %s245 = sadd.s32 %s243, %s244
          %s246 = smul.addr %s245, 128
          %s247 = scalar_lea.hbm %s0, %s246
          %s248 = sshll.u32 %s238, 4
          %s249 = int_to_ptr.vmem [resolvable:$true] %s248
          %254 = dma.hbm_to_vmem [thread:$0]  %s247, 4096, %s249, %s235, 256, 256, 16
        $region28: #{tpu_custom_call.1} parent=23 // pred_fallthru
          _
      $region24: #{tpu_custom_call.1} parent=5 // pred_fallthru
        _
      %p255 = scmp.le.s32.totalorder 1, %s22
      %p256 = scmp.lt.s32.totalorder %s22, 5
      %p257 = pnand %p255, %p256
      %p258 = pneg %p257
      // Predicated region
      $region29: #{tpu_custom_call.1} parent=5 // pred_check
        _
      $region30: #{tpu_custom_call.1} parent=5 // pred_check_branch
        %260 = sbr.rel (%p257) target = $region32
      $region31: #{tpu_custom_call.1} parent=5 // pred_region
        %s261 = ssub.s32 %s22, 1
        %s262 = sand.u32 %s49, 1
        %s263 = scalar_lea.sflag [#allocation3], %s262
        %s264 = sand.u32 %s49, 1
        %s265 = smul.addr %s264, 256
        %s266 = scalar_lea.vmem [#allocation2], %s265
        // Predicated region
        $region33: #{tpu_custom_call.1} parent=31 // pred_check
          %p267 = pneg %p62
        $region34: #{tpu_custom_call.1} parent=31 // pred_check_branch
          %269 = sbr.rel (%p267) target = $region36
        $region35: #{tpu_custom_call.1} parent=31 // pred_region
          %270 = dma.done %s263, 4096
        $region36: #{tpu_custom_call.1} parent=31 // pred_fallthru
          _
        // Predicated region
        $region37: #{tpu_custom_call.1} parent=31 // pred_check
          %p271 = pneg %p83
        $region38: #{tpu_custom_call.1} parent=31 // pred_check_branch
          %273 = sbr.rel (%p271) target = $region40
        $region39: #{tpu_custom_call.1} parent=31 // pred_region
          %274 = dma.done [#allocation6], 24576
        $region40: #{tpu_custom_call.1} parent=31 // pred_fallthru
          _
        // Predicated region
        $region41: #{tpu_custom_call.1} parent=31 // pred_check
          %p275 = pneg %p104
        $region42: #{tpu_custom_call.1} parent=31 // pred_check_branch
          %277 = sbr.rel (%p275) target = $region44
        $region43: #{tpu_custom_call.1} parent=31 // pred_region
          %278 = dma.done [#allocation6], 96
        $region44: #{tpu_custom_call.1} parent=31 // pred_fallthru
          _
        %s279 = sand.u32 %s49, 1
        %s280 = scalar_lea.sflag [#allocation3], %s279
        %s281 = sand.u32 %s49, 1
        %s282 = smul.addr %s281, 256
        %s283 = scalar_lea.vmem [#allocation2], %s282
        %p284 = pneg %p62
        %p285 = pneg %p59
        %p286 = pneg %p83
        %p287 = pneg %p80
        %p288 = pneg %p104
        %p289 = pneg %p101
        %p290 = pneg %p132
        %p291 = pneg %p129
        %s292 = sand.u32 %s119, 1
        %s293 = scalar_lea.sflag [#allocation4], %s292
        %s294 = sand.u32 %s119, 1
        %s295 = smul.addr %s294, 256
        %s296 = scalar_lea.vmem [#allocation8], %s295
        %p297 = pneg %p160
        %p298 = pneg %p157
        %s299 = sand.u32 %s27, 1
        %s300 = scalar_lea.sflag [#allocation10], %s299
        %s301 = sand.u32 %s147, 1
        %s302 = smul.addr %s301, 256
        %s303 = scalar_lea.vmem [#allocation9], %s302
        %p304 = pneg %p188
        %p305 = pneg %p185
        %s306 = sand.u32 %s27, 1
        %s307 = scalar_lea.sflag [#allocation10], %s306
        %s308 = sand.u32 %s175, 1
        %s309 = smul.addr %s308, 256
        %s310 = scalar_lea.vmem [#allocation11], %s309
        %s311 = smul.u32 16, %s32
        %s312 = smul.u32 16, %s32
        %s313 = smul.u32 16, %s32
        %s314 = smul.u32 16, %s32
        %v315 = vld [vmem:[%s266] sm:$0xff]
        %v316 = vld [vmem:[%s266 + $0x8] sm:$0xff]
        %v317 = vld [vmem:[%s266 + $0x10] sm:$0xff]
        %v318 = vld [vmem:[%s266 + $0x18] sm:$0xff]
        %v319 = vld [vmem:[%s266 + $0x20] sm:$0xff]
        %v320 = vld [vmem:[%s266 + $0x28] sm:$0xff]
        %v321 = vld [vmem:[%s266 + $0x30] sm:$0xff]
        %v322 = vld [vmem:[%s266 + $0x38] sm:$0xff]
        %v323 = vld [vmem:[%s266 + $0x40] sm:$0xff]
        %v324 = vld [vmem:[%s266 + $0x48] sm:$0xff]
        %v325 = vld [vmem:[%s266 + $0x50] sm:$0xff]
        %v326 = vld [vmem:[%s266 + $0x58] sm:$0xff]
        %v327 = vld [vmem:[%s266 + $0x60] sm:$0xff]
        %v328 = vld [vmem:[%s266 + $0x68] sm:$0xff]
        %v329 = vld [vmem:[%s266 + $0x70] sm:$0xff]
        %v330 = vld [vmem:[%s266 + $0x78] sm:$0xff]
        %v331 = vld [vmem:[%s266 + $0x80] sm:$0xff]
        %v332 = vld [vmem:[%s266 + $0x88] sm:$0xff]
        %v333 = vld [vmem:[%s266 + $0x90] sm:$0xff]
        %v334 = vld [vmem:[%s266 + $0x98] sm:$0xff]
        %v335 = vld [vmem:[%s266 + $0xa0] sm:$0xff]
        %v336 = vld [vmem:[%s266 + $0xa8] sm:$0xff]
        %v337 = vld [vmem:[%s266 + $0xb0] sm:$0xff]
        %v338 = vld [vmem:[%s266 + $0xb8] sm:$0xff]
        %v339 = vld [vmem:[%s266 + $0xc0] sm:$0xff]
        %v340 = vld [vmem:[%s266 + $0xc8] sm:$0xff]
        %v341 = vld [vmem:[%s266 + $0xd0] sm:$0xff]
        %v342 = vld [vmem:[%s266 + $0xd8] sm:$0xff]
        %v343 = vld [vmem:[%s266 + $0xe0] sm:$0xff]
        %v344 = vld [vmem:[%s266 + $0xe8] sm:$0xff]
        %v345 = vld [vmem:[%s266 + $0xf0] sm:$0xff]
        %v346 = vld [vmem:[%s266 + $0xf8] sm:$0xff]
        %v347 = vld [vmem:[#allocation5] sm:$0xff]
        %v348 = vld [vmem:[#allocation5 + $0x8] sm:$0xff]
        %v349 = vld [vmem:[#allocation5 + $0x10] sm:$0xff]
        %v350 = vld [vmem:[#allocation5 + $0x18] sm:$0xff]
        %v351 = vld [vmem:[#allocation5 + $0x20] sm:$0xff]
        %v352 = vld [vmem:[#allocation5 + $0x28] sm:$0xff]
        %v353 = vld [vmem:[#allocation5 + $0x30] sm:$0xff]
        %v354 = vld [vmem:[#allocation5 + $0x38] sm:$0xff]
        %v355 = vld [vmem:[#allocation5 + $0x40] sm:$0xff]
        %v356 = vld [vmem:[#allocation5 + $0x48] sm:$0xff]
        %v357 = vld [vmem:[#allocation5 + $0x50] sm:$0xff]
        %v358 = vld [vmem:[#allocation5 + $0x58] sm:$0xff]
        %v359 = vld [vmem:[#allocation5 + $0x60] sm:$0xff]
        %v360 = vld [vmem:[#allocation5 + $0x68] sm:$0xff]
        %v361 = vld [vmem:[#allocation5 + $0x70] sm:$0xff]
        %v362 = vld [vmem:[#allocation5 + $0x78] sm:$0xff]
        %v363 = vld [vmem:[#allocation5 + $0x80] sm:$0xff]
        %v364 = vld [vmem:[#allocation5 + $0x88] sm:$0xff]
        %v365 = vld [vmem:[#allocation5 + $0x90] sm:$0xff]
        %v366 = vld [vmem:[#allocation5 + $0x98] sm:$0xff]
        %v367 = vld [vmem:[#allocation5 + $0xa0] sm:$0xff]
        %v368 = vld [vmem:[#allocation5 + $0xa8] sm:$0xff]
        %v369 = vld [vmem:[#allocation5 + $0xb0] sm:$0xff]
        %v370 = vld [vmem:[#allocation5 + $0xb8] sm:$0xff]
        %v371 = vld [vmem:[#allocation5 + $0xc0] sm:$0xff]
        %v372 = vld [vmem:[#allocation5 + $0xc8] sm:$0xff]
        %v373 = vld [vmem:[#allocation5 + $0xd0] sm:$0xff]
        %v374 = vld [vmem:[#allocation5 + $0xd8] sm:$0xff]
        %v375 = vld [vmem:[#allocation5 + $0xe0] sm:$0xff]
        %v376 = vld [vmem:[#allocation5 + $0xe8] sm:$0xff]
        %v377 = vld [vmem:[#allocation5 + $0xf0] sm:$0xff]
        %v378 = vld [vmem:[#allocation5 + $0xf8] sm:$0xff]
        %v379 = vld [vmem:[#allocation5 + $0x100] sm:$0xff]
        %v380 = vld [vmem:[#allocation5 + $0x108] sm:$0xff]
        %v381 = vld [vmem:[#allocation5 + $0x110] sm:$0xff]
        %v382 = vld [vmem:[#allocation5 + $0x118] sm:$0xff]
        %v383 = vld [vmem:[#allocation5 + $0x120] sm:$0xff]
        %v384 = vld [vmem:[#allocation5 + $0x128] sm:$0xff]
        %v385 = vld [vmem:[#allocation5 + $0x130] sm:$0xff]
        %v386 = vld [vmem:[#allocation5 + $0x138] sm:$0xff]
        %v387 = vld [vmem:[#allocation5 + $0x140] sm:$0xff]
        %v388 = vld [vmem:[#allocation5 + $0x148] sm:$0xff]
        %v389 = vld [vmem:[#allocation5 + $0x150] sm:$0xff]
        %v390 = vld [vmem:[#allocation5 + $0x158] sm:$0xff]
        %v391 = vld [vmem:[#allocation5 + $0x160] sm:$0xff]
        %v392 = vld [vmem:[#allocation5 + $0x168] sm:$0xff]
        %v393 = vld [vmem:[#allocation5 + $0x170] sm:$0xff]
        %v394 = vld [vmem:[#allocation5 + $0x178] sm:$0xff]
        %v395 = vld [vmem:[#allocation5 + $0x180] sm:$0xff]
        %v396 = vld [vmem:[#allocation5 + $0x188] sm:$0xff]
        %v397 = vld [vmem:[#allocation5 + $0x190] sm:$0xff]
        %v398 = vld [vmem:[#allocation5 + $0x198] sm:$0xff]
        %v399 = vld [vmem:[#allocation5 + $0x1a0] sm:$0xff]
        %v400 = vld [vmem:[#allocation5 + $0x1a8] sm:$0xff]
        %v401 = vld [vmem:[#allocation5 + $0x1b0] sm:$0xff]
        %v402 = vld [vmem:[#allocation5 + $0x1b8] sm:$0xff]
        %v403 = vld [vmem:[#allocation5 + $0x1c0] sm:$0xff]
        %v404 = vld [vmem:[#allocation5 + $0x1c8] sm:$0xff]
        %v405 = vld [vmem:[#allocation5 + $0x1d0] sm:$0xff]
        %v406 = vld [vmem:[#allocation5 + $0x1d8] sm:$0xff]
        %v407 = vld [vmem:[#allocation5 + $0x1e0] sm:$0xff]
        %v408 = vld [vmem:[#allocation5 + $0x1e8] sm:$0xff]
        %v409 = vld [vmem:[#allocation5 + $0x1f0] sm:$0xff]
        %v410 = vld [vmem:[#allocation5 + $0x1f8] sm:$0xff]
        %v411 = vld [vmem:[#allocation5 + $0x200] sm:$0xff]
        %v412 = vld [vmem:[#allocation5 + $0x208] sm:$0xff]
        %v413 = vld [vmem:[#allocation5 + $0x210] sm:$0xff]
        %v414 = vld [vmem:[#allocation5 + $0x218] sm:$0xff]
        %v415 = vld [vmem:[#allocation5 + $0x220] sm:$0xff]
        %v416 = vld [vmem:[#allocation5 + $0x228] sm:$0xff]
        %v417 = vld [vmem:[#allocation5 + $0x230] sm:$0xff]
        %v418 = vld [vmem:[#allocation5 + $0x238] sm:$0xff]
        %v419 = vld [vmem:[#allocation5 + $0x240] sm:$0xff]
        %v420 = vld [vmem:[#allocation5 + $0x248] sm:$0xff]
        %v421 = vld [vmem:[#allocation5 + $0x250] sm:$0xff]
        %v422 = vld [vmem:[#allocation5 + $0x258] sm:$0xff]
        %v423 = vld [vmem:[#allocation5 + $0x260] sm:$0xff]
        %v424 = vld [vmem:[#allocation5 + $0x268] sm:$0xff]
        %v425 = vld [vmem:[#allocation5 + $0x270] sm:$0xff]
        %v426 = vld [vmem:[#allocation5 + $0x278] sm:$0xff]
        %v427 = vld [vmem:[#allocation5 + $0x280] sm:$0xff]
        %v428 = vld [vmem:[#allocation5 + $0x288] sm:$0xff]
        %v429 = vld [vmem:[#allocation5 + $0x290] sm:$0xff]
        %v430 = vld [vmem:[#allocation5 + $0x298] sm:$0xff]
        %v431 = vld [vmem:[#allocation5 + $0x2a0] sm:$0xff]
        %v432 = vld [vmem:[#allocation5 + $0x2a8] sm:$0xff]
        %v433 = vld [vmem:[#allocation5 + $0x2b0] sm:$0xff]
        %v434 = vld [vmem:[#allocation5 + $0x2b8] sm:$0xff]
        %v435 = vld [vmem:[#allocation5 + $0x2c0] sm:$0xff]
        %v436 = vld [vmem:[#allocation5 + $0x2c8] sm:$0xff]
        %v437 = vld [vmem:[#allocation5 + $0x2d0] sm:$0xff]
        %v438 = vld [vmem:[#allocation5 + $0x2d8] sm:$0xff]
        %v439 = vld [vmem:[#allocation5 + $0x2e0] sm:$0xff]
        %v440 = vld [vmem:[#allocation5 + $0x2e8] sm:$0xff]
        %v441 = vld [vmem:[#allocation5 + $0x2f0] sm:$0xff]
        %v442 = vld [vmem:[#allocation5 + $0x2f8] sm:$0xff]
        %v443 = vld [vmem:[#allocation5 + $0x300] sm:$0xff]
        %v444 = vld [vmem:[#allocation5 + $0x308] sm:$0xff]
        %v445 = vld [vmem:[#allocation5 + $0x310] sm:$0xff]
        %v446 = vld [vmem:[#allocation5 + $0x318] sm:$0xff]
        %v447 = vld [vmem:[#allocation5 + $0x320] sm:$0xff]
        %v448 = vld [vmem:[#allocation5 + $0x328] sm:$0xff]
        %v449 = vld [vmem:[#allocation5 + $0x330] sm:$0xff]
        %v450 = vld [vmem:[#allocation5 + $0x338] sm:$0xff]
        %v451 = vld [vmem:[#allocation5 + $0x340] sm:$0xff]
        %v452 = vld [vmem:[#allocation5 + $0x348] sm:$0xff]
        %v453 = vld [vmem:[#allocation5 + $0x350] sm:$0xff]
        %v454 = vld [vmem:[#allocation5 + $0x358] sm:$0xff]
        %v455 = vld [vmem:[#allocation5 + $0x360] sm:$0xff]
        %v456 = vld [vmem:[#allocation5 + $0x368] sm:$0xff]
        %v457 = vld [vmem:[#allocation5 + $0x370] sm:$0xff]
        %v458 = vld [vmem:[#allocation5 + $0x378] sm:$0xff]
        %v459 = vld [vmem:[#allocation5 + $0x380] sm:$0xff]
        %v460 = vld [vmem:[#allocation5 + $0x388] sm:$0xff]
        %v461 = vld [vmem:[#allocation5 + $0x390] sm:$0xff]
        %v462 = vld [vmem:[#allocation5 + $0x398] sm:$0xff]
        %v463 = vld [vmem:[#allocation5 + $0x3a0] sm:$0xff]
        %v464 = vld [vmem:[#allocation5 + $0x3a8] sm:$0xff]
        %v465 = vld [vmem:[#allocation5 + $0x3b0] sm:$0xff]
        %v466 = vld [vmem:[#allocation5 + $0x3b8] sm:$0xff]
        %v467 = vld [vmem:[#allocation5 + $0x3c0] sm:$0xff]
        %v468 = vld [vmem:[#allocation5 + $0x3c8] sm:$0xff]
        %v469 = vld [vmem:[#allocation5 + $0x3d0] sm:$0xff]
        %v470 = vld [vmem:[#allocation5 + $0x3d8] sm:$0xff]
        %v471 = vld [vmem:[#allocation5 + $0x3e0] sm:$0xff]
        %v472 = vld [vmem:[#allocation5 + $0x3e8] sm:$0xff]
        %v473 = vld [vmem:[#allocation5 + $0x3f0] sm:$0xff]
        %v474 = vld [vmem:[#allocation5 + $0x3f8] sm:$0xff]
        %v475 = vld [vmem:[#allocation5 + $0x400] sm:$0xff]
        %v476 = vld [vmem:[#allocation5 + $0x408] sm:$0xff]
        %v477 = vld [vmem:[#allocation5 + $0x410] sm:$0xff]
        %v478 = vld [vmem:[#allocation5 + $0x418] sm:$0xff]
        %v479 = vld [vmem:[#allocation5 + $0x420] sm:$0xff]
        %v480 = vld [vmem:[#allocation5 + $0x428] sm:$0xff]
        %v481 = vld [vmem:[#allocation5 + $0x430] sm:$0xff]
        %v482 = vld [vmem:[#allocation5 + $0x438] sm:$0xff]
        %v483 = vld [vmem:[#allocation5 + $0x440] sm:$0xff]
        %v484 = vld [vmem:[#allocation5 + $0x448] sm:$0xff]
        %v485 = vld [vmem:[#allocation5 + $0x450] sm:$0xff]
        %v486 = vld [vmem:[#allocation5 + $0x458] sm:$0xff]
        %v487 = vld [vmem:[#allocation5 + $0x460] sm:$0xff]
        %v488 = vld [vmem:[#allocation5 + $0x468] sm:$0xff]
        %v489 = vld [vmem:[#allocation5 + $0x470] sm:$0xff]
        %v490 = vld [vmem:[#allocation5 + $0x478] sm:$0xff]
        %v491 = vld [vmem:[#allocation5 + $0x480] sm:$0xff]
        %v492 = vld [vmem:[#allocation5 + $0x488] sm:$0xff]
        %v493 = vld [vmem:[#allocation5 + $0x490] sm:$0xff]
        %v494 = vld [vmem:[#allocation5 + $0x498] sm:$0xff]
        %v495 = vld [vmem:[#allocation5 + $0x4a0] sm:$0xff]
        %v496 = vld [vmem:[#allocation5 + $0x4a8] sm:$0xff]
        %v497 = vld [vmem:[#allocation5 + $0x4b0] sm:$0xff]
        %v498 = vld [vmem:[#allocation5 + $0x4b8] sm:$0xff]
        %v499 = vld [vmem:[#allocation5 + $0x4c0] sm:$0xff]
        %v500 = vld [vmem:[#allocation5 + $0x4c8] sm:$0xff]
        %v501 = vld [vmem:[#allocation5 + $0x4d0] sm:$0xff]
        %v502 = vld [vmem:[#allocation5 + $0x4d8] sm:$0xff]
        %v503 = vld [vmem:[#allocation5 + $0x4e0] sm:$0xff]
        %v504 = vld [vmem:[#allocation5 + $0x4e8] sm:$0xff]
        %v505 = vld [vmem:[#allocation5 + $0x4f0] sm:$0xff]
        %v506 = vld [vmem:[#allocation5 + $0x4f8] sm:$0xff]
        %v507 = vld [vmem:[#allocation5 + $0x500] sm:$0xff]
        %v508 = vld [vmem:[#allocation5 + $0x508] sm:$0xff]
        %v509 = vld [vmem:[#allocation5 + $0x510] sm:$0xff]
        %v510 = vld [vmem:[#allocation5 + $0x518] sm:$0xff]
        %v511 = vld [vmem:[#allocation5 + $0x520] sm:$0xff]
        %v512 = vld [vmem:[#allocation5 + $0x528] sm:$0xff]
        %v513 = vld [vmem:[#allocation5 + $0x530] sm:$0xff]
        %v514 = vld [vmem:[#allocation5 + $0x538] sm:$0xff]
        %v515 = vld [vmem:[#allocation5 + $0x540] sm:$0xff]
        %v516 = vld [vmem:[#allocation5 + $0x548] sm:$0xff]
        %v517 = vld [vmem:[#allocation5 + $0x550] sm:$0xff]
        %v518 = vld [vmem:[#allocation5 + $0x558] sm:$0xff]
        %v519 = vld [vmem:[#allocation5 + $0x560] sm:$0xff]
        %v520 = vld [vmem:[#allocation5 + $0x568] sm:$0xff]
        %v521 = vld [vmem:[#allocation5 + $0x570] sm:$0xff]
        %v522 = vld [vmem:[#allocation5 + $0x578] sm:$0xff]
        %v523 = vld [vmem:[#allocation5 + $0x580] sm:$0xff]
        %v524 = vld [vmem:[#allocation5 + $0x588] sm:$0xff]
        %v525 = vld [vmem:[#allocation5 + $0x590] sm:$0xff]
        %v526 = vld [vmem:[#allocation5 + $0x598] sm:$0xff]
        %v527 = vld [vmem:[#allocation5 + $0x5a0] sm:$0xff]
        %v528 = vld [vmem:[#allocation5 + $0x5a8] sm:$0xff]
        %v529 = vld [vmem:[#allocation5 + $0x5b0] sm:$0xff]
        %v530 = vld [vmem:[#allocation5 + $0x5b8] sm:$0xff]
        %v531 = vld [vmem:[#allocation5 + $0x5c0] sm:$0xff]
        %v532 = vld [vmem:[#allocation5 + $0x5c8] sm:$0xff]
        %v533 = vld [vmem:[#allocation5 + $0x5d0] sm:$0xff]
        %v534 = vld [vmem:[#allocation5 + $0x5d8] sm:$0xff]
        %v535 = vld [vmem:[#allocation5 + $0x5e0] sm:$0xff]
        %v536 = vld [vmem:[#allocation5 + $0x5e8] sm:$0xff]
        %v537 = vld [vmem:[#allocation5 + $0x5f0] sm:$0xff]
        %v538 = vld [vmem:[#allocation5 + $0x5f8] sm:$0xff]
        %v539 = vld [vmem:[#allocation7] sm:$0x3f]
        %v541 = vlaneseq
        %v542 = vshrl.u32 %v541, 7
        %v543 = vsub.s32 0, %v542
        %v544 = vrot.slane %v539, %v543
        %v545 = vlaneseq
        %v546 = vshrl.u32 %v545, 7
        %v547 = vsub.s32 1, %v546
        %v548 = vrot.slane %v539, %v547
        %v549 = vlaneseq
        %v550 = vshrl.u32 %v549, 7
        %v551 = vsub.s32 2, %v550
        %v552 = vrot.slane %v539, %v551
        %v553 = vlaneseq
        %v554 = vshrl.u32 %v553, 7
        %v555 = vsub.s32 3, %v554
        %v556 = vrot.slane %v539, %v555
        %v557 = vlaneseq
        %v558 = vshrl.u32 %v557, 7
        %v559 = vsub.s32 4, %v558
        %v560 = vrot.slane %v539, %v559
        %v561 = vlaneseq
        %v562 = vshrl.u32 %v561, 7
        %v563 = vsub.s32 5, %v562
        %v564 = vrot.slane %v539, %v563
        %571 = vmatprep.subr.mxu0 %v438
        %572 = vmatpush1.msra.mxu0 %v437
        %573 = vmatprep.subr.mxu0 %v432
        %574 = vmatpush1.msra.mxu0 %v431
        %575 = vmatprep.subr.mxu0 %v426
        %576 = vmatpush1.msra.mxu0 %v425
        %577 = vmatprep.subr.mxu0 %v420
        %578 = vmatpush1.msra.mxu0 %v419
        %579 = vmatprep.subr.mxu0 %v414
        %580 = vmatpush1.msra.mxu0 %v413
        %581 = vmatprep.subr.mxu0 %v408
        %582 = vmatpush1.msra.mxu0 %v407
        %583 = vmatprep.subr.mxu0 %v402
        %584 = vmatpush1.msra.mxu0 %v401
        %585 = vmatprep.subr.mxu0 %v396
        %586 = vmatpush1.msra.mxu0 %v395
        %587 = vmatprep.subr.mxu0 %v390
        %588 = vmatpush1.msra.mxu0 %v389
        %589 = vmatprep.subr.mxu0 %v384
        %590 = vmatpush1.msra.mxu0 %v383
        %591 = vmatprep.subr.mxu0 %v378
        %592 = vmatpush1.msra.mxu0 %v377
        %593 = vmatprep.subr.mxu0 %v372
        %594 = vmatpush1.msra.mxu0 %v371
        %595 = vmatprep.subr.mxu0 %v366
        %596 = vmatpush1.msra.mxu0 %v365
        %597 = vmatprep.subr.mxu0 %v360
        %598 = vmatpush1.msra.mxu0 %v359
        %599 = vmatprep.subr.mxu0 %v354
        %600 = vmatpush1.msra.mxu0 %v353
        %601 = vmatprep.subr.mxu0 %v348
        %602 = vmatpush1.msra.mxu0 %v347
        %603 = vmatprep.subr.mxu0 %v534
        %604 = vmatpush2.msra.mxu0 %v533
        %605 = vmatprep.subr.mxu0 %v528
        %606 = vmatpush2.msra.mxu0 %v527
        %607 = vmatprep.subr.mxu0 %v522
        %608 = vmatpush2.msra.mxu0 %v521
        %609 = vmatprep.subr.mxu0 %v516
        %610 = vmatpush2.msra.mxu0 %v515
        %611 = vmatprep.subr.mxu0 %v510
        %612 = vmatpush2.msra.mxu0 %v509
        %613 = vmatprep.subr.mxu0 %v504
        %614 = vmatpush2.msra.mxu0 %v503
        %615 = vmatprep.subr.mxu0 %v498
        %616 = vmatpush2.msra.mxu0 %v497
        %617 = vmatprep.subr.mxu0 %v492
        %618 = vmatpush2.msra.mxu0 %v491
        %619 = vmatprep.subr.mxu0 %v486
        %620 = vmatpush2.msra.mxu0 %v485
        %621 = vmatprep.subr.mxu0 %v480
        %622 = vmatpush2.msra.mxu0 %v479
        %623 = vmatprep.subr.mxu0 %v474
        %624 = vmatpush2.msra.mxu0 %v473
        %625 = vmatprep.subr.mxu0 %v468
        %626 = vmatpush2.msra.mxu0 %v467
        %627 = vmatprep.subr.mxu0 %v462
        %628 = vmatpush2.msra.mxu0 %v461
        %629 = vmatprep.subr.mxu0 %v456
        %630 = vmatpush2.msra.mxu0 %v455
        %631 = vmatprep.subr.mxu0 %v450
        %632 = vmatpush2.msra.mxu0 %v449
        %633 = vmatprep.subr.mxu0 %v444
        %634 = vmatpush2.msra.mxu0 %v443
        %635 = vmatprep.mubr.f32.mxu0 %v316
        %636 = vmatmul.mubr.f32.gmra.mxu0 %v315
        %v637 = vpop.f32.mrf.mxu0
        %v638 = vadd.f32 %v544, %v637
        %v639 = vpop.f32.mrf.mxu0
        %v640 = vadd.f32 %v548, %v639
        %641 = vmatprep.mubr.f32.mxu0 %v318
        %642 = vmatmul.mubr.f32.gmra.mxu0 %v317
        %v643 = vpop.f32.mrf.mxu0
        %v644 = vadd.f32 %v544, %v643
        %v645 = vpop.f32.mrf.mxu0
        %v646 = vadd.f32 %v548, %v645
        %647 = vmatprep.mubr.f32.mxu0 %v320
        %648 = vmatmul.mubr.f32.gmra.mxu0 %v319
        %v649 = vpop.f32.mrf.mxu0
        %v650 = vadd.f32 %v544, %v649
        %v651 = vpop.f32.mrf.mxu0
        %v652 = vadd.f32 %v548, %v651
        %653 = vmatprep.mubr.f32.mxu0 %v322
        %654 = vmatmul.mubr.f32.gmra.mxu0 %v321
        %v655 = vpop.f32.mrf.mxu0
        %v656 = vadd.f32 %v544, %v655
        %v657 = vpop.f32.mrf.mxu0
        %v658 = vadd.f32 %v548, %v657
        %659 = vmatprep.mubr.f32.mxu0 %v324
        %660 = vmatmul.mubr.f32.gmra.mxu0 %v323
        %v661 = vpop.f32.mrf.mxu0
        %v662 = vadd.f32 %v544, %v661
        %v663 = vpop.f32.mrf.mxu0
        %v664 = vadd.f32 %v548, %v663
        %665 = vmatprep.mubr.f32.mxu0 %v326
        %666 = vmatmul.mubr.f32.gmra.mxu0 %v325
        %v667 = vpop.f32.mrf.mxu0
        %v668 = vadd.f32 %v544, %v667
        %v669 = vpop.f32.mrf.mxu0
        %v670 = vadd.f32 %v548, %v669
        %671 = vmatprep.mubr.f32.mxu0 %v328
        %672 = vmatmul.mubr.f32.gmra.mxu0 %v327
        %v673 = vpop.f32.mrf.mxu0
        %v674 = vadd.f32 %v544, %v673
        %v675 = vpop.f32.mrf.mxu0
        %v676 = vadd.f32 %v548, %v675
        %677 = vmatprep.mubr.f32.mxu0 %v330
        %678 = vmatmul.mubr.f32.gmra.mxu0 %v329
        %v679 = vpop.f32.mrf.mxu0
        %v680 = vadd.f32 %v544, %v679
        %v681 = vpop.f32.mrf.mxu0
        %v682 = vadd.f32 %v548, %v681
        %683 = vmatprep.mubr.f32.mxu0 %v332
        %684 = vmatmul.mubr.f32.gmra.mxu0 %v331
        %v685 = vpop.f32.mrf.mxu0
        %v686 = vadd.f32 %v544, %v685
        %v687 = vpop.f32.mrf.mxu0
        %v688 = vadd.f32 %v548, %v687
        %689 = vmatprep.mubr.f32.mxu0 %v334
        %690 = vmatmul.mubr.f32.gmra.mxu0 %v333
        %v691 = vpop.f32.mrf.mxu0
        %v692 = vadd.f32 %v544, %v691
        %v693 = vpop.f32.mrf.mxu0
        %v694 = vadd.f32 %v548, %v693
        %695 = vmatprep.mubr.f32.mxu0 %v336
        %696 = vmatmul.mubr.f32.gmra.mxu0 %v335
        %v697 = vpop.f32.mrf.mxu0
        %v698 = vadd.f32 %v544, %v697
        %v699 = vpop.f32.mrf.mxu0
        %v700 = vadd.f32 %v548, %v699
        %701 = vmatprep.mubr.f32.mxu0 %v338
        %702 = vmatmul.mubr.f32.gmra.mxu0 %v337
        %v703 = vpop.f32.mrf.mxu0
        %v704 = vadd.f32 %v544, %v703
        %v705 = vpop.f32.mrf.mxu0
        %v706 = vadd.f32 %v548, %v705
        %707 = vmatprep.mubr.f32.mxu0 %v340
        %708 = vmatmul.mubr.f32.gmra.mxu0 %v339
        %v709 = vpop.f32.mrf.mxu0
        %v710 = vadd.f32 %v544, %v709
        %v711 = vpop.f32.mrf.mxu0
        %v712 = vadd.f32 %v548, %v711
        %713 = vmatprep.mubr.f32.mxu0 %v342
        %714 = vmatmul.mubr.f32.gmra.mxu0 %v341
        %v715 = vpop.f32.mrf.mxu0
        %v716 = vadd.f32 %v544, %v715
        %v717 = vpop.f32.mrf.mxu0
        %v718 = vadd.f32 %v548, %v717
        %719 = vmatprep.mubr.f32.mxu0 %v344
        %720 = vmatmul.mubr.f32.gmra.mxu0 %v343
        %v721 = vpop.f32.mrf.mxu0
        %v722 = vadd.f32 %v544, %v721
        %v723 = vpop.f32.mrf.mxu0
        %v724 = vadd.f32 %v548, %v723
        %725 = vmatprep.mubr.f32.mxu0 %v346
        %726 = vmatmul.mubr.f32.gmra.mxu0 %v345
        %v727 = vpop.f32.mrf.mxu0
        %v728 = vadd.f32 %v544, %v727
        %v729 = vpop.f32.mrf.mxu0
        %v730 = vadd.f32 %v548, %v729
        %731 = vdwg.mxu0
        %732 = vmatprep.subr.mxu0 %v440
        %733 = vmatpush1.msra.mxu0 %v439
        %734 = vmatprep.subr.mxu0 %v434
        %735 = vmatpush1.msra.mxu0 %v433
        %736 = vmatprep.subr.mxu0 %v428
        %737 = vmatpush1.msra.mxu0 %v427
        %738 = vmatprep.subr.mxu0 %v422
        %739 = vmatpush1.msra.mxu0 %v421
        %740 = vmatprep.subr.mxu0 %v416
        %741 = vmatpush1.msra.mxu0 %v415
        %742 = vmatprep.subr.mxu0 %v410
        %743 = vmatpush1.msra.mxu0 %v409
        %744 = vmatprep.subr.mxu0 %v404
        %745 = vmatpush1.msra.mxu0 %v403
        %746 = vmatprep.subr.mxu0 %v398
        %747 = vmatpush1.msra.mxu0 %v397
        %748 = vmatprep.subr.mxu0 %v392
        %749 = vmatpush1.msra.mxu0 %v391
        %750 = vmatprep.subr.mxu0 %v386
        %751 = vmatpush1.msra.mxu0 %v385
        %752 = vmatprep.subr.mxu0 %v380
        %753 = vmatpush1.msra.mxu0 %v379
        %754 = vmatprep.subr.mxu0 %v374
        %755 = vmatpush1.msra.mxu0 %v373
        %756 = vmatprep.subr.mxu0 %v368
        %757 = vmatpush1.msra.mxu0 %v367
        %758 = vmatprep.subr.mxu0 %v362
        %759 = vmatpush1.msra.mxu0 %v361
        %760 = vmatprep.subr.mxu0 %v356
        %761 = vmatpush1.msra.mxu0 %v355
        %762 = vmatprep.subr.mxu0 %v350
        %763 = vmatpush1.msra.mxu0 %v349
        %764 = vmatprep.subr.mxu0 %v536
        %765 = vmatpush2.msra.mxu0 %v535
        %766 = vmatprep.subr.mxu0 %v530
        %767 = vmatpush2.msra.mxu0 %v529
        %768 = vmatprep.subr.mxu0 %v524
        %769 = vmatpush2.msra.mxu0 %v523
        %770 = vmatprep.subr.mxu0 %v518
        %771 = vmatpush2.msra.mxu0 %v517
        %772 = vmatprep.subr.mxu0 %v512
        %773 = vmatpush2.msra.mxu0 %v511
        %774 = vmatprep.subr.mxu0 %v506
        %775 = vmatpush2.msra.mxu0 %v505
        %776 = vmatprep.subr.mxu0 %v500
        %777 = vmatpush2.msra.mxu0 %v499
        %778 = vmatprep.subr.mxu0 %v494
        %779 = vmatpush2.msra.mxu0 %v493
        %780 = vmatprep.subr.mxu0 %v488
        %781 = vmatpush2.msra.mxu0 %v487
        %782 = vmatprep.subr.mxu0 %v482
        %783 = vmatpush2.msra.mxu0 %v481
        %784 = vmatprep.subr.mxu0 %v476
        %785 = vmatpush2.msra.mxu0 %v475
        %786 = vmatprep.subr.mxu0 %v470
        %787 = vmatpush2.msra.mxu0 %v469
        %788 = vmatprep.subr.mxu0 %v464
        %789 = vmatpush2.msra.mxu0 %v463
        %790 = vmatprep.subr.mxu0 %v458
        %791 = vmatpush2.msra.mxu0 %v457
        %792 = vmatprep.subr.mxu0 %v452
        %793 = vmatpush2.msra.mxu0 %v451
        %794 = vmatprep.subr.mxu0 %v446
        %795 = vmatpush2.msra.mxu0 %v445
        %796 = vmatprep.mubr.f32.mxu0 %v316
        %797 = vmatmul.mubr.f32.gmra.mxu0 %v315
        %v798 = vpop.f32.mrf.mxu0
        %v799 = vadd.f32 %v552, %v798
        %v800 = vpop.f32.mrf.mxu0
        %v801 = vadd.f32 %v556, %v800
        %802 = vmatprep.mubr.f32.mxu0 %v318
        %803 = vmatmul.mubr.f32.gmra.mxu0 %v317
        %v804 = vpop.f32.mrf.mxu0
        %v805 = vadd.f32 %v552, %v804
        %v806 = vpop.f32.mrf.mxu0
        %v807 = vadd.f32 %v556, %v806
        %808 = vmatprep.mubr.f32.mxu0 %v320
        %809 = vmatmul.mubr.f32.gmra.mxu0 %v319
        %v810 = vpop.f32.mrf.mxu0
        %v811 = vadd.f32 %v552, %v810
        %v812 = vpop.f32.mrf.mxu0
        %v813 = vadd.f32 %v556, %v812
        %814 = vmatprep.mubr.f32.mxu0 %v322
        %815 = vmatmul.mubr.f32.gmra.mxu0 %v321
        %v816 = vpop.f32.mrf.mxu0
        %v817 = vadd.f32 %v552, %v816
        %v818 = vpop.f32.mrf.mxu0
        %v819 = vadd.f32 %v556, %v818
        %820 = vmatprep.mubr.f32.mxu0 %v324
        %821 = vmatmul.mubr.f32.gmra.mxu0 %v323
        %v822 = vpop.f32.mrf.mxu0
        %v823 = vadd.f32 %v552, %v822
        %v824 = vpop.f32.mrf.mxu0
        %v825 = vadd.f32 %v556, %v824
        %826 = vmatprep.mubr.f32.mxu0 %v326
        %827 = vmatmul.mubr.f32.gmra.mxu0 %v325
        %v828 = vpop.f32.mrf.mxu0
        %v829 = vadd.f32 %v552, %v828
        %v830 = vpop.f32.mrf.mxu0
        %v831 = vadd.f32 %v556, %v830
        %832 = vmatprep.mubr.f32.mxu0 %v328
        %833 = vmatmul.mubr.f32.gmra.mxu0 %v327
        %v834 = vpop.f32.mrf.mxu0
        %v835 = vadd.f32 %v552, %v834
        %v836 = vpop.f32.mrf.mxu0
        %v837 = vadd.f32 %v556, %v836
        %838 = vmatprep.mubr.f32.mxu0 %v330
        %839 = vmatmul.mubr.f32.gmra.mxu0 %v329
        %v840 = vpop.f32.mrf.mxu0
        %v841 = vadd.f32 %v552, %v840
        %v842 = vpop.f32.mrf.mxu0
        %v843 = vadd.f32 %v556, %v842
        %844 = vmatprep.mubr.f32.mxu0 %v332
        %845 = vmatmul.mubr.f32.gmra.mxu0 %v331
        %v846 = vpop.f32.mrf.mxu0
        %v847 = vadd.f32 %v552, %v846
        %v848 = vpop.f32.mrf.mxu0
        %v849 = vadd.f32 %v556, %v848
        %850 = vmatprep.mubr.f32.mxu0 %v334
        %851 = vmatmul.mubr.f32.gmra.mxu0 %v333
        %v852 = vpop.f32.mrf.mxu0
        %v853 = vadd.f32 %v552, %v852
        %v854 = vpop.f32.mrf.mxu0
        %v855 = vadd.f32 %v556, %v854
        %856 = vmatprep.mubr.f32.mxu0 %v336
        %857 = vmatmul.mubr.f32.gmra.mxu0 %v335
        %v858 = vpop.f32.mrf.mxu0
        %v859 = vadd.f32 %v552, %v858
        %v860 = vpop.f32.mrf.mxu0
        %v861 = vadd.f32 %v556, %v860
        %862 = vmatprep.mubr.f32.mxu0 %v338
        %863 = vmatmul.mubr.f32.gmra.mxu0 %v337
        %v864 = vpop.f32.mrf.mxu0
        %v865 = vadd.f32 %v552, %v864
        %v866 = vpop.f32.mrf.mxu0
        %v867 = vadd.f32 %v556, %v866
        %868 = vmatprep.mubr.f32.mxu0 %v340
        %869 = vmatmul.mubr.f32.gmra.mxu0 %v339
        %v870 = vpop.f32.mrf.mxu0
        %v871 = vadd.f32 %v552, %v870
        %v872 = vpop.f32.mrf.mxu0
        %v873 = vadd.f32 %v556, %v872
        %874 = vmatprep.mubr.f32.mxu0 %v342
        %875 = vmatmul.mubr.f32.gmra.mxu0 %v341
        %v876 = vpop.f32.mrf.mxu0
        %v877 = vadd.f32 %v552, %v876
        %v878 = vpop.f32.mrf.mxu0
        %v879 = vadd.f32 %v556, %v878
        %880 = vmatprep.mubr.f32.mxu0 %v344
        %881 = vmatmul.mubr.f32.gmra.mxu0 %v343
        %v882 = vpop.f32.mrf.mxu0
        %v883 = vadd.f32 %v552, %v882
        %v884 = vpop.f32.mrf.mxu0
        %v885 = vadd.f32 %v556, %v884
        %886 = vmatprep.mubr.f32.mxu0 %v346
        %887 = vmatmul.mubr.f32.gmra.mxu0 %v345
        %v888 = vpop.f32.mrf.mxu0
        %v889 = vadd.f32 %v552, %v888
        %v890 = vpop.f32.mrf.mxu0
        %v891 = vadd.f32 %v556, %v890
        %892 = vdwg.mxu0
        %893 = vmatprep.subr.mxu0 %v442
        %894 = vmatpush1.msra.mxu0 %v441
        %895 = vmatprep.subr.mxu0 %v436
        %896 = vmatpush1.msra.mxu0 %v435
        %897 = vmatprep.subr.mxu0 %v430
        %898 = vmatpush1.msra.mxu0 %v429
        %899 = vmatprep.subr.mxu0 %v424
        %900 = vmatpush1.msra.mxu0 %v423
        %901 = vmatprep.subr.mxu0 %v418
        %902 = vmatpush1.msra.mxu0 %v417
        %903 = vmatprep.subr.mxu0 %v412
        %904 = vmatpush1.msra.mxu0 %v411
        %905 = vmatprep.subr.mxu0 %v406
        %906 = vmatpush1.msra.mxu0 %v405
        %907 = vmatprep.subr.mxu0 %v400
        %908 = vmatpush1.msra.mxu0 %v399
        %909 = vmatprep.subr.mxu0 %v394
        %910 = vmatpush1.msra.mxu0 %v393
        %911 = vmatprep.subr.mxu0 %v388
        %912 = vmatpush1.msra.mxu0 %v387
        %913 = vmatprep.subr.mxu0 %v382
        %914 = vmatpush1.msra.mxu0 %v381
        %915 = vmatprep.subr.mxu0 %v376
        %916 = vmatpush1.msra.mxu0 %v375
        %917 = vmatprep.subr.mxu0 %v370
        %918 = vmatpush1.msra.mxu0 %v369
        %919 = vmatprep.subr.mxu0 %v364
        %920 = vmatpush1.msra.mxu0 %v363
        %921 = vmatprep.subr.mxu0 %v358
        %922 = vmatpush1.msra.mxu0 %v357
        %923 = vmatprep.subr.mxu0 %v352
        %924 = vmatpush1.msra.mxu0 %v351
        %925 = vmatprep.subr.mxu0 %v538
        %926 = vmatpush2.msra.mxu0 %v537
        %927 = vmatprep.subr.mxu0 %v532
        %928 = vmatpush2.msra.mxu0 %v531
        %929 = vmatprep.subr.mxu0 %v526
        %930 = vmatpush2.msra.mxu0 %v525
        %931 = vmatprep.subr.mxu0 %v520
        %932 = vmatpush2.msra.mxu0 %v519
        %933 = vmatprep.subr.mxu0 %v514
        %934 = vmatpush2.msra.mxu0 %v513
        %935 = vmatprep.subr.mxu0 %v508
        %936 = vmatpush2.msra.mxu0 %v507
        %937 = vmatprep.subr.mxu0 %v502
        %938 = vmatpush2.msra.mxu0 %v501
        %939 = vmatprep.subr.mxu0 %v496
        %940 = vmatpush2.msra.mxu0 %v495
        %941 = vmatprep.subr.mxu0 %v490
        %942 = vmatpush2.msra.mxu0 %v489
        %943 = vmatprep.subr.mxu0 %v484
        %944 = vmatpush2.msra.mxu0 %v483
        %945 = vmatprep.subr.mxu0 %v478
        %946 = vmatpush2.msra.mxu0 %v477
        %947 = vmatprep.subr.mxu0 %v472
        %948 = vmatpush2.msra.mxu0 %v471
        %949 = vmatprep.subr.mxu0 %v466
        %950 = vmatpush2.msra.mxu0 %v465
        %951 = vmatprep.subr.mxu0 %v460
        %952 = vmatpush2.msra.mxu0 %v459
        %953 = vmatprep.subr.mxu0 %v454
        %954 = vmatpush2.msra.mxu0 %v453
        %955 = vmatprep.subr.mxu0 %v448
        %956 = vmatpush2.msra.mxu0 %v447
        %957 = vmatprep.mubr.f32.mxu0 %v316
        %958 = vmatmul.mubr.f32.gmra.mxu0 %v315
        %v959 = vpop.f32.mrf.mxu0
        %v960 = vadd.f32 %v560, %v959
        %v961 = vpop.f32.mrf.mxu0
        %v962 = vadd.f32 %v564, %v961
        %963 = vmatprep.mubr.f32.mxu0 %v318
        %964 = vmatmul.mubr.f32.gmra.mxu0 %v317
        %v965 = vpop.f32.mrf.mxu0
        %v966 = vadd.f32 %v560, %v965
        %v967 = vpop.f32.mrf.mxu0
        %v968 = vadd.f32 %v564, %v967
        %969 = vmatprep.mubr.f32.mxu0 %v320
        %970 = vmatmul.mubr.f32.gmra.mxu0 %v319
        %v971 = vpop.f32.mrf.mxu0
        %v972 = vadd.f32 %v560, %v971
        %v973 = vpop.f32.mrf.mxu0
        %v974 = vadd.f32 %v564, %v973
        %975 = vmatprep.mubr.f32.mxu0 %v322
        %976 = vmatmul.mubr.f32.gmra.mxu0 %v321
        %v977 = vpop.f32.mrf.mxu0
        %v978 = vadd.f32 %v560, %v977
        %v979 = vpop.f32.mrf.mxu0
        %v980 = vadd.f32 %v564, %v979
        %981 = vmatprep.mubr.f32.mxu0 %v324
        %982 = vmatmul.mubr.f32.gmra.mxu0 %v323
        %v983 = vpop.f32.mrf.mxu0
        %v984 = vadd.f32 %v560, %v983
        %v985 = vpop.f32.mrf.mxu0
        %v986 = vadd.f32 %v564, %v985
        %987 = vmatprep.mubr.f32.mxu0 %v326
        %988 = vmatmul.mubr.f32.gmra.mxu0 %v325
        %v989 = vpop.f32.mrf.mxu0
        %v990 = vadd.f32 %v560, %v989
        %v991 = vpop.f32.mrf.mxu0
        %v992 = vadd.f32 %v564, %v991
        %993 = vmatprep.mubr.f32.mxu0 %v328
        %994 = vmatmul.mubr.f32.gmra.mxu0 %v327
        %v995 = vpop.f32.mrf.mxu0
        %v996 = vadd.f32 %v560, %v995
        %v997 = vpop.f32.mrf.mxu0
        %v998 = vadd.f32 %v564, %v997
        %999 = vmatprep.mubr.f32.mxu0 %v330
        %1000 = vmatmul.mubr.f32.gmra.mxu0 %v329
        %v1001 = vpop.f32.mrf.mxu0
        %v1002 = vadd.f32 %v560, %v1001
        %v1003 = vpop.f32.mrf.mxu0
        %v1004 = vadd.f32 %v564, %v1003
        %1005 = vmatprep.mubr.f32.mxu0 %v332
        %1006 = vmatmul.mubr.f32.gmra.mxu0 %v331
        %v1007 = vpop.f32.mrf.mxu0
        %v1008 = vadd.f32 %v560, %v1007
        %v1009 = vpop.f32.mrf.mxu0
        %v1010 = vadd.f32 %v564, %v1009
        %1011 = vmatprep.mubr.f32.mxu0 %v334
        %1012 = vmatmul.mubr.f32.gmra.mxu0 %v333
        %v1013 = vpop.f32.mrf.mxu0
        %v1014 = vadd.f32 %v560, %v1013
        %v1015 = vpop.f32.mrf.mxu0
        %v1016 = vadd.f32 %v564, %v1015
        %1017 = vmatprep.mubr.f32.mxu0 %v336
        %1018 = vmatmul.mubr.f32.gmra.mxu0 %v335
        %v1019 = vpop.f32.mrf.mxu0
        %v1020 = vadd.f32 %v560, %v1019
        %v1021 = vpop.f32.mrf.mxu0
        %v1022 = vadd.f32 %v564, %v1021
        %1023 = vmatprep.mubr.f32.mxu0 %v338
        %1024 = vmatmul.mubr.f32.gmra.mxu0 %v337
        %v1025 = vpop.f32.mrf.mxu0
        %v1026 = vadd.f32 %v560, %v1025
        %v1027 = vpop.f32.mrf.mxu0
        %v1028 = vadd.f32 %v564, %v1027
        %1029 = vmatprep.mubr.f32.mxu0 %v340
        %1030 = vmatmul.mubr.f32.gmra.mxu0 %v339
        %v1031 = vpop.f32.mrf.mxu0
        %v1032 = vadd.f32 %v560, %v1031
        %v1033 = vpop.f32.mrf.mxu0
        %v1034 = vadd.f32 %v564, %v1033
        %1035 = vmatprep.mubr.f32.mxu0 %v342
        %1036 = vmatmul.mubr.f32.gmra.mxu0 %v341
        %v1037 = vpop.f32.mrf.mxu0
        %v1038 = vadd.f32 %v560, %v1037
        %v1039 = vpop.f32.mrf.mxu0
        %v1040 = vadd.f32 %v564, %v1039
        %1041 = vmatprep.mubr.f32.mxu0 %v344
        %1042 = vmatmul.mubr.f32.gmra.mxu0 %v343
        %v1043 = vpop.f32.mrf.mxu0
        %v1044 = vadd.f32 %v560, %v1043
        %v1045 = vpop.f32.mrf.mxu0
        %v1046 = vadd.f32 %v564, %v1045
        %1047 = vmatprep.mubr.f32.mxu0 %v346
        %1048 = vmatmul.mubr.f32.gmra.mxu0 %v345
        %v1049 = vpop.f32.mrf.mxu0
        %v1050 = vadd.f32 %v560, %v1049
        %v1051 = vpop.f32.mrf.mxu0
        %v1052 = vadd.f32 %v564, %v1051
        %1053 = vdwg.mxu0
        %v1054 = vcombine.high %v638, 0.0
        %v1056 = vunpack.c.l.s4 1983009808
        %v1057 = vunpack.c.0.s8 %v1056
        %v1058 = vlaneseq
        %v1059 = vshrl.u32 %v1058, 7
        %v1060 = vsub.s32 %v1057, %v1059
        %v1061 = vrot.slane %v638, %v1060
        %v1063 = vunpack.c.l.s4 1983009808
        %v1064 = vunpack.c.0.s8 %v1063
        %v1065 = vlaneseq
        %v1066 = vshrl.u32 %v1065, 7
        %v1067 = vsub.s32 %v1064, %v1066
        %v1068 = vrot.slane %v1054, %v1067
        %v1069 = vcombine.high %v640, 0.0
        %v1071 = vunpack.c.l.s4 1983009808
        %v1072 = vunpack.c.0.s8 %v1071
        %v1073 = vlaneseq
        %v1074 = vshrl.u32 %v1073, 7
        %v1075 = vsub.s32 %v1072, %v1074
        %v1076 = vrot.slane %v640, %v1075
        %v1078 = vunpack.c.l.s4 1983009808
        %v1079 = vunpack.c.0.s8 %v1078
        %v1080 = vlaneseq
        %v1081 = vshrl.u32 %v1080, 7
        %v1082 = vsub.s32 %v1079, %v1081
        %v1083 = vrot.slane %v1069, %v1082
        %v1084 = vcombine.low %v1061, %v1076
        %v1085 = vcombine.high %v1061, %v1076
        %v1087 = vunpack.c.l.s4 1934713408
        %v1088 = vunpack.c.0.s8 %v1087
        %v1089 = vlaneseq
        %v1090 = vshrl.u32 %v1089, 7
        %v1091 = vsub.s32 %v1088, %v1090
        %v1092 = vrot.slane %v1084, %v1091
        %v1094 = vunpack.c.l.s4 1934713408
        %v1095 = vunpack.c.0.s8 %v1094
        %v1096 = vlaneseq
        %v1097 = vshrl.u32 %v1096, 7
        %v1098 = vsub.s32 %v1095, %v1097
        %v1099 = vrot.slane %v1085, %v1098
        %v1100 = vcombine.low %v1068, %v1083
        %v1101 = vcombine.high %v1068, %v1083
        %v1103 = vunpack.c.l.s4 1934713408
        %v1104 = vunpack.c.0.s8 %v1103
        %v1105 = vlaneseq
        %v1106 = vshrl.u32 %v1105, 7
        %v1107 = vsub.s32 %v1104, %v1106
        %v1108 = vrot.slane %v1100, %v1107
        %v1110 = vunpack.c.l.s4 1934713408
        %v1111 = vunpack.c.0.s8 %v1110
        %v1112 = vlaneseq
        %v1113 = vshrl.u32 %v1112, 7
        %v1114 = vsub.s32 %v1111, %v1113
        %v1115 = vrot.slane %v1101, %v1114
        %v1116 = vcombine.high %v1092, 0.0
        %v1117 = vcombine.high %v1099, 0.0
        %v1118 = vcombine.high %v1108, 0.0
        %v1119 = vcombine.high %v1115, 0.0
        %v1120 = vcombine.high %v644, 0.0
        %v1122 = vunpack.c.l.s4 1983009808
        %v1123 = vunpack.c.0.s8 %v1122
        %v1124 = vlaneseq
        %v1125 = vshrl.u32 %v1124, 7
        %v1126 = vsub.s32 %v1123, %v1125
        %v1127 = vrot.slane %v644, %v1126
        %v1129 = vunpack.c.l.s4 1983009808
        %v1130 = vunpack.c.0.s8 %v1129
        %v1131 = vlaneseq
        %v1132 = vshrl.u32 %v1131, 7
        %v1133 = vsub.s32 %v1130, %v1132
        %v1134 = vrot.slane %v1120, %v1133
        %v1135 = vcombine.high %v646, 0.0
        %v1137 = vunpack.c.l.s4 1983009808
        %v1138 = vunpack.c.0.s8 %v1137
        %v1139 = vlaneseq
        %v1140 = vshrl.u32 %v1139, 7
        %v1141 = vsub.s32 %v1138, %v1140
        %v1142 = vrot.slane %v646, %v1141
        %v1144 = vunpack.c.l.s4 1983009808
        %v1145 = vunpack.c.0.s8 %v1144
        %v1146 = vlaneseq
        %v1147 = vshrl.u32 %v1146, 7
        %v1148 = vsub.s32 %v1145, %v1147
        %v1149 = vrot.slane %v1135, %v1148
        %v1150 = vcombine.low %v1127, %v1142
        %v1151 = vcombine.high %v1127, %v1142
        %v1153 = vunpack.c.l.s4 1934713408
        %v1154 = vunpack.c.0.s8 %v1153
        %v1155 = vlaneseq
        %v1156 = vshrl.u32 %v1155, 7
        %v1157 = vsub.s32 %v1154, %v1156
        %v1158 = vrot.slane %v1150, %v1157
        %v1160 = vunpack.c.l.s4 1934713408
        %v1161 = vunpack.c.0.s8 %v1160
        %v1162 = vlaneseq
        %v1163 = vshrl.u32 %v1162, 7
        %v1164 = vsub.s32 %v1161, %v1163
        %v1165 = vrot.slane %v1151, %v1164
        %v1166 = vcombine.low %v1134, %v1149
        %v1167 = vcombine.high %v1134, %v1149
        %v1169 = vunpack.c.l.s4 1934713408
        %v1170 = vunpack.c.0.s8 %v1169
        %v1171 = vlaneseq
        %v1172 = vshrl.u32 %v1171, 7
        %v1173 = vsub.s32 %v1170, %v1172
        %v1174 = vrot.slane %v1166, %v1173
        %v1176 = vunpack.c.l.s4 1934713408
        %v1177 = vunpack.c.0.s8 %v1176
        %v1178 = vlaneseq
        %v1179 = vshrl.u32 %v1178, 7
        %v1180 = vsub.s32 %v1177, %v1179
        %v1181 = vrot.slane %v1167, %v1180
        %v1182 = vcombine.high %v1158, 0.0
        %v1183 = vcombine.high %v1165, 0.0
        %v1184 = vcombine.high %v1174, 0.0
        %v1185 = vcombine.high %v1181, 0.0
        %v1186 = vcombine.high %v650, 0.0
        %v1188 = vunpack.c.l.s4 1983009808
        %v1189 = vunpack.c.0.s8 %v1188
        %v1190 = vlaneseq
        %v1191 = vshrl.u32 %v1190, 7
        %v1192 = vsub.s32 %v1189, %v1191
        %v1193 = vrot.slane %v650, %v1192
        %v1195 = vunpack.c.l.s4 1983009808
        %v1196 = vunpack.c.0.s8 %v1195
        %v1197 = vlaneseq
        %v1198 = vshrl.u32 %v1197, 7
        %v1199 = vsub.s32 %v1196, %v1198
        %v1200 = vrot.slane %v1186, %v1199
        %v1201 = vcombine.high %v652, 0.0
        %v1203 = vunpack.c.l.s4 1983009808
        %v1204 = vunpack.c.0.s8 %v1203
        %v1205 = vlaneseq
        %v1206 = vshrl.u32 %v1205, 7
        %v1207 = vsub.s32 %v1204, %v1206
        %v1208 = vrot.slane %v652, %v1207
        %v1210 = vunpack.c.l.s4 1983009808
        %v1211 = vunpack.c.0.s8 %v1210
        %v1212 = vlaneseq
        %v1213 = vshrl.u32 %v1212, 7
        %v1214 = vsub.s32 %v1211, %v1213
        %v1215 = vrot.slane %v1201, %v1214
        %v1216 = vcombine.low %v1193, %v1208
        %v1217 = vcombine.high %v1193, %v1208
        %v1219 = vunpack.c.l.s4 1934713408
        %v1220 = vunpack.c.0.s8 %v1219
        %v1221 = vlaneseq
        %v1222 = vshrl.u32 %v1221, 7
        %v1223 = vsub.s32 %v1220, %v1222
        %v1224 = vrot.slane %v1216, %v1223
        %v1226 = vunpack.c.l.s4 1934713408
        %v1227 = vunpack.c.0.s8 %v1226
        %v1228 = vlaneseq
        %v1229 = vshrl.u32 %v1228, 7
        %v1230 = vsub.s32 %v1227, %v1229
        %v1231 = vrot.slane %v1217, %v1230
        %v1232 = vcombine.low %v1200, %v1215
        %v1233 = vcombine.high %v1200, %v1215
        %v1235 = vunpack.c.l.s4 1934713408
        %v1236 = vunpack.c.0.s8 %v1235
        %v1237 = vlaneseq
        %v1238 = vshrl.u32 %v1237, 7
        %v1239 = vsub.s32 %v1236, %v1238
        %v1240 = vrot.slane %v1232, %v1239
        %v1242 = vunpack.c.l.s4 1934713408
        %v1243 = vunpack.c.0.s8 %v1242
        %v1244 = vlaneseq
        %v1245 = vshrl.u32 %v1244, 7
        %v1246 = vsub.s32 %v1243, %v1245
        %v1247 = vrot.slane %v1233, %v1246
        %v1248 = vcombine.high %v1224, 0.0
        %v1249 = vcombine.high %v1231, 0.0
        %v1250 = vcombine.high %v1240, 0.0
        %v1251 = vcombine.high %v1247, 0.0
        %v1252 = vcombine.high %v656, 0.0
        %v1254 = vunpack.c.l.s4 1983009808
        %v1255 = vunpack.c.0.s8 %v1254
        %v1256 = vlaneseq
        %v1257 = vshrl.u32 %v1256, 7
        %v1258 = vsub.s32 %v1255, %v1257
        %v1259 = vrot.slane %v656, %v1258
        %v1261 = vunpack.c.l.s4 1983009808
        %v1262 = vunpack.c.0.s8 %v1261
        %v1263 = vlaneseq
        %v1264 = vshrl.u32 %v1263, 7
        %v1265 = vsub.s32 %v1262, %v1264
        %v1266 = vrot.slane %v1252, %v1265
        %v1267 = vcombine.high %v658, 0.0
        %v1269 = vunpack.c.l.s4 1983009808
        %v1270 = vunpack.c.0.s8 %v1269
        %v1271 = vlaneseq
        %v1272 = vshrl.u32 %v1271, 7
        %v1273 = vsub.s32 %v1270, %v1272
        %v1274 = vrot.slane %v658, %v1273
        %v1276 = vunpack.c.l.s4 1983009808
        %v1277 = vunpack.c.0.s8 %v1276
        %v1278 = vlaneseq
        %v1279 = vshrl.u32 %v1278, 7
        %v1280 = vsub.s32 %v1277, %v1279
        %v1281 = vrot.slane %v1267, %v1280
        %v1282 = vcombine.low %v1259, %v1274
        %v1283 = vcombine.high %v1259, %v1274
        %v1285 = vunpack.c.l.s4 1934713408
        %v1286 = vunpack.c.0.s8 %v1285
        %v1287 = vlaneseq
        %v1288 = vshrl.u32 %v1287, 7
        %v1289 = vsub.s32 %v1286, %v1288
        %v1290 = vrot.slane %v1282, %v1289
        %v1292 = vunpack.c.l.s4 1934713408
        %v1293 = vunpack.c.0.s8 %v1292
        %v1294 = vlaneseq
        %v1295 = vshrl.u32 %v1294, 7
        %v1296 = vsub.s32 %v1293, %v1295
        %v1297 = vrot.slane %v1283, %v1296
        %v1298 = vcombine.low %v1266, %v1281
        %v1299 = vcombine.high %v1266, %v1281
        %v1301 = vunpack.c.l.s4 1934713408
        %v1302 = vunpack.c.0.s8 %v1301
        %v1303 = vlaneseq
        %v1304 = vshrl.u32 %v1303, 7
        %v1305 = vsub.s32 %v1302, %v1304
        %v1306 = vrot.slane %v1298, %v1305
        %v1308 = vunpack.c.l.s4 1934713408
        %v1309 = vunpack.c.0.s8 %v1308
        %v1310 = vlaneseq
        %v1311 = vshrl.u32 %v1310, 7
        %v1312 = vsub.s32 %v1309, %v1311
        %v1313 = vrot.slane %v1299, %v1312
        %v1314 = vcombine.high %v1290, 0.0
        %v1315 = vcombine.high %v1297, 0.0
        %v1316 = vcombine.high %v1306, 0.0
        %v1317 = vcombine.high %v1313, 0.0
        %v1318 = vcombine.high %v662, 0.0
        %v1320 = vunpack.c.l.s4 1983009808
        %v1321 = vunpack.c.0.s8 %v1320
        %v1322 = vlaneseq
        %v1323 = vshrl.u32 %v1322, 7
        %v1324 = vsub.s32 %v1321, %v1323
        %v1325 = vrot.slane %v662, %v1324
        %v1327 = vunpack.c.l.s4 1983009808
        %v1328 = vunpack.c.0.s8 %v1327
        %v1329 = vlaneseq
        %v1330 = vshrl.u32 %v1329, 7
        %v1331 = vsub.s32 %v1328, %v1330
        %v1332 = vrot.slane %v1318, %v1331
        %v1333 = vcombine.high %v664, 0.0
        %v1335 = vunpack.c.l.s4 1983009808
        %v1336 = vunpack.c.0.s8 %v1335
        %v1337 = vlaneseq
        %v1338 = vshrl.u32 %v1337, 7
        %v1339 = vsub.s32 %v1336, %v1338
        %v1340 = vrot.slane %v664, %v1339
        %v1342 = vunpack.c.l.s4 1983009808
        %v1343 = vunpack.c.0.s8 %v1342
        %v1344 = vlaneseq
        %v1345 = vshrl.u32 %v1344, 7
        %v1346 = vsub.s32 %v1343, %v1345
        %v1347 = vrot.slane %v1333, %v1346
        %v1348 = vcombine.low %v1325, %v1340
        %v1349 = vcombine.high %v1325, %v1340
        %v1351 = vunpack.c.l.s4 1934713408
        %v1352 = vunpack.c.0.s8 %v1351
        %v1353 = vlaneseq
        %v1354 = vshrl.u32 %v1353, 7
        %v1355 = vsub.s32 %v1352, %v1354
        %v1356 = vrot.slane %v1348, %v1355
        %v1358 = vunpack.c.l.s4 1934713408
        %v1359 = vunpack.c.0.s8 %v1358
        %v1360 = vlaneseq
        %v1361 = vshrl.u32 %v1360, 7
        %v1362 = vsub.s32 %v1359, %v1361
        %v1363 = vrot.slane %v1349, %v1362
        %v1364 = vcombine.low %v1332, %v1347
        %v1365 = vcombine.high %v1332, %v1347
        %v1367 = vunpack.c.l.s4 1934713408
        %v1368 = vunpack.c.0.s8 %v1367
        %v1369 = vlaneseq
        %v1370 = vshrl.u32 %v1369, 7
        %v1371 = vsub.s32 %v1368, %v1370
        %v1372 = vrot.slane %v1364, %v1371
        %v1374 = vunpack.c.l.s4 1934713408
        %v1375 = vunpack.c.0.s8 %v1374
        %v1376 = vlaneseq
        %v1377 = vshrl.u32 %v1376, 7
        %v1378 = vsub.s32 %v1375, %v1377
        %v1379 = vrot.slane %v1365, %v1378
        %v1380 = vcombine.high %v1356, 0.0
        %v1381 = vcombine.high %v1363, 0.0
        %v1382 = vcombine.high %v1372, 0.0
        %v1383 = vcombine.high %v1379, 0.0
        %v1384 = vcombine.high %v668, 0.0
        %v1386 = vunpack.c.l.s4 1983009808
        %v1387 = vunpack.c.0.s8 %v1386
        %v1388 = vlaneseq
        %v1389 = vshrl.u32 %v1388, 7
        %v1390 = vsub.s32 %v1387, %v1389
        %v1391 = vrot.slane %v668, %v1390
        %v1393 = vunpack.c.l.s4 1983009808
        %v1394 = vunpack.c.0.s8 %v1393
        %v1395 = vlaneseq
        %v1396 = vshrl.u32 %v1395, 7
        %v1397 = vsub.s32 %v1394, %v1396
        %v1398 = vrot.slane %v1384, %v1397
        %v1399 = vcombine.high %v670, 0.0
        %v1401 = vunpack.c.l.s4 1983009808
        %v1402 = vunpack.c.0.s8 %v1401
        %v1403 = vlaneseq
        %v1404 = vshrl.u32 %v1403, 7
        %v1405 = vsub.s32 %v1402, %v1404
        %v1406 = vrot.slane %v670, %v1405
        %v1408 = vunpack.c.l.s4 1983009808
        %v1409 = vunpack.c.0.s8 %v1408
        %v1410 = vlaneseq
        %v1411 = vshrl.u32 %v1410, 7
        %v1412 = vsub.s32 %v1409, %v1411
        %v1413 = vrot.slane %v1399, %v1412
        %v1414 = vcombine.low %v1391, %v1406
        %v1415 = vcombine.high %v1391, %v1406
        %v1417 = vunpack.c.l.s4 1934713408
        %v1418 = vunpack.c.0.s8 %v1417
        %v1419 = vlaneseq
        %v1420 = vshrl.u32 %v1419, 7
        %v1421 = vsub.s32 %v1418, %v1420
        %v1422 = vrot.slane %v1414, %v1421
        %v1424 = vunpack.c.l.s4 1934713408
        %v1425 = vunpack.c.0.s8 %v1424
        %v1426 = vlaneseq
        %v1427 = vshrl.u32 %v1426, 7
        %v1428 = vsub.s32 %v1425, %v1427
        %v1429 = vrot.slane %v1415, %v1428
        %v1430 = vcombine.low %v1398, %v1413
        %v1431 = vcombine.high %v1398, %v1413
        %v1433 = vunpack.c.l.s4 1934713408
        %v1434 = vunpack.c.0.s8 %v1433
        %v1435 = vlaneseq
        %v1436 = vshrl.u32 %v1435, 7
        %v1437 = vsub.s32 %v1434, %v1436
        %v1438 = vrot.slane %v1430, %v1437
        %v1440 = vunpack.c.l.s4 1934713408
        %v1441 = vunpack.c.0.s8 %v1440
        %v1442 = vlaneseq
        %v1443 = vshrl.u32 %v1442, 7
        %v1444 = vsub.s32 %v1441, %v1443
        %v1445 = vrot.slane %v1431, %v1444
        %v1446 = vcombine.high %v1422, 0.0
        %v1447 = vcombine.high %v1429, 0.0
        %v1448 = vcombine.high %v1438, 0.0
        %v1449 = vcombine.high %v1445, 0.0
        %v1450 = vcombine.high %v674, 0.0
        %v1452 = vunpack.c.l.s4 1983009808
        %v1453 = vunpack.c.0.s8 %v1452
        %v1454 = vlaneseq
        %v1455 = vshrl.u32 %v1454, 7
        %v1456 = vsub.s32 %v1453, %v1455
        %v1457 = vrot.slane %v674, %v1456
        %v1459 = vunpack.c.l.s4 1983009808
        %v1460 = vunpack.c.0.s8 %v1459
        %v1461 = vlaneseq
        %v1462 = vshrl.u32 %v1461, 7
        %v1463 = vsub.s32 %v1460, %v1462
        %v1464 = vrot.slane %v1450, %v1463
        %v1465 = vcombine.high %v676, 0.0
        %v1467 = vunpack.c.l.s4 1983009808
        %v1468 = vunpack.c.0.s8 %v1467
        %v1469 = vlaneseq
        %v1470 = vshrl.u32 %v1469, 7
        %v1471 = vsub.s32 %v1468, %v1470
        %v1472 = vrot.slane %v676, %v1471
        %v1474 = vunpack.c.l.s4 1983009808
        %v1475 = vunpack.c.0.s8 %v1474
        %v1476 = vlaneseq
        %v1477 = vshrl.u32 %v1476, 7
        %v1478 = vsub.s32 %v1475, %v1477
        %v1479 = vrot.slane %v1465, %v1478
        %v1480 = vcombine.low %v1457, %v1472
        %v1481 = vcombine.high %v1457, %v1472
        %v1483 = vunpack.c.l.s4 1934713408
        %v1484 = vunpack.c.0.s8 %v1483
        %v1485 = vlaneseq
        %v1486 = vshrl.u32 %v1485, 7
        %v1487 = vsub.s32 %v1484, %v1486
        %v1488 = vrot.slane %v1480, %v1487
        %v1490 = vunpack.c.l.s4 1934713408
        %v1491 = vunpack.c.0.s8 %v1490
        %v1492 = vlaneseq
        %v1493 = vshrl.u32 %v1492, 7
        %v1494 = vsub.s32 %v1491, %v1493
        %v1495 = vrot.slane %v1481, %v1494
        %v1496 = vcombine.low %v1464, %v1479
        %v1497 = vcombine.high %v1464, %v1479
        %v1499 = vunpack.c.l.s4 1934713408
        %v1500 = vunpack.c.0.s8 %v1499
        %v1501 = vlaneseq
        %v1502 = vshrl.u32 %v1501, 7
        %v1503 = vsub.s32 %v1500, %v1502
        %v1504 = vrot.slane %v1496, %v1503
        %v1506 = vunpack.c.l.s4 1934713408
        %v1507 = vunpack.c.0.s8 %v1506
        %v1508 = vlaneseq
        %v1509 = vshrl.u32 %v1508, 7
        %v1510 = vsub.s32 %v1507, %v1509
        %v1511 = vrot.slane %v1497, %v1510
        %v1512 = vcombine.high %v1488, 0.0
        %v1513 = vcombine.high %v1495, 0.0
        %v1514 = vcombine.high %v1504, 0.0
        %v1515 = vcombine.high %v1511, 0.0
        %v1516 = vcombine.high %v680, 0.0
        %v1518 = vunpack.c.l.s4 1983009808
        %v1519 = vunpack.c.0.s8 %v1518
        %v1520 = vlaneseq
        %v1521 = vshrl.u32 %v1520, 7
        %v1522 = vsub.s32 %v1519, %v1521
        %v1523 = vrot.slane %v680, %v1522
        %v1525 = vunpack.c.l.s4 1983009808
        %v1526 = vunpack.c.0.s8 %v1525
        %v1527 = vlaneseq
        %v1528 = vshrl.u32 %v1527, 7
        %v1529 = vsub.s32 %v1526, %v1528
        %v1530 = vrot.slane %v1516, %v1529
        %v1531 = vcombine.high %v682, 0.0
        %v1533 = vunpack.c.l.s4 1983009808
        %v1534 = vunpack.c.0.s8 %v1533
        %v1535 = vlaneseq
        %v1536 = vshrl.u32 %v1535, 7
        %v1537 = vsub.s32 %v1534, %v1536
        %v1538 = vrot.slane %v682, %v1537
        %v1540 = vunpack.c.l.s4 1983009808
        %v1541 = vunpack.c.0.s8 %v1540
        %v1542 = vlaneseq
        %v1543 = vshrl.u32 %v1542, 7
        %v1544 = vsub.s32 %v1541, %v1543
        %v1545 = vrot.slane %v1531, %v1544
        %v1546 = vcombine.low %v1523, %v1538
        %v1547 = vcombine.high %v1523, %v1538
        %v1549 = vunpack.c.l.s4 1934713408
        %v1550 = vunpack.c.0.s8 %v1549
        %v1551 = vlaneseq
        %v1552 = vshrl.u32 %v1551, 7
        %v1553 = vsub.s32 %v1550, %v1552
        %v1554 = vrot.slane %v1546, %v1553
        %v1556 = vunpack.c.l.s4 1934713408
        %v1557 = vunpack.c.0.s8 %v1556
        %v1558 = vlaneseq
        %v1559 = vshrl.u32 %v1558, 7
        %v1560 = vsub.s32 %v1557, %v1559
        %v1561 = vrot.slane %v1547, %v1560
        %v1562 = vcombine.low %v1530, %v1545
        %v1563 = vcombine.high %v1530, %v1545
        %v1565 = vunpack.c.l.s4 1934713408
        %v1566 = vunpack.c.0.s8 %v1565
        %v1567 = vlaneseq
        %v1568 = vshrl.u32 %v1567, 7
        %v1569 = vsub.s32 %v1566, %v1568
        %v1570 = vrot.slane %v1562, %v1569
        %v1572 = vunpack.c.l.s4 1934713408
        %v1573 = vunpack.c.0.s8 %v1572
        %v1574 = vlaneseq
        %v1575 = vshrl.u32 %v1574, 7
        %v1576 = vsub.s32 %v1573, %v1575
        %v1577 = vrot.slane %v1563, %v1576
        %v1578 = vcombine.high %v1554, 0.0
        %v1579 = vcombine.high %v1561, 0.0
        %v1580 = vcombine.high %v1570, 0.0
        %v1581 = vcombine.high %v1577, 0.0
        %v1582 = vcombine.high %v686, 0.0
        %v1584 = vunpack.c.l.s4 1983009808
        %v1585 = vunpack.c.0.s8 %v1584
        %v1586 = vlaneseq
        %v1587 = vshrl.u32 %v1586, 7
        %v1588 = vsub.s32 %v1585, %v1587
        %v1589 = vrot.slane %v686, %v1588
        %v1591 = vunpack.c.l.s4 1983009808
        %v1592 = vunpack.c.0.s8 %v1591
        %v1593 = vlaneseq
        %v1594 = vshrl.u32 %v1593, 7
        %v1595 = vsub.s32 %v1592, %v1594
        %v1596 = vrot.slane %v1582, %v1595
        %v1597 = vcombine.high %v688, 0.0
        %v1599 = vunpack.c.l.s4 1983009808
        %v1600 = vunpack.c.0.s8 %v1599
        %v1601 = vlaneseq
        %v1602 = vshrl.u32 %v1601, 7
        %v1603 = vsub.s32 %v1600, %v1602
        %v1604 = vrot.slane %v688, %v1603
        %v1606 = vunpack.c.l.s4 1983009808
        %v1607 = vunpack.c.0.s8 %v1606
        %v1608 = vlaneseq
        %v1609 = vshrl.u32 %v1608, 7
        %v1610 = vsub.s32 %v1607, %v1609
        %v1611 = vrot.slane %v1597, %v1610
        %v1612 = vcombine.low %v1589, %v1604
        %v1613 = vcombine.high %v1589, %v1604
        %v1615 = vunpack.c.l.s4 1934713408
        %v1616 = vunpack.c.0.s8 %v1615
        %v1617 = vlaneseq
        %v1618 = vshrl.u32 %v1617, 7
        %v1619 = vsub.s32 %v1616, %v1618
        %v1620 = vrot.slane %v1612, %v1619
        %v1622 = vunpack.c.l.s4 1934713408
        %v1623 = vunpack.c.0.s8 %v1622
        %v1624 = vlaneseq
        %v1625 = vshrl.u32 %v1624, 7
        %v1626 = vsub.s32 %v1623, %v1625
        %v1627 = vrot.slane %v1613, %v1626
        %v1628 = vcombine.low %v1596, %v1611
        %v1629 = vcombine.high %v1596, %v1611
        %v1631 = vunpack.c.l.s4 1934713408
        %v1632 = vunpack.c.0.s8 %v1631
        %v1633 = vlaneseq
        %v1634 = vshrl.u32 %v1633, 7
        %v1635 = vsub.s32 %v1632, %v1634
        %v1636 = vrot.slane %v1628, %v1635
        %v1638 = vunpack.c.l.s4 1934713408
        %v1639 = vunpack.c.0.s8 %v1638
        %v1640 = vlaneseq
        %v1641 = vshrl.u32 %v1640, 7
        %v1642 = vsub.s32 %v1639, %v1641
        %v1643 = vrot.slane %v1629, %v1642
        %v1644 = vcombine.high %v1620, 0.0
        %v1645 = vcombine.high %v1627, 0.0
        %v1646 = vcombine.high %v1636, 0.0
        %v1647 = vcombine.high %v1643, 0.0
        %v1648 = vcombine.high %v692, 0.0
        %v1650 = vunpack.c.l.s4 1983009808
        %v1651 = vunpack.c.0.s8 %v1650
        %v1652 = vlaneseq
        %v1653 = vshrl.u32 %v1652, 7
        %v1654 = vsub.s32 %v1651, %v1653
        %v1655 = vrot.slane %v692, %v1654
        %v1657 = vunpack.c.l.s4 1983009808
        %v1658 = vunpack.c.0.s8 %v1657
        %v1659 = vlaneseq
        %v1660 = vshrl.u32 %v1659, 7
        %v1661 = vsub.s32 %v1658, %v1660
        %v1662 = vrot.slane %v1648, %v1661
        %v1663 = vcombine.high %v694, 0.0
        %v1665 = vunpack.c.l.s4 1983009808
        %v1666 = vunpack.c.0.s8 %v1665
        %v1667 = vlaneseq
        %v1668 = vshrl.u32 %v1667, 7
        %v1669 = vsub.s32 %v1666, %v1668
        %v1670 = vrot.slane %v694, %v1669
        %v1672 = vunpack.c.l.s4 1983009808
        %v1673 = vunpack.c.0.s8 %v1672
        %v1674 = vlaneseq
        %v1675 = vshrl.u32 %v1674, 7
        %v1676 = vsub.s32 %v1673, %v1675
        %v1677 = vrot.slane %v1663, %v1676
        %v1678 = vcombine.low %v1655, %v1670
        %v1679 = vcombine.high %v1655, %v1670
        %v1681 = vunpack.c.l.s4 1934713408
        %v1682 = vunpack.c.0.s8 %v1681
        %v1683 = vlaneseq
        %v1684 = vshrl.u32 %v1683, 7
        %v1685 = vsub.s32 %v1682, %v1684
        %v1686 = vrot.slane %v1678, %v1685
        %v1688 = vunpack.c.l.s4 1934713408
        %v1689 = vunpack.c.0.s8 %v1688
        %v1690 = vlaneseq
        %v1691 = vshrl.u32 %v1690, 7
        %v1692 = vsub.s32 %v1689, %v1691
        %v1693 = vrot.slane %v1679, %v1692
        %v1694 = vcombine.low %v1662, %v1677
        %v1695 = vcombine.high %v1662, %v1677
        %v1697 = vunpack.c.l.s4 1934713408
        %v1698 = vunpack.c.0.s8 %v1697
        %v1699 = vlaneseq
        %v1700 = vshrl.u32 %v1699, 7
        %v1701 = vsub.s32 %v1698, %v1700
        %v1702 = vrot.slane %v1694, %v1701
        %v1704 = vunpack.c.l.s4 1934713408
        %v1705 = vunpack.c.0.s8 %v1704
        %v1706 = vlaneseq
        %v1707 = vshrl.u32 %v1706, 7
        %v1708 = vsub.s32 %v1705, %v1707
        %v1709 = vrot.slane %v1695, %v1708
        %v1710 = vcombine.high %v1686, 0.0
        %v1711 = vcombine.high %v1693, 0.0
        %v1712 = vcombine.high %v1702, 0.0
        %v1713 = vcombine.high %v1709, 0.0
        %v1714 = vcombine.high %v698, 0.0
        %v1716 = vunpack.c.l.s4 1983009808
        %v1717 = vunpack.c.0.s8 %v1716
        %v1718 = vlaneseq
        %v1719 = vshrl.u32 %v1718, 7
        %v1720 = vsub.s32 %v1717, %v1719
        %v1721 = vrot.slane %v698, %v1720
        %v1723 = vunpack.c.l.s4 1983009808
        %v1724 = vunpack.c.0.s8 %v1723
        %v1725 = vlaneseq
        %v1726 = vshrl.u32 %v1725, 7
        %v1727 = vsub.s32 %v1724, %v1726
        %v1728 = vrot.slane %v1714, %v1727
        %v1729 = vcombine.high %v700, 0.0
        %v1731 = vunpack.c.l.s4 1983009808
        %v1732 = vunpack.c.0.s8 %v1731
        %v1733 = vlaneseq
        %v1734 = vshrl.u32 %v1733, 7
        %v1735 = vsub.s32 %v1732, %v1734
        %v1736 = vrot.slane %v700, %v1735
        %v1738 = vunpack.c.l.s4 1983009808
        %v1739 = vunpack.c.0.s8 %v1738
        %v1740 = vlaneseq
        %v1741 = vshrl.u32 %v1740, 7
        %v1742 = vsub.s32 %v1739, %v1741
        %v1743 = vrot.slane %v1729, %v1742
        %v1744 = vcombine.low %v1721, %v1736
        %v1745 = vcombine.high %v1721, %v1736
        %v1747 = vunpack.c.l.s4 1934713408
        %v1748 = vunpack.c.0.s8 %v1747
        %v1749 = vlaneseq
        %v1750 = vshrl.u32 %v1749, 7
        %v1751 = vsub.s32 %v1748, %v1750
        %v1752 = vrot.slane %v1744, %v1751
        %v1754 = vunpack.c.l.s4 1934713408
        %v1755 = vunpack.c.0.s8 %v1754
        %v1756 = vlaneseq
        %v1757 = vshrl.u32 %v1756, 7
        %v1758 = vsub.s32 %v1755, %v1757
        %v1759 = vrot.slane %v1745, %v1758
        %v1760 = vcombine.low %v1728, %v1743
        %v1761 = vcombine.high %v1728, %v1743
        %v1763 = vunpack.c.l.s4 1934713408
        %v1764 = vunpack.c.0.s8 %v1763
        %v1765 = vlaneseq
        %v1766 = vshrl.u32 %v1765, 7
        %v1767 = vsub.s32 %v1764, %v1766
        %v1768 = vrot.slane %v1760, %v1767
        %v1770 = vunpack.c.l.s4 1934713408
        %v1771 = vunpack.c.0.s8 %v1770
        %v1772 = vlaneseq
        %v1773 = vshrl.u32 %v1772, 7
        %v1774 = vsub.s32 %v1771, %v1773
        %v1775 = vrot.slane %v1761, %v1774
        %v1776 = vcombine.high %v1752, 0.0
        %v1777 = vcombine.high %v1759, 0.0
        %v1778 = vcombine.high %v1768, 0.0
        %v1779 = vcombine.high %v1775, 0.0
        %v1780 = vcombine.high %v704, 0.0
        %v1782 = vunpack.c.l.s4 1983009808
        %v1783 = vunpack.c.0.s8 %v1782
        %v1784 = vlaneseq
        %v1785 = vshrl.u32 %v1784, 7
        %v1786 = vsub.s32 %v1783, %v1785
        %v1787 = vrot.slane %v704, %v1786
        %v1789 = vunpack.c.l.s4 1983009808
        %v1790 = vunpack.c.0.s8 %v1789
        %v1791 = vlaneseq
        %v1792 = vshrl.u32 %v1791, 7
        %v1793 = vsub.s32 %v1790, %v1792
        %v1794 = vrot.slane %v1780, %v1793
        %v1795 = vcombine.high %v706, 0.0
        %v1797 = vunpack.c.l.s4 1983009808
        %v1798 = vunpack.c.0.s8 %v1797
        %v1799 = vlaneseq
        %v1800 = vshrl.u32 %v1799, 7
        %v1801 = vsub.s32 %v1798, %v1800
        %v1802 = vrot.slane %v706, %v1801
        %v1804 = vunpack.c.l.s4 1983009808
        %v1805 = vunpack.c.0.s8 %v1804
        %v1806 = vlaneseq
        %v1807 = vshrl.u32 %v1806, 7
        %v1808 = vsub.s32 %v1805, %v1807
        %v1809 = vrot.slane %v1795, %v1808
        %v1810 = vcombine.low %v1787, %v1802
        %v1811 = vcombine.high %v1787, %v1802
        %v1813 = vunpack.c.l.s4 1934713408
        %v1814 = vunpack.c.0.s8 %v1813
        %v1815 = vlaneseq
        %v1816 = vshrl.u32 %v1815, 7
        %v1817 = vsub.s32 %v1814, %v1816
        %v1818 = vrot.slane %v1810, %v1817
        %v1820 = vunpack.c.l.s4 1934713408
        %v1821 = vunpack.c.0.s8 %v1820
        %v1822 = vlaneseq
        %v1823 = vshrl.u32 %v1822, 7
        %v1824 = vsub.s32 %v1821, %v1823
        %v1825 = vrot.slane %v1811, %v1824
        %v1826 = vcombine.low %v1794, %v1809
        %v1827 = vcombine.high %v1794, %v1809
        %v1829 = vunpack.c.l.s4 1934713408
        %v1830 = vunpack.c.0.s8 %v1829
        %v1831 = vlaneseq
        %v1832 = vshrl.u32 %v1831, 7
        %v1833 = vsub.s32 %v1830, %v1832
        %v1834 = vrot.slane %v1826, %v1833
        %v1836 = vunpack.c.l.s4 1934713408
        %v1837 = vunpack.c.0.s8 %v1836
        %v1838 = vlaneseq
        %v1839 = vshrl.u32 %v1838, 7
        %v1840 = vsub.s32 %v1837, %v1839
        %v1841 = vrot.slane %v1827, %v1840
        %v1842 = vcombine.high %v1818, 0.0
        %v1843 = vcombine.high %v1825, 0.0
        %v1844 = vcombine.high %v1834, 0.0
        %v1845 = vcombine.high %v1841, 0.0
        %v1846 = vcombine.high %v710, 0.0
        %v1848 = vunpack.c.l.s4 1983009808
        %v1849 = vunpack.c.0.s8 %v1848
        %v1850 = vlaneseq
        %v1851 = vshrl.u32 %v1850, 7
        %v1852 = vsub.s32 %v1849, %v1851
        %v1853 = vrot.slane %v710, %v1852
        %v1855 = vunpack.c.l.s4 1983009808
        %v1856 = vunpack.c.0.s8 %v1855
        %v1857 = vlaneseq
        %v1858 = vshrl.u32 %v1857, 7
        %v1859 = vsub.s32 %v1856, %v1858
        %v1860 = vrot.slane %v1846, %v1859
        %v1861 = vcombine.high %v712, 0.0
        %v1863 = vunpack.c.l.s4 1983009808
        %v1864 = vunpack.c.0.s8 %v1863
        %v1865 = vlaneseq
        %v1866 = vshrl.u32 %v1865, 7
        %v1867 = vsub.s32 %v1864, %v1866
        %v1868 = vrot.slane %v712, %v1867
        %v1870 = vunpack.c.l.s4 1983009808
        %v1871 = vunpack.c.0.s8 %v1870
        %v1872 = vlaneseq
        %v1873 = vshrl.u32 %v1872, 7
        %v1874 = vsub.s32 %v1871, %v1873
        %v1875 = vrot.slane %v1861, %v1874
        %v1876 = vcombine.low %v1853, %v1868
        %v1877 = vcombine.high %v1853, %v1868
        %v1879 = vunpack.c.l.s4 1934713408
        %v1880 = vunpack.c.0.s8 %v1879
        %v1881 = vlaneseq
        %v1882 = vshrl.u32 %v1881, 7
        %v1883 = vsub.s32 %v1880, %v1882
        %v1884 = vrot.slane %v1876, %v1883
        %v1886 = vunpack.c.l.s4 1934713408
        %v1887 = vunpack.c.0.s8 %v1886
        %v1888 = vlaneseq
        %v1889 = vshrl.u32 %v1888, 7
        %v1890 = vsub.s32 %v1887, %v1889
        %v1891 = vrot.slane %v1877, %v1890
        %v1892 = vcombine.low %v1860, %v1875
        %v1893 = vcombine.high %v1860, %v1875
        %v1895 = vunpack.c.l.s4 1934713408
        %v1896 = vunpack.c.0.s8 %v1895
        %v1897 = vlaneseq
        %v1898 = vshrl.u32 %v1897, 7
        %v1899 = vsub.s32 %v1896, %v1898
        %v1900 = vrot.slane %v1892, %v1899
        %v1902 = vunpack.c.l.s4 1934713408
        %v1903 = vunpack.c.0.s8 %v1902
        %v1904 = vlaneseq
        %v1905 = vshrl.u32 %v1904, 7
        %v1906 = vsub.s32 %v1903, %v1905
        %v1907 = vrot.slane %v1893, %v1906
        %v1908 = vcombine.high %v1884, 0.0
        %v1909 = vcombine.high %v1891, 0.0
        %v1910 = vcombine.high %v1900, 0.0
        %v1911 = vcombine.high %v1907, 0.0
        %v1912 = vcombine.high %v716, 0.0
        %v1914 = vunpack.c.l.s4 1983009808
        %v1915 = vunpack.c.0.s8 %v1914
        %v1916 = vlaneseq
        %v1917 = vshrl.u32 %v1916, 7
        %v1918 = vsub.s32 %v1915, %v1917
        %v1919 = vrot.slane %v716, %v1918
        %v1921 = vunpack.c.l.s4 1983009808
        %v1922 = vunpack.c.0.s8 %v1921
        %v1923 = vlaneseq
        %v1924 = vshrl.u32 %v1923, 7
        %v1925 = vsub.s32 %v1922, %v1924
        %v1926 = vrot.slane %v1912, %v1925
        %v1927 = vcombine.high %v718, 0.0
        %v1929 = vunpack.c.l.s4 1983009808
        %v1930 = vunpack.c.0.s8 %v1929
        %v1931 = vlaneseq
        %v1932 = vshrl.u32 %v1931, 7
        %v1933 = vsub.s32 %v1930, %v1932
        %v1934 = vrot.slane %v718, %v1933
        %v1936 = vunpack.c.l.s4 1983009808
        %v1937 = vunpack.c.0.s8 %v1936
        %v1938 = vlaneseq
        %v1939 = vshrl.u32 %v1938, 7
        %v1940 = vsub.s32 %v1937, %v1939
        %v1941 = vrot.slane %v1927, %v1940
        %v1942 = vcombine.low %v1919, %v1934
        %v1943 = vcombine.high %v1919, %v1934
        %v1945 = vunpack.c.l.s4 1934713408
        %v1946 = vunpack.c.0.s8 %v1945
        %v1947 = vlaneseq
        %v1948 = vshrl.u32 %v1947, 7
        %v1949 = vsub.s32 %v1946, %v1948
        %v1950 = vrot.slane %v1942, %v1949
        %v1952 = vunpack.c.l.s4 1934713408
        %v1953 = vunpack.c.0.s8 %v1952
        %v1954 = vlaneseq
        %v1955 = vshrl.u32 %v1954, 7
        %v1956 = vsub.s32 %v1953, %v1955
        %v1957 = vrot.slane %v1943, %v1956
        %v1958 = vcombine.low %v1926, %v1941
        %v1959 = vcombine.high %v1926, %v1941
        %v1961 = vunpack.c.l.s4 1934713408
        %v1962 = vunpack.c.0.s8 %v1961
        %v1963 = vlaneseq
        %v1964 = vshrl.u32 %v1963, 7
        %v1965 = vsub.s32 %v1962, %v1964
        %v1966 = vrot.slane %v1958, %v1965
        %v1968 = vunpack.c.l.s4 1934713408
        %v1969 = vunpack.c.0.s8 %v1968
        %v1970 = vlaneseq
        %v1971 = vshrl.u32 %v1970, 7
        %v1972 = vsub.s32 %v1969, %v1971
        %v1973 = vrot.slane %v1959, %v1972
        %v1974 = vcombine.high %v1950, 0.0
        %v1975 = vcombine.high %v1957, 0.0
        %v1976 = vcombine.high %v1966, 0.0
        %v1977 = vcombine.high %v1973, 0.0
        %v1978 = vcombine.high %v722, 0.0
        %v1980 = vunpack.c.l.s4 1983009808
        %v1981 = vunpack.c.0.s8 %v1980
        %v1982 = vlaneseq
        %v1983 = vshrl.u32 %v1982, 7
        %v1984 = vsub.s32 %v1981, %v1983
        %v1985 = vrot.slane %v722, %v1984
        %v1987 = vunpack.c.l.s4 1983009808
        %v1988 = vunpack.c.0.s8 %v1987
        %v1989 = vlaneseq
        %v1990 = vshrl.u32 %v1989, 7
        %v1991 = vsub.s32 %v1988, %v1990
        %v1992 = vrot.slane %v1978, %v1991
        %v1993 = vcombine.high %v724, 0.0
        %v1995 = vunpack.c.l.s4 1983009808
        %v1996 = vunpack.c.0.s8 %v1995
        %v1997 = vlaneseq
        %v1998 = vshrl.u32 %v1997, 7
        %v1999 = vsub.s32 %v1996, %v1998
        %v2000 = vrot.slane %v724, %v1999
        %v2002 = vunpack.c.l.s4 1983009808
        %v2003 = vunpack.c.0.s8 %v2002
        %v2004 = vlaneseq
        %v2005 = vshrl.u32 %v2004, 7
        %v2006 = vsub.s32 %v2003, %v2005
        %v2007 = vrot.slane %v1993, %v2006
        %v2008 = vcombine.low %v1985, %v2000
        %v2009 = vcombine.high %v1985, %v2000
        %v2011 = vunpack.c.l.s4 1934713408
        %v2012 = vunpack.c.0.s8 %v2011
        %v2013 = vlaneseq
        %v2014 = vshrl.u32 %v2013, 7
        %v2015 = vsub.s32 %v2012, %v2014
        %v2016 = vrot.slane %v2008, %v2015
        %v2018 = vunpack.c.l.s4 1934713408
        %v2019 = vunpack.c.0.s8 %v2018
        %v2020 = vlaneseq
        %v2021 = vshrl.u32 %v2020, 7
        %v2022 = vsub.s32 %v2019, %v2021
        %v2023 = vrot.slane %v2009, %v2022
        %v2024 = vcombine.low %v1992, %v2007
        %v2025 = vcombine.high %v1992, %v2007
        %v2027 = vunpack.c.l.s4 1934713408
        %v2028 = vunpack.c.0.s8 %v2027
        %v2029 = vlaneseq
        %v2030 = vshrl.u32 %v2029, 7
        %v2031 = vsub.s32 %v2028, %v2030
        %v2032 = vrot.slane %v2024, %v2031
        %v2034 = vunpack.c.l.s4 1934713408
        %v2035 = vunpack.c.0.s8 %v2034
        %v2036 = vlaneseq
        %v2037 = vshrl.u32 %v2036, 7
        %v2038 = vsub.s32 %v2035, %v2037
        %v2039 = vrot.slane %v2025, %v2038
        %v2040 = vcombine.high %v2016, 0.0
        %v2041 = vcombine.high %v2023, 0.0
        %v2042 = vcombine.high %v2032, 0.0
        %v2043 = vcombine.high %v2039, 0.0
        %v2044 = vcombine.high %v728, 0.0
        %v2046 = vunpack.c.l.s4 1983009808
        %v2047 = vunpack.c.0.s8 %v2046
        %v2048 = vlaneseq
        %v2049 = vshrl.u32 %v2048, 7
        %v2050 = vsub.s32 %v2047, %v2049
        %v2051 = vrot.slane %v728, %v2050
        %v2053 = vunpack.c.l.s4 1983009808
        %v2054 = vunpack.c.0.s8 %v2053
        %v2055 = vlaneseq
        %v2056 = vshrl.u32 %v2055, 7
        %v2057 = vsub.s32 %v2054, %v2056
        %v2058 = vrot.slane %v2044, %v2057
        %v2059 = vcombine.high %v730, 0.0
        %v2061 = vunpack.c.l.s4 1983009808
        %v2062 = vunpack.c.0.s8 %v2061
        %v2063 = vlaneseq
        %v2064 = vshrl.u32 %v2063, 7
        %v2065 = vsub.s32 %v2062, %v2064
        %v2066 = vrot.slane %v730, %v2065
        %v2068 = vunpack.c.l.s4 1983009808
        %v2069 = vunpack.c.0.s8 %v2068
        %v2070 = vlaneseq
        %v2071 = vshrl.u32 %v2070, 7
        %v2072 = vsub.s32 %v2069, %v2071
        %v2073 = vrot.slane %v2059, %v2072
        %v2074 = vcombine.low %v2051, %v2066
        %v2075 = vcombine.high %v2051, %v2066
        %v2077 = vunpack.c.l.s4 1934713408
        %v2078 = vunpack.c.0.s8 %v2077
        %v2079 = vlaneseq
        %v2080 = vshrl.u32 %v2079, 7
        %v2081 = vsub.s32 %v2078, %v2080
        %v2082 = vrot.slane %v2074, %v2081
        %v2084 = vunpack.c.l.s4 1934713408
        %v2085 = vunpack.c.0.s8 %v2084
        %v2086 = vlaneseq
        %v2087 = vshrl.u32 %v2086, 7
        %v2088 = vsub.s32 %v2085, %v2087
        %v2089 = vrot.slane %v2075, %v2088
        %v2090 = vcombine.low %v2058, %v2073
        %v2091 = vcombine.high %v2058, %v2073
        %v2093 = vunpack.c.l.s4 1934713408
        %v2094 = vunpack.c.0.s8 %v2093
        %v2095 = vlaneseq
        %v2096 = vshrl.u32 %v2095, 7
        %v2097 = vsub.s32 %v2094, %v2096
        %v2098 = vrot.slane %v2090, %v2097
        %v2100 = vunpack.c.l.s4 1934713408
        %v2101 = vunpack.c.0.s8 %v2100
        %v2102 = vlaneseq
        %v2103 = vshrl.u32 %v2102, 7
        %v2104 = vsub.s32 %v2101, %v2103
        %v2105 = vrot.slane %v2091, %v2104
        %v2106 = vcombine.high %v2082, 0.0
        %v2107 = vcombine.high %v2089, 0.0
        %v2108 = vcombine.high %v2098, 0.0
        %v2109 = vcombine.high %v2105, 0.0
        %v2110 = vcombine.low %v1092, %v1099
        %v2112 = vunpack.c.l.s4 1983009808
        %v2113 = vunpack.c.0.s8 %v2112
        %v2114 = vlaneseq
        %v2115 = vshrl.u32 %v2114, 7
        %v2116 = vsub.s32 %v2113, %v2115
        %v2117 = vrot.slane %v2110, %v2116
        %v2118 = vcombine.low %v1116, %v1117
        %v2120 = vunpack.c.l.s4 1983009808
        %v2121 = vunpack.c.0.s8 %v2120
        %v2122 = vlaneseq
        %v2123 = vshrl.u32 %v2122, 7
        %v2124 = vsub.s32 %v2121, %v2123
        %v2125 = vrot.slane %v2118, %v2124
        %v2126 = vcombine.low %v1108, %v1115
        %v2128 = vunpack.c.l.s4 1983009808
        %v2129 = vunpack.c.0.s8 %v2128
        %v2130 = vlaneseq
        %v2131 = vshrl.u32 %v2130, 7
        %v2132 = vsub.s32 %v2129, %v2131
        %v2133 = vrot.slane %v2126, %v2132
        %v2134 = vcombine.low %v1118, %v1119
        %v2136 = vunpack.c.l.s4 1983009808
        %v2137 = vunpack.c.0.s8 %v2136
        %v2138 = vlaneseq
        %v2139 = vshrl.u32 %v2138, 7
        %v2140 = vsub.s32 %v2137, %v2139
        %v2141 = vrot.slane %v2134, %v2140
        %v2142 = vcombine.low %v2117, %v2125
        %v2144 = vunpack.c.l.s4 1934713408
        %v2145 = vunpack.c.0.s8 %v2144
        %v2146 = vlaneseq
        %v2147 = vshrl.u32 %v2146, 7
        %v2148 = vsub.s32 %v2145, %v2147
        %v2149 = vrot.slane %v2142, %v2148
        %v2150 = vcombine.low %v2133, %v2141
        %v2152 = vunpack.c.l.s4 1934713408
        %v2153 = vunpack.c.0.s8 %v2152
        %v2154 = vlaneseq
        %v2155 = vshrl.u32 %v2154, 7
        %v2156 = vsub.s32 %v2153, %v2155
        %v2157 = vrot.slane %v2150, %v2156
        %v2158 = vcombine.low %v2149, %v2157
        %v2159 = vcombine.high %v2149, %v2157
        %v2160 = vcombine.low %v1158, %v1165
        %v2162 = vunpack.c.l.s4 1983009808
        %v2163 = vunpack.c.0.s8 %v2162
        %v2164 = vlaneseq
        %v2165 = vshrl.u32 %v2164, 7
        %v2166 = vsub.s32 %v2163, %v2165
        %v2167 = vrot.slane %v2160, %v2166
        %v2168 = vcombine.low %v1182, %v1183
        %v2170 = vunpack.c.l.s4 1983009808
        %v2171 = vunpack.c.0.s8 %v2170
        %v2172 = vlaneseq
        %v2173 = vshrl.u32 %v2172, 7
        %v2174 = vsub.s32 %v2171, %v2173
        %v2175 = vrot.slane %v2168, %v2174
        %v2176 = vcombine.low %v1174, %v1181
        %v2178 = vunpack.c.l.s4 1983009808
        %v2179 = vunpack.c.0.s8 %v2178
        %v2180 = vlaneseq
        %v2181 = vshrl.u32 %v2180, 7
        %v2182 = vsub.s32 %v2179, %v2181
        %v2183 = vrot.slane %v2176, %v2182
        %v2184 = vcombine.low %v1184, %v1185
        %v2186 = vunpack.c.l.s4 1983009808
        %v2187 = vunpack.c.0.s8 %v2186
        %v2188 = vlaneseq
        %v2189 = vshrl.u32 %v2188, 7
        %v2190 = vsub.s32 %v2187, %v2189
        %v2191 = vrot.slane %v2184, %v2190
        %v2192 = vcombine.low %v2167, %v2175
        %v2194 = vunpack.c.l.s4 1934713408
        %v2195 = vunpack.c.0.s8 %v2194
        %v2196 = vlaneseq
        %v2197 = vshrl.u32 %v2196, 7
        %v2198 = vsub.s32 %v2195, %v2197
        %v2199 = vrot.slane %v2192, %v2198
        %v2200 = vcombine.low %v2183, %v2191
        %v2202 = vunpack.c.l.s4 1934713408
        %v2203 = vunpack.c.0.s8 %v2202
        %v2204 = vlaneseq
        %v2205 = vshrl.u32 %v2204, 7
        %v2206 = vsub.s32 %v2203, %v2205
        %v2207 = vrot.slane %v2200, %v2206
        %v2208 = vcombine.low %v2199, %v2207
        %v2209 = vcombine.high %v2199, %v2207
        %v2210 = vcombine.low %v1224, %v1231
        %v2212 = vunpack.c.l.s4 1983009808
        %v2213 = vunpack.c.0.s8 %v2212
        %v2214 = vlaneseq
        %v2215 = vshrl.u32 %v2214, 7
        %v2216 = vsub.s32 %v2213, %v2215
        %v2217 = vrot.slane %v2210, %v2216
        %v2218 = vcombine.low %v1248, %v1249
        %v2220 = vunpack.c.l.s4 1983009808
        %v2221 = vunpack.c.0.s8 %v2220
        %v2222 = vlaneseq
        %v2223 = vshrl.u32 %v2222, 7
        %v2224 = vsub.s32 %v2221, %v2223
        %v2225 = vrot.slane %v2218, %v2224
        %v2226 = vcombine.low %v1240, %v1247
        %v2228 = vunpack.c.l.s4 1983009808
        %v2229 = vunpack.c.0.s8 %v2228
        %v2230 = vlaneseq
        %v2231 = vshrl.u32 %v2230, 7
        %v2232 = vsub.s32 %v2229, %v2231
        %v2233 = vrot.slane %v2226, %v2232
        %v2234 = vcombine.low %v1250, %v1251
        %v2236 = vunpack.c.l.s4 1983009808
        %v2237 = vunpack.c.0.s8 %v2236
        %v2238 = vlaneseq
        %v2239 = vshrl.u32 %v2238, 7
        %v2240 = vsub.s32 %v2237, %v2239
        %v2241 = vrot.slane %v2234, %v2240
        %v2242 = vcombine.low %v2217, %v2225
        %v2244 = vunpack.c.l.s4 1934713408
        %v2245 = vunpack.c.0.s8 %v2244
        %v2246 = vlaneseq
        %v2247 = vshrl.u32 %v2246, 7
        %v2248 = vsub.s32 %v2245, %v2247
        %v2249 = vrot.slane %v2242, %v2248
        %v2250 = vcombine.low %v2233, %v2241
        %v2252 = vunpack.c.l.s4 1934713408
        %v2253 = vunpack.c.0.s8 %v2252
        %v2254 = vlaneseq
        %v2255 = vshrl.u32 %v2254, 7
        %v2256 = vsub.s32 %v2253, %v2255
        %v2257 = vrot.slane %v2250, %v2256
        %v2258 = vcombine.low %v2249, %v2257
        %v2259 = vcombine.high %v2249, %v2257
        %v2260 = vcombine.low %v1290, %v1297
        %v2262 = vunpack.c.l.s4 1983009808
        %v2263 = vunpack.c.0.s8 %v2262
        %v2264 = vlaneseq
        %v2265 = vshrl.u32 %v2264, 7
        %v2266 = vsub.s32 %v2263, %v2265
        %v2267 = vrot.slane %v2260, %v2266
        %v2268 = vcombine.low %v1314, %v1315
        %v2270 = vunpack.c.l.s4 1983009808
        %v2271 = vunpack.c.0.s8 %v2270
        %v2272 = vlaneseq
        %v2273 = vshrl.u32 %v2272, 7
        %v2274 = vsub.s32 %v2271, %v2273
        %v2275 = vrot.slane %v2268, %v2274
        %v2276 = vcombine.low %v1306, %v1313
        %v2278 = vunpack.c.l.s4 1983009808
        %v2279 = vunpack.c.0.s8 %v2278
        %v2280 = vlaneseq
        %v2281 = vshrl.u32 %v2280, 7
        %v2282 = vsub.s32 %v2279, %v2281
        %v2283 = vrot.slane %v2276, %v2282
        %v2284 = vcombine.low %v1316, %v1317
        %v2286 = vunpack.c.l.s4 1983009808
        %v2287 = vunpack.c.0.s8 %v2286
        %v2288 = vlaneseq
        %v2289 = vshrl.u32 %v2288, 7
        %v2290 = vsub.s32 %v2287, %v2289
        %v2291 = vrot.slane %v2284, %v2290
        %v2292 = vcombine.low %v2267, %v2275
        %v2294 = vunpack.c.l.s4 1934713408
        %v2295 = vunpack.c.0.s8 %v2294
        %v2296 = vlaneseq
        %v2297 = vshrl.u32 %v2296, 7
        %v2298 = vsub.s32 %v2295, %v2297
        %v2299 = vrot.slane %v2292, %v2298
        %v2300 = vcombine.low %v2283, %v2291
        %v2302 = vunpack.c.l.s4 1934713408
        %v2303 = vunpack.c.0.s8 %v2302
        %v2304 = vlaneseq
        %v2305 = vshrl.u32 %v2304, 7
        %v2306 = vsub.s32 %v2303, %v2305
        %v2307 = vrot.slane %v2300, %v2306
        %v2308 = vcombine.low %v2299, %v2307
        %v2309 = vcombine.high %v2299, %v2307
        %v2310 = vcombine.low %v1356, %v1363
        %v2312 = vunpack.c.l.s4 1983009808
        %v2313 = vunpack.c.0.s8 %v2312
        %v2314 = vlaneseq
        %v2315 = vshrl.u32 %v2314, 7
        %v2316 = vsub.s32 %v2313, %v2315
        %v2317 = vrot.slane %v2310, %v2316
        %v2318 = vcombine.low %v1380, %v1381
        %v2320 = vunpack.c.l.s4 1983009808
        %v2321 = vunpack.c.0.s8 %v2320
        %v2322 = vlaneseq
        %v2323 = vshrl.u32 %v2322, 7
        %v2324 = vsub.s32 %v2321, %v2323
        %v2325 = vrot.slane %v2318, %v2324
        %v2326 = vcombine.low %v1372, %v1379
        %v2328 = vunpack.c.l.s4 1983009808
        %v2329 = vunpack.c.0.s8 %v2328
        %v2330 = vlaneseq
        %v2331 = vshrl.u32 %v2330, 7
        %v2332 = vsub.s32 %v2329, %v2331
        %v2333 = vrot.slane %v2326, %v2332
        %v2334 = vcombine.low %v1382, %v1383
        %v2336 = vunpack.c.l.s4 1983009808
        %v2337 = vunpack.c.0.s8 %v2336
        %v2338 = vlaneseq
        %v2339 = vshrl.u32 %v2338, 7
        %v2340 = vsub.s32 %v2337, %v2339
        %v2341 = vrot.slane %v2334, %v2340
        %v2342 = vcombine.low %v2317, %v2325
        %v2344 = vunpack.c.l.s4 1934713408
        %v2345 = vunpack.c.0.s8 %v2344
        %v2346 = vlaneseq
        %v2347 = vshrl.u32 %v2346, 7
        %v2348 = vsub.s32 %v2345, %v2347
        %v2349 = vrot.slane %v2342, %v2348
        %v2350 = vcombine.low %v2333, %v2341
        %v2352 = vunpack.c.l.s4 1934713408
        %v2353 = vunpack.c.0.s8 %v2352
        %v2354 = vlaneseq
        %v2355 = vshrl.u32 %v2354, 7
        %v2356 = vsub.s32 %v2353, %v2355
        %v2357 = vrot.slane %v2350, %v2356
        %v2358 = vcombine.low %v2349, %v2357
        %v2359 = vcombine.high %v2349, %v2357
        %v2360 = vcombine.low %v1422, %v1429
        %v2362 = vunpack.c.l.s4 1983009808
        %v2363 = vunpack.c.0.s8 %v2362
        %v2364 = vlaneseq
        %v2365 = vshrl.u32 %v2364, 7
        %v2366 = vsub.s32 %v2363, %v2365
        %v2367 = vrot.slane %v2360, %v2366
        %v2368 = vcombine.low %v1446, %v1447
        %v2370 = vunpack.c.l.s4 1983009808
        %v2371 = vunpack.c.0.s8 %v2370
        %v2372 = vlaneseq
        %v2373 = vshrl.u32 %v2372, 7
        %v2374 = vsub.s32 %v2371, %v2373
        %v2375 = vrot.slane %v2368, %v2374
        %v2376 = vcombine.low %v1438, %v1445
        %v2378 = vunpack.c.l.s4 1983009808
        %v2379 = vunpack.c.0.s8 %v2378
        %v2380 = vlaneseq
        %v2381 = vshrl.u32 %v2380, 7
        %v2382 = vsub.s32 %v2379, %v2381
        %v2383 = vrot.slane %v2376, %v2382
        %v2384 = vcombine.low %v1448, %v1449
        %v2386 = vunpack.c.l.s4 1983009808
        %v2387 = vunpack.c.0.s8 %v2386
        %v2388 = vlaneseq
        %v2389 = vshrl.u32 %v2388, 7
        %v2390 = vsub.s32 %v2387, %v2389
        %v2391 = vrot.slane %v2384, %v2390
        %v2392 = vcombine.low %v2367, %v2375
        %v2394 = vunpack.c.l.s4 1934713408
        %v2395 = vunpack.c.0.s8 %v2394
        %v2396 = vlaneseq
        %v2397 = vshrl.u32 %v2396, 7
        %v2398 = vsub.s32 %v2395, %v2397
        %v2399 = vrot.slane %v2392, %v2398
        %v2400 = vcombine.low %v2383, %v2391
        %v2402 = vunpack.c.l.s4 1934713408
        %v2403 = vunpack.c.0.s8 %v2402
        %v2404 = vlaneseq
        %v2405 = vshrl.u32 %v2404, 7
        %v2406 = vsub.s32 %v2403, %v2405
        %v2407 = vrot.slane %v2400, %v2406
        %v2408 = vcombine.low %v2399, %v2407
        %v2409 = vcombine.high %v2399, %v2407
        %v2410 = vcombine.low %v1488, %v1495
        %v2412 = vunpack.c.l.s4 1983009808
        %v2413 = vunpack.c.0.s8 %v2412
        %v2414 = vlaneseq
        %v2415 = vshrl.u32 %v2414, 7
        %v2416 = vsub.s32 %v2413, %v2415
        %v2417 = vrot.slane %v2410, %v2416
        %v2418 = vcombine.low %v1512, %v1513
        %v2420 = vunpack.c.l.s4 1983009808
        %v2421 = vunpack.c.0.s8 %v2420
        %v2422 = vlaneseq
        %v2423 = vshrl.u32 %v2422, 7
        %v2424 = vsub.s32 %v2421, %v2423
        %v2425 = vrot.slane %v2418, %v2424
        %v2426 = vcombine.low %v1504, %v1511
        %v2428 = vunpack.c.l.s4 1983009808
        %v2429 = vunpack.c.0.s8 %v2428
        %v2430 = vlaneseq
        %v2431 = vshrl.u32 %v2430, 7
        %v2432 = vsub.s32 %v2429, %v2431
        %v2433 = vrot.slane %v2426, %v2432
        %v2434 = vcombine.low %v1514, %v1515
        %v2436 = vunpack.c.l.s4 1983009808
        %v2437 = vunpack.c.0.s8 %v2436
        %v2438 = vlaneseq
        %v2439 = vshrl.u32 %v2438, 7
        %v2440 = vsub.s32 %v2437, %v2439
        %v2441 = vrot.slane %v2434, %v2440
        %v2442 = vcombine.low %v2417, %v2425
        %v2444 = vunpack.c.l.s4 1934713408
        %v2445 = vunpack.c.0.s8 %v2444
        %v2446 = vlaneseq
        %v2447 = vshrl.u32 %v2446, 7
        %v2448 = vsub.s32 %v2445, %v2447
        %v2449 = vrot.slane %v2442, %v2448
        %v2450 = vcombine.low %v2433, %v2441
        %v2452 = vunpack.c.l.s4 1934713408
        %v2453 = vunpack.c.0.s8 %v2452
        %v2454 = vlaneseq
        %v2455 = vshrl.u32 %v2454, 7
        %v2456 = vsub.s32 %v2453, %v2455
        %v2457 = vrot.slane %v2450, %v2456
        %v2458 = vcombine.low %v2449, %v2457
        %v2459 = vcombine.high %v2449, %v2457
        %v2460 = vcombine.low %v1554, %v1561
        %v2462 = vunpack.c.l.s4 1983009808
        %v2463 = vunpack.c.0.s8 %v2462
        %v2464 = vlaneseq
        %v2465 = vshrl.u32 %v2464, 7
        %v2466 = vsub.s32 %v2463, %v2465
        %v2467 = vrot.slane %v2460, %v2466
        %v2468 = vcombine.low %v1578, %v1579
        %v2470 = vunpack.c.l.s4 1983009808
        %v2471 = vunpack.c.0.s8 %v2470
        %v2472 = vlaneseq
        %v2473 = vshrl.u32 %v2472, 7
        %v2474 = vsub.s32 %v2471, %v2473
        %v2475 = vrot.slane %v2468, %v2474
        %v2476 = vcombine.low %v1570, %v1577
        %v2478 = vunpack.c.l.s4 1983009808
        %v2479 = vunpack.c.0.s8 %v2478
        %v2480 = vlaneseq
        %v2481 = vshrl.u32 %v2480, 7
        %v2482 = vsub.s32 %v2479, %v2481
        %v2483 = vrot.slane %v2476, %v2482
        %v2484 = vcombine.low %v1580, %v1581
        %v2486 = vunpack.c.l.s4 1983009808
        %v2487 = vunpack.c.0.s8 %v2486
        %v2488 = vlaneseq
        %v2489 = vshrl.u32 %v2488, 7
        %v2490 = vsub.s32 %v2487, %v2489
        %v2491 = vrot.slane %v2484, %v2490
        %v2492 = vcombine.low %v2467, %v2475
        %v2494 = vunpack.c.l.s4 1934713408
        %v2495 = vunpack.c.0.s8 %v2494
        %v2496 = vlaneseq
        %v2497 = vshrl.u32 %v2496, 7
        %v2498 = vsub.s32 %v2495, %v2497
        %v2499 = vrot.slane %v2492, %v2498
        %v2500 = vcombine.low %v2483, %v2491
        %v2502 = vunpack.c.l.s4 1934713408
        %v2503 = vunpack.c.0.s8 %v2502
        %v2504 = vlaneseq
        %v2505 = vshrl.u32 %v2504, 7
        %v2506 = vsub.s32 %v2503, %v2505
        %v2507 = vrot.slane %v2500, %v2506
        %v2508 = vcombine.low %v2499, %v2507
        %v2509 = vcombine.high %v2499, %v2507
        %v2510 = vcombine.low %v1620, %v1627
        %v2512 = vunpack.c.l.s4 1983009808
        %v2513 = vunpack.c.0.s8 %v2512
        %v2514 = vlaneseq
        %v2515 = vshrl.u32 %v2514, 7
        %v2516 = vsub.s32 %v2513, %v2515
        %v2517 = vrot.slane %v2510, %v2516
        %v2518 = vcombine.low %v1644, %v1645
        %v2520 = vunpack.c.l.s4 1983009808
        %v2521 = vunpack.c.0.s8 %v2520
        %v2522 = vlaneseq
        %v2523 = vshrl.u32 %v2522, 7
        %v2524 = vsub.s32 %v2521, %v2523
        %v2525 = vrot.slane %v2518, %v2524
        %v2526 = vcombine.low %v1636, %v1643
        %v2528 = vunpack.c.l.s4 1983009808
        %v2529 = vunpack.c.0.s8 %v2528
        %v2530 = vlaneseq
        %v2531 = vshrl.u32 %v2530, 7
        %v2532 = vsub.s32 %v2529, %v2531
        %v2533 = vrot.slane %v2526, %v2532
        %v2534 = vcombine.low %v1646, %v1647
        %v2536 = vunpack.c.l.s4 1983009808
        %v2537 = vunpack.c.0.s8 %v2536
        %v2538 = vlaneseq
        %v2539 = vshrl.u32 %v2538, 7
        %v2540 = vsub.s32 %v2537, %v2539
        %v2541 = vrot.slane %v2534, %v2540
        %v2542 = vcombine.low %v2517, %v2525
        %v2544 = vunpack.c.l.s4 1934713408
        %v2545 = vunpack.c.0.s8 %v2544
        %v2546 = vlaneseq
        %v2547 = vshrl.u32 %v2546, 7
        %v2548 = vsub.s32 %v2545, %v2547
        %v2549 = vrot.slane %v2542, %v2548
        %v2550 = vcombine.low %v2533, %v2541
        %v2552 = vunpack.c.l.s4 1934713408
        %v2553 = vunpack.c.0.s8 %v2552
        %v2554 = vlaneseq
        %v2555 = vshrl.u32 %v2554, 7
        %v2556 = vsub.s32 %v2553, %v2555
        %v2557 = vrot.slane %v2550, %v2556
        %v2558 = vcombine.low %v2549, %v2557
        %v2559 = vcombine.high %v2549, %v2557
        %v2560 = vcombine.low %v1686, %v1693
        %v2562 = vunpack.c.l.s4 1983009808
        %v2563 = vunpack.c.0.s8 %v2562
        %v2564 = vlaneseq
        %v2565 = vshrl.u32 %v2564, 7
        %v2566 = vsub.s32 %v2563, %v2565
        %v2567 = vrot.slane %v2560, %v2566
        %v2568 = vcombine.low %v1710, %v1711
        %v2570 = vunpack.c.l.s4 1983009808
        %v2571 = vunpack.c.0.s8 %v2570
        %v2572 = vlaneseq
        %v2573 = vshrl.u32 %v2572, 7
        %v2574 = vsub.s32 %v2571, %v2573
        %v2575 = vrot.slane %v2568, %v2574
        %v2576 = vcombine.low %v1702, %v1709
        %v2578 = vunpack.c.l.s4 1983009808
        %v2579 = vunpack.c.0.s8 %v2578
        %v2580 = vlaneseq
        %v2581 = vshrl.u32 %v2580, 7
        %v2582 = vsub.s32 %v2579, %v2581
        %v2583 = vrot.slane %v2576, %v2582
        %v2584 = vcombine.low %v1712, %v1713
        %v2586 = vunpack.c.l.s4 1983009808
        %v2587 = vunpack.c.0.s8 %v2586
        %v2588 = vlaneseq
        %v2589 = vshrl.u32 %v2588, 7
        %v2590 = vsub.s32 %v2587, %v2589
        %v2591 = vrot.slane %v2584, %v2590
        %v2592 = vcombine.low %v2567, %v2575
        %v2594 = vunpack.c.l.s4 1934713408
        %v2595 = vunpack.c.0.s8 %v2594
        %v2596 = vlaneseq
        %v2597 = vshrl.u32 %v2596, 7
        %v2598 = vsub.s32 %v2595, %v2597
        %v2599 = vrot.slane %v2592, %v2598
        %v2600 = vcombine.low %v2583, %v2591
        %v2602 = vunpack.c.l.s4 1934713408
        %v2603 = vunpack.c.0.s8 %v2602
        %v2604 = vlaneseq
        %v2605 = vshrl.u32 %v2604, 7
        %v2606 = vsub.s32 %v2603, %v2605
        %v2607 = vrot.slane %v2600, %v2606
        %v2608 = vcombine.low %v2599, %v2607
        %v2609 = vcombine.high %v2599, %v2607
        %v2610 = vcombine.low %v1752, %v1759
        %v2612 = vunpack.c.l.s4 1983009808
        %v2613 = vunpack.c.0.s8 %v2612
        %v2614 = vlaneseq
        %v2615 = vshrl.u32 %v2614, 7
        %v2616 = vsub.s32 %v2613, %v2615
        %v2617 = vrot.slane %v2610, %v2616
        %v2618 = vcombine.low %v1776, %v1777
        %v2620 = vunpack.c.l.s4 1983009808
        %v2621 = vunpack.c.0.s8 %v2620
        %v2622 = vlaneseq
        %v2623 = vshrl.u32 %v2622, 7
        %v2624 = vsub.s32 %v2621, %v2623
        %v2625 = vrot.slane %v2618, %v2624
        %v2626 = vcombine.low %v1768, %v1775
        %v2628 = vunpack.c.l.s4 1983009808
        %v2629 = vunpack.c.0.s8 %v2628
        %v2630 = vlaneseq
        %v2631 = vshrl.u32 %v2630, 7
        %v2632 = vsub.s32 %v2629, %v2631
        %v2633 = vrot.slane %v2626, %v2632
        %v2634 = vcombine.low %v1778, %v1779
        %v2636 = vunpack.c.l.s4 1983009808
        %v2637 = vunpack.c.0.s8 %v2636
        %v2638 = vlaneseq
        %v2639 = vshrl.u32 %v2638, 7
        %v2640 = vsub.s32 %v2637, %v2639
        %v2641 = vrot.slane %v2634, %v2640
        %v2642 = vcombine.low %v2617, %v2625
        %v2644 = vunpack.c.l.s4 1934713408
        %v2645 = vunpack.c.0.s8 %v2644
        %v2646 = vlaneseq
        %v2647 = vshrl.u32 %v2646, 7
        %v2648 = vsub.s32 %v2645, %v2647
        %v2649 = vrot.slane %v2642, %v2648
        %v2650 = vcombine.low %v2633, %v2641
        %v2652 = vunpack.c.l.s4 1934713408
        %v2653 = vunpack.c.0.s8 %v2652
        %v2654 = vlaneseq
        %v2655 = vshrl.u32 %v2654, 7
        %v2656 = vsub.s32 %v2653, %v2655
        %v2657 = vrot.slane %v2650, %v2656
        %v2658 = vcombine.low %v2649, %v2657
        %v2659 = vcombine.high %v2649, %v2657
        %v2660 = vcombine.low %v1818, %v1825
        %v2662 = vunpack.c.l.s4 1983009808
        %v2663 = vunpack.c.0.s8 %v2662
        %v2664 = vlaneseq
        %v2665 = vshrl.u32 %v2664, 7
        %v2666 = vsub.s32 %v2663, %v2665
        %v2667 = vrot.slane %v2660, %v2666
        %v2668 = vcombine.low %v1842, %v1843
        %v2670 = vunpack.c.l.s4 1983009808
        %v2671 = vunpack.c.0.s8 %v2670
        %v2672 = vlaneseq
        %v2673 = vshrl.u32 %v2672, 7
        %v2674 = vsub.s32 %v2671, %v2673
        %v2675 = vrot.slane %v2668, %v2674
        %v2676 = vcombine.low %v1834, %v1841
        %v2678 = vunpack.c.l.s4 1983009808
        %v2679 = vunpack.c.0.s8 %v2678
        %v2680 = vlaneseq
        %v2681 = vshrl.u32 %v2680, 7
        %v2682 = vsub.s32 %v2679, %v2681
        %v2683 = vrot.slane %v2676, %v2682
        %v2684 = vcombine.low %v1844, %v1845
        %v2686 = vunpack.c.l.s4 1983009808
        %v2687 = vunpack.c.0.s8 %v2686
        %v2688 = vlaneseq
        %v2689 = vshrl.u32 %v2688, 7
        %v2690 = vsub.s32 %v2687, %v2689
        %v2691 = vrot.slane %v2684, %v2690
        %v2692 = vcombine.low %v2667, %v2675
        %v2694 = vunpack.c.l.s4 1934713408
        %v2695 = vunpack.c.0.s8 %v2694
        %v2696 = vlaneseq
        %v2697 = vshrl.u32 %v2696, 7
        %v2698 = vsub.s32 %v2695, %v2697
        %v2699 = vrot.slane %v2692, %v2698
        %v2700 = vcombine.low %v2683, %v2691
        %v2702 = vunpack.c.l.s4 1934713408
        %v2703 = vunpack.c.0.s8 %v2702
        %v2704 = vlaneseq
        %v2705 = vshrl.u32 %v2704, 7
        %v2706 = vsub.s32 %v2703, %v2705
        %v2707 = vrot.slane %v2700, %v2706
        %v2708 = vcombine.low %v2699, %v2707
        %v2709 = vcombine.high %v2699, %v2707
        %v2710 = vcombine.low %v1884, %v1891
        %v2712 = vunpack.c.l.s4 1983009808
        %v2713 = vunpack.c.0.s8 %v2712
        %v2714 = vlaneseq
        %v2715 = vshrl.u32 %v2714, 7
        %v2716 = vsub.s32 %v2713, %v2715
        %v2717 = vrot.slane %v2710, %v2716
        %v2718 = vcombine.low %v1908, %v1909
        %v2720 = vunpack.c.l.s4 1983009808
        %v2721 = vunpack.c.0.s8 %v2720
        %v2722 = vlaneseq
        %v2723 = vshrl.u32 %v2722, 7
        %v2724 = vsub.s32 %v2721, %v2723
        %v2725 = vrot.slane %v2718, %v2724
        %v2726 = vcombine.low %v1900, %v1907
        %v2728 = vunpack.c.l.s4 1983009808
        %v2729 = vunpack.c.0.s8 %v2728
        %v2730 = vlaneseq
        %v2731 = vshrl.u32 %v2730, 7
        %v2732 = vsub.s32 %v2729, %v2731
        %v2733 = vrot.slane %v2726, %v2732
        %v2734 = vcombine.low %v1910, %v1911
        %v2736 = vunpack.c.l.s4 1983009808
        %v2737 = vunpack.c.0.s8 %v2736
        %v2738 = vlaneseq
        %v2739 = vshrl.u32 %v2738, 7
        %v2740 = vsub.s32 %v2737, %v2739
        %v2741 = vrot.slane %v2734, %v2740
        %v2742 = vcombine.low %v2717, %v2725
        %v2744 = vunpack.c.l.s4 1934713408
        %v2745 = vunpack.c.0.s8 %v2744
        %v2746 = vlaneseq
        %v2747 = vshrl.u32 %v2746, 7
        %v2748 = vsub.s32 %v2745, %v2747
        %v2749 = vrot.slane %v2742, %v2748
        %v2750 = vcombine.low %v2733, %v2741
        %v2752 = vunpack.c.l.s4 1934713408
        %v2753 = vunpack.c.0.s8 %v2752
        %v2754 = vlaneseq
        %v2755 = vshrl.u32 %v2754, 7
        %v2756 = vsub.s32 %v2753, %v2755
        %v2757 = vrot.slane %v2750, %v2756
        %v2758 = vcombine.low %v2749, %v2757
        %v2759 = vcombine.high %v2749, %v2757
        %v2760 = vcombine.low %v1950, %v1957
        %v2762 = vunpack.c.l.s4 1983009808
        %v2763 = vunpack.c.0.s8 %v2762
        %v2764 = vlaneseq
        %v2765 = vshrl.u32 %v2764, 7
        %v2766 = vsub.s32 %v2763, %v2765
        %v2767 = vrot.slane %v2760, %v2766
        %v2768 = vcombine.low %v1974, %v1975
        %v2770 = vunpack.c.l.s4 1983009808
        %v2771 = vunpack.c.0.s8 %v2770
        %v2772 = vlaneseq
        %v2773 = vshrl.u32 %v2772, 7
        %v2774 = vsub.s32 %v2771, %v2773
        %v2775 = vrot.slane %v2768, %v2774
        %v2776 = vcombine.low %v1966, %v1973
        %v2778 = vunpack.c.l.s4 1983009808
        %v2779 = vunpack.c.0.s8 %v2778
        %v2780 = vlaneseq
        %v2781 = vshrl.u32 %v2780, 7
        %v2782 = vsub.s32 %v2779, %v2781
        %v2783 = vrot.slane %v2776, %v2782
        %v2784 = vcombine.low %v1976, %v1977
        %v2786 = vunpack.c.l.s4 1983009808
        %v2787 = vunpack.c.0.s8 %v2786
        %v2788 = vlaneseq
        %v2789 = vshrl.u32 %v2788, 7
        %v2790 = vsub.s32 %v2787, %v2789
        %v2791 = vrot.slane %v2784, %v2790
        %v2792 = vcombine.low %v2767, %v2775
        %v2794 = vunpack.c.l.s4 1934713408
        %v2795 = vunpack.c.0.s8 %v2794
        %v2796 = vlaneseq
        %v2797 = vshrl.u32 %v2796, 7
        %v2798 = vsub.s32 %v2795, %v2797
        %v2799 = vrot.slane %v2792, %v2798
        %v2800 = vcombine.low %v2783, %v2791
        %v2802 = vunpack.c.l.s4 1934713408
        %v2803 = vunpack.c.0.s8 %v2802
        %v2804 = vlaneseq
        %v2805 = vshrl.u32 %v2804, 7
        %v2806 = vsub.s32 %v2803, %v2805
        %v2807 = vrot.slane %v2800, %v2806
        %v2808 = vcombine.low %v2799, %v2807
        %v2809 = vcombine.high %v2799, %v2807
        %v2810 = vcombine.low %v2016, %v2023
        %v2812 = vunpack.c.l.s4 1983009808
        %v2813 = vunpack.c.0.s8 %v2812
        %v2814 = vlaneseq
        %v2815 = vshrl.u32 %v2814, 7
        %v2816 = vsub.s32 %v2813, %v2815
        %v2817 = vrot.slane %v2810, %v2816
        %v2818 = vcombine.low %v2040, %v2041
        %v2820 = vunpack.c.l.s4 1983009808
        %v2821 = vunpack.c.0.s8 %v2820
        %v2822 = vlaneseq
        %v2823 = vshrl.u32 %v2822, 7
        %v2824 = vsub.s32 %v2821, %v2823
        %v2825 = vrot.slane %v2818, %v2824
        %v2826 = vcombine.low %v2032, %v2039
        %v2828 = vunpack.c.l.s4 1983009808
        %v2829 = vunpack.c.0.s8 %v2828
        %v2830 = vlaneseq
        %v2831 = vshrl.u32 %v2830, 7
        %v2832 = vsub.s32 %v2829, %v2831
        %v2833 = vrot.slane %v2826, %v2832
        %v2834 = vcombine.low %v2042, %v2043
        %v2836 = vunpack.c.l.s4 1983009808
        %v2837 = vunpack.c.0.s8 %v2836
        %v2838 = vlaneseq
        %v2839 = vshrl.u32 %v2838, 7
        %v2840 = vsub.s32 %v2837, %v2839
        %v2841 = vrot.slane %v2834, %v2840
        %v2842 = vcombine.low %v2817, %v2825
        %v2844 = vunpack.c.l.s4 1934713408
        %v2845 = vunpack.c.0.s8 %v2844
        %v2846 = vlaneseq
        %v2847 = vshrl.u32 %v2846, 7
        %v2848 = vsub.s32 %v2845, %v2847
        %v2849 = vrot.slane %v2842, %v2848
        %v2850 = vcombine.low %v2833, %v2841
        %v2852 = vunpack.c.l.s4 1934713408
        %v2853 = vunpack.c.0.s8 %v2852
        %v2854 = vlaneseq
        %v2855 = vshrl.u32 %v2854, 7
        %v2856 = vsub.s32 %v2853, %v2855
        %v2857 = vrot.slane %v2850, %v2856
        %v2858 = vcombine.low %v2849, %v2857
        %v2859 = vcombine.high %v2849, %v2857
        %v2860 = vcombine.low %v2082, %v2089
        %v2862 = vunpack.c.l.s4 1983009808
        %v2863 = vunpack.c.0.s8 %v2862
        %v2864 = vlaneseq
        %v2865 = vshrl.u32 %v2864, 7
        %v2866 = vsub.s32 %v2863, %v2865
        %v2867 = vrot.slane %v2860, %v2866
        %v2868 = vcombine.low %v2106, %v2107
        %v2870 = vunpack.c.l.s4 1983009808
        %v2871 = vunpack.c.0.s8 %v2870
        %v2872 = vlaneseq
        %v2873 = vshrl.u32 %v2872, 7
        %v2874 = vsub.s32 %v2871, %v2873
        %v2875 = vrot.slane %v2868, %v2874
        %v2876 = vcombine.low %v2098, %v2105
        %v2878 = vunpack.c.l.s4 1983009808
        %v2879 = vunpack.c.0.s8 %v2878
        %v2880 = vlaneseq
        %v2881 = vshrl.u32 %v2880, 7
        %v2882 = vsub.s32 %v2879, %v2881
        %v2883 = vrot.slane %v2876, %v2882
        %v2884 = vcombine.low %v2108, %v2109
        %v2886 = vunpack.c.l.s4 1983009808
        %v2887 = vunpack.c.0.s8 %v2886
        %v2888 = vlaneseq
        %v2889 = vshrl.u32 %v2888, 7
        %v2890 = vsub.s32 %v2887, %v2889
        %v2891 = vrot.slane %v2884, %v2890
        %v2892 = vcombine.low %v2867, %v2875
        %v2894 = vunpack.c.l.s4 1934713408
        %v2895 = vunpack.c.0.s8 %v2894
        %v2896 = vlaneseq
        %v2897 = vshrl.u32 %v2896, 7
        %v2898 = vsub.s32 %v2895, %v2897
        %v2899 = vrot.slane %v2892, %v2898
        %v2900 = vcombine.low %v2883, %v2891
        %v2902 = vunpack.c.l.s4 1934713408
        %v2903 = vunpack.c.0.s8 %v2902
        %v2904 = vlaneseq
        %v2905 = vshrl.u32 %v2904, 7
        %v2906 = vsub.s32 %v2903, %v2905
        %v2907 = vrot.slane %v2900, %v2906
        %v2908 = vcombine.low %v2899, %v2907
        %v2909 = vcombine.high %v2899, %v2907
        %2910 = vst [vmem:[%s296] sm:$0xff] %v2158
        %2911 = vst [vmem:[%s296 + $0x8] sm:$0xff] %v2208
        %2912 = vst [vmem:[%s296 + $0x10] sm:$0xff] %v2258
        %2913 = vst [vmem:[%s296 + $0x18] sm:$0xff] %v2308
        %2914 = vst [vmem:[%s296 + $0x20] sm:$0xff] %v2358
        %2915 = vst [vmem:[%s296 + $0x28] sm:$0xff] %v2408
        %2916 = vst [vmem:[%s296 + $0x30] sm:$0xff] %v2458
        %2917 = vst [vmem:[%s296 + $0x38] sm:$0xff] %v2508
        %2918 = vst [vmem:[%s296 + $0x40] sm:$0xff] %v2558
        %2919 = vst [vmem:[%s296 + $0x48] sm:$0xff] %v2608
        %2920 = vst [vmem:[%s296 + $0x50] sm:$0xff] %v2658
        %2921 = vst [vmem:[%s296 + $0x58] sm:$0xff] %v2708
        %2922 = vst [vmem:[%s296 + $0x60] sm:$0xff] %v2758
        %2923 = vst [vmem:[%s296 + $0x68] sm:$0xff] %v2808
        %2924 = vst [vmem:[%s296 + $0x70] sm:$0xff] %v2858
        %2925 = vst [vmem:[%s296 + $0x78] sm:$0xff] %v2908
        %2926 = vst [vmem:[%s296 + $0x80] sm:$0xff] %v2159
        %2927 = vst [vmem:[%s296 + $0x88] sm:$0xff] %v2209
        %2928 = vst [vmem:[%s296 + $0x90] sm:$0xff] %v2259
        %2929 = vst [vmem:[%s296 + $0x98] sm:$0xff] %v2309
        %2930 = vst [vmem:[%s296 + $0xa0] sm:$0xff] %v2359
        %2931 = vst [vmem:[%s296 + $0xa8] sm:$0xff] %v2409
        %2932 = vst [vmem:[%s296 + $0xb0] sm:$0xff] %v2459
        %2933 = vst [vmem:[%s296 + $0xb8] sm:$0xff] %v2509
        %2934 = vst [vmem:[%s296 + $0xc0] sm:$0xff] %v2559
        %2935 = vst [vmem:[%s296 + $0xc8] sm:$0xff] %v2609
        %2936 = vst [vmem:[%s296 + $0xd0] sm:$0xff] %v2659
        %2937 = vst [vmem:[%s296 + $0xd8] sm:$0xff] %v2709
        %2938 = vst [vmem:[%s296 + $0xe0] sm:$0xff] %v2759
        %2939 = vst [vmem:[%s296 + $0xe8] sm:$0xff] %v2809
        %2940 = vst [vmem:[%s296 + $0xf0] sm:$0xff] %v2859
        %2941 = vst [vmem:[%s296 + $0xf8] sm:$0xff] %v2909
        %v2942 = vcombine.high %v799, 0.0
        %v2944 = vunpack.c.l.s4 1983009808
        %v2945 = vunpack.c.0.s8 %v2944
        %v2946 = vlaneseq
        %v2947 = vshrl.u32 %v2946, 7
        %v2948 = vsub.s32 %v2945, %v2947
        %v2949 = vrot.slane %v799, %v2948
        %v2951 = vunpack.c.l.s4 1983009808
        %v2952 = vunpack.c.0.s8 %v2951
        %v2953 = vlaneseq
        %v2954 = vshrl.u32 %v2953, 7
        %v2955 = vsub.s32 %v2952, %v2954
        %v2956 = vrot.slane %v2942, %v2955
        %v2957 = vcombine.high %v801, 0.0
        %v2959 = vunpack.c.l.s4 1983009808
        %v2960 = vunpack.c.0.s8 %v2959
        %v2961 = vlaneseq
        %v2962 = vshrl.u32 %v2961, 7
        %v2963 = vsub.s32 %v2960, %v2962
        %v2964 = vrot.slane %v801, %v2963
        %v2966 = vunpack.c.l.s4 1983009808
        %v2967 = vunpack.c.0.s8 %v2966
        %v2968 = vlaneseq
        %v2969 = vshrl.u32 %v2968, 7
        %v2970 = vsub.s32 %v2967, %v2969
        %v2971 = vrot.slane %v2957, %v2970
        %v2972 = vcombine.low %v2949, %v2964
        %v2973 = vcombine.high %v2949, %v2964
        %v2975 = vunpack.c.l.s4 1934713408
        %v2976 = vunpack.c.0.s8 %v2975
        %v2977 = vlaneseq
        %v2978 = vshrl.u32 %v2977, 7
        %v2979 = vsub.s32 %v2976, %v2978
        %v2980 = vrot.slane %v2972, %v2979
        %v2982 = vunpack.c.l.s4 1934713408
        %v2983 = vunpack.c.0.s8 %v2982
        %v2984 = vlaneseq
        %v2985 = vshrl.u32 %v2984, 7
        %v2986 = vsub.s32 %v2983, %v2985
        %v2987 = vrot.slane %v2973, %v2986
        %v2988 = vcombine.low %v2956, %v2971
        %v2989 = vcombine.high %v2956, %v2971
        %v2991 = vunpack.c.l.s4 1934713408
        %v2992 = vunpack.c.0.s8 %v2991
        %v2993 = vlaneseq
        %v2994 = vshrl.u32 %v2993, 7
        %v2995 = vsub.s32 %v2992, %v2994
        %v2996 = vrot.slane %v2988, %v2995
        %v2998 = vunpack.c.l.s4 1934713408
        %v2999 = vunpack.c.0.s8 %v2998
        %v3000 = vlaneseq
        %v3001 = vshrl.u32 %v3000, 7
        %v3002 = vsub.s32 %v2999, %v3001
        %v3003 = vrot.slane %v2989, %v3002
        %v3004 = vcombine.high %v2980, 0.0
        %v3005 = vcombine.high %v2987, 0.0
        %v3006 = vcombine.high %v2996, 0.0
        %v3007 = vcombine.high %v3003, 0.0
        %v3008 = vcombine.high %v805, 0.0
        %v3010 = vunpack.c.l.s4 1983009808
        %v3011 = vunpack.c.0.s8 %v3010
        %v3012 = vlaneseq
        %v3013 = vshrl.u32 %v3012, 7
        %v3014 = vsub.s32 %v3011, %v3013
        %v3015 = vrot.slane %v805, %v3014
        %v3017 = vunpack.c.l.s4 1983009808
        %v3018 = vunpack.c.0.s8 %v3017
        %v3019 = vlaneseq
        %v3020 = vshrl.u32 %v3019, 7
        %v3021 = vsub.s32 %v3018, %v3020
        %v3022 = vrot.slane %v3008, %v3021
        %v3023 = vcombine.high %v807, 0.0
        %v3025 = vunpack.c.l.s4 1983009808
        %v3026 = vunpack.c.0.s8 %v3025
        %v3027 = vlaneseq
        %v3028 = vshrl.u32 %v3027, 7
        %v3029 = vsub.s32 %v3026, %v3028
        %v3030 = vrot.slane %v807, %v3029
        %v3032 = vunpack.c.l.s4 1983009808
        %v3033 = vunpack.c.0.s8 %v3032
        %v3034 = vlaneseq
        %v3035 = vshrl.u32 %v3034, 7
        %v3036 = vsub.s32 %v3033, %v3035
        %v3037 = vrot.slane %v3023, %v3036
        %v3038 = vcombine.low %v3015, %v3030
        %v3039 = vcombine.high %v3015, %v3030
        %v3041 = vunpack.c.l.s4 1934713408
        %v3042 = vunpack.c.0.s8 %v3041
        %v3043 = vlaneseq
        %v3044 = vshrl.u32 %v3043, 7
        %v3045 = vsub.s32 %v3042, %v3044
        %v3046 = vrot.slane %v3038, %v3045
        %v3048 = vunpack.c.l.s4 1934713408
        %v3049 = vunpack.c.0.s8 %v3048
        %v3050 = vlaneseq
        %v3051 = vshrl.u32 %v3050, 7
        %v3052 = vsub.s32 %v3049, %v3051
        %v3053 = vrot.slane %v3039, %v3052
        %v3054 = vcombine.low %v3022, %v3037
        %v3055 = vcombine.high %v3022, %v3037
        %v3057 = vunpack.c.l.s4 1934713408
        %v3058 = vunpack.c.0.s8 %v3057
        %v3059 = vlaneseq
        %v3060 = vshrl.u32 %v3059, 7
        %v3061 = vsub.s32 %v3058, %v3060
        %v3062 = vrot.slane %v3054, %v3061
        %v3064 = vunpack.c.l.s4 1934713408
        %v3065 = vunpack.c.0.s8 %v3064
        %v3066 = vlaneseq
        %v3067 = vshrl.u32 %v3066, 7
        %v3068 = vsub.s32 %v3065, %v3067
        %v3069 = vrot.slane %v3055, %v3068
        %v3070 = vcombine.high %v3046, 0.0
        %v3071 = vcombine.high %v3053, 0.0
        %v3072 = vcombine.high %v3062, 0.0
        %v3073 = vcombine.high %v3069, 0.0
        %v3074 = vcombine.high %v811, 0.0
        %v3076 = vunpack.c.l.s4 1983009808
        %v3077 = vunpack.c.0.s8 %v3076
        %v3078 = vlaneseq
        %v3079 = vshrl.u32 %v3078, 7
        %v3080 = vsub.s32 %v3077, %v3079
        %v3081 = vrot.slane %v811, %v3080
        %v3083 = vunpack.c.l.s4 1983009808
        %v3084 = vunpack.c.0.s8 %v3083
        %v3085 = vlaneseq
        %v3086 = vshrl.u32 %v3085, 7
        %v3087 = vsub.s32 %v3084, %v3086
        %v3088 = vrot.slane %v3074, %v3087
        %v3089 = vcombine.high %v813, 0.0
        %v3091 = vunpack.c.l.s4 1983009808
        %v3092 = vunpack.c.0.s8 %v3091
        %v3093 = vlaneseq
        %v3094 = vshrl.u32 %v3093, 7
        %v3095 = vsub.s32 %v3092, %v3094
        %v3096 = vrot.slane %v813, %v3095
        %v3098 = vunpack.c.l.s4 1983009808
        %v3099 = vunpack.c.0.s8 %v3098
        %v3100 = vlaneseq
        %v3101 = vshrl.u32 %v3100, 7
        %v3102 = vsub.s32 %v3099, %v3101
        %v3103 = vrot.slane %v3089, %v3102
        %v3104 = vcombine.low %v3081, %v3096
        %v3105 = vcombine.high %v3081, %v3096
        %v3107 = vunpack.c.l.s4 1934713408
        %v3108 = vunpack.c.0.s8 %v3107
        %v3109 = vlaneseq
        %v3110 = vshrl.u32 %v3109, 7
        %v3111 = vsub.s32 %v3108, %v3110
        %v3112 = vrot.slane %v3104, %v3111
        %v3114 = vunpack.c.l.s4 1934713408
        %v3115 = vunpack.c.0.s8 %v3114
        %v3116 = vlaneseq
        %v3117 = vshrl.u32 %v3116, 7
        %v3118 = vsub.s32 %v3115, %v3117
        %v3119 = vrot.slane %v3105, %v3118
        %v3120 = vcombine.low %v3088, %v3103
        %v3121 = vcombine.high %v3088, %v3103
        %v3123 = vunpack.c.l.s4 1934713408
        %v3124 = vunpack.c.0.s8 %v3123
        %v3125 = vlaneseq
        %v3126 = vshrl.u32 %v3125, 7
        %v3127 = vsub.s32 %v3124, %v3126
        %v3128 = vrot.slane %v3120, %v3127
        %v3130 = vunpack.c.l.s4 1934713408
        %v3131 = vunpack.c.0.s8 %v3130
        %v3132 = vlaneseq
        %v3133 = vshrl.u32 %v3132, 7
        %v3134 = vsub.s32 %v3131, %v3133
        %v3135 = vrot.slane %v3121, %v3134
        %v3136 = vcombine.high %v3112, 0.0
        %v3137 = vcombine.high %v3119, 0.0
        %v3138 = vcombine.high %v3128, 0.0
        %v3139 = vcombine.high %v3135, 0.0
        %v3140 = vcombine.high %v817, 0.0
        %v3142 = vunpack.c.l.s4 1983009808
        %v3143 = vunpack.c.0.s8 %v3142
        %v3144 = vlaneseq
        %v3145 = vshrl.u32 %v3144, 7
        %v3146 = vsub.s32 %v3143, %v3145
        %v3147 = vrot.slane %v817, %v3146
        %v3149 = vunpack.c.l.s4 1983009808
        %v3150 = vunpack.c.0.s8 %v3149
        %v3151 = vlaneseq
        %v3152 = vshrl.u32 %v3151, 7
        %v3153 = vsub.s32 %v3150, %v3152
        %v3154 = vrot.slane %v3140, %v3153
        %v3155 = vcombine.high %v819, 0.0
        %v3157 = vunpack.c.l.s4 1983009808
        %v3158 = vunpack.c.0.s8 %v3157
        %v3159 = vlaneseq
        %v3160 = vshrl.u32 %v3159, 7
        %v3161 = vsub.s32 %v3158, %v3160
        %v3162 = vrot.slane %v819, %v3161
        %v3164 = vunpack.c.l.s4 1983009808
        %v3165 = vunpack.c.0.s8 %v3164
        %v3166 = vlaneseq
        %v3167 = vshrl.u32 %v3166, 7
        %v3168 = vsub.s32 %v3165, %v3167
        %v3169 = vrot.slane %v3155, %v3168
        %v3170 = vcombine.low %v3147, %v3162
        %v3171 = vcombine.high %v3147, %v3162
        %v3173 = vunpack.c.l.s4 1934713408
        %v3174 = vunpack.c.0.s8 %v3173
        %v3175 = vlaneseq
        %v3176 = vshrl.u32 %v3175, 7
        %v3177 = vsub.s32 %v3174, %v3176
        %v3178 = vrot.slane %v3170, %v3177
        %v3180 = vunpack.c.l.s4 1934713408
        %v3181 = vunpack.c.0.s8 %v3180
        %v3182 = vlaneseq
        %v3183 = vshrl.u32 %v3182, 7
        %v3184 = vsub.s32 %v3181, %v3183
        %v3185 = vrot.slane %v3171, %v3184
        %v3186 = vcombine.low %v3154, %v3169
        %v3187 = vcombine.high %v3154, %v3169
        %v3189 = vunpack.c.l.s4 1934713408
        %v3190 = vunpack.c.0.s8 %v3189
        %v3191 = vlaneseq
        %v3192 = vshrl.u32 %v3191, 7
        %v3193 = vsub.s32 %v3190, %v3192
        %v3194 = vrot.slane %v3186, %v3193
        %v3196 = vunpack.c.l.s4 1934713408
        %v3197 = vunpack.c.0.s8 %v3196
        %v3198 = vlaneseq
        %v3199 = vshrl.u32 %v3198, 7
        %v3200 = vsub.s32 %v3197, %v3199
        %v3201 = vrot.slane %v3187, %v3200
        %v3202 = vcombine.high %v3178, 0.0
        %v3203 = vcombine.high %v3185, 0.0
        %v3204 = vcombine.high %v3194, 0.0
        %v3205 = vcombine.high %v3201, 0.0
        %v3206 = vcombine.high %v823, 0.0
        %v3208 = vunpack.c.l.s4 1983009808
        %v3209 = vunpack.c.0.s8 %v3208
        %v3210 = vlaneseq
        %v3211 = vshrl.u32 %v3210, 7
        %v3212 = vsub.s32 %v3209, %v3211
        %v3213 = vrot.slane %v823, %v3212
        %v3215 = vunpack.c.l.s4 1983009808
        %v3216 = vunpack.c.0.s8 %v3215
        %v3217 = vlaneseq
        %v3218 = vshrl.u32 %v3217, 7
        %v3219 = vsub.s32 %v3216, %v3218
        %v3220 = vrot.slane %v3206, %v3219
        %v3221 = vcombine.high %v825, 0.0
        %v3223 = vunpack.c.l.s4 1983009808
        %v3224 = vunpack.c.0.s8 %v3223
        %v3225 = vlaneseq
        %v3226 = vshrl.u32 %v3225, 7
        %v3227 = vsub.s32 %v3224, %v3226
        %v3228 = vrot.slane %v825, %v3227
        %v3230 = vunpack.c.l.s4 1983009808
        %v3231 = vunpack.c.0.s8 %v3230
        %v3232 = vlaneseq
        %v3233 = vshrl.u32 %v3232, 7
        %v3234 = vsub.s32 %v3231, %v3233
        %v3235 = vrot.slane %v3221, %v3234
        %v3236 = vcombine.low %v3213, %v3228
        %v3237 = vcombine.high %v3213, %v3228
        %v3239 = vunpack.c.l.s4 1934713408
        %v3240 = vunpack.c.0.s8 %v3239
        %v3241 = vlaneseq
        %v3242 = vshrl.u32 %v3241, 7
        %v3243 = vsub.s32 %v3240, %v3242
        %v3244 = vrot.slane %v3236, %v3243
        %v3246 = vunpack.c.l.s4 1934713408
        %v3247 = vunpack.c.0.s8 %v3246
        %v3248 = vlaneseq
        %v3249 = vshrl.u32 %v3248, 7
        %v3250 = vsub.s32 %v3247, %v3249
        %v3251 = vrot.slane %v3237, %v3250
        %v3252 = vcombine.low %v3220, %v3235
        %v3253 = vcombine.high %v3220, %v3235
        %v3255 = vunpack.c.l.s4 1934713408
        %v3256 = vunpack.c.0.s8 %v3255
        %v3257 = vlaneseq
        %v3258 = vshrl.u32 %v3257, 7
        %v3259 = vsub.s32 %v3256, %v3258
        %v3260 = vrot.slane %v3252, %v3259
        %v3262 = vunpack.c.l.s4 1934713408
        %v3263 = vunpack.c.0.s8 %v3262
        %v3264 = vlaneseq
        %v3265 = vshrl.u32 %v3264, 7
        %v3266 = vsub.s32 %v3263, %v3265
        %v3267 = vrot.slane %v3253, %v3266
        %v3268 = vcombine.high %v3244, 0.0
        %v3269 = vcombine.high %v3251, 0.0
        %v3270 = vcombine.high %v3260, 0.0
        %v3271 = vcombine.high %v3267, 0.0
        %v3272 = vcombine.high %v829, 0.0
        %v3274 = vunpack.c.l.s4 1983009808
        %v3275 = vunpack.c.0.s8 %v3274
        %v3276 = vlaneseq
        %v3277 = vshrl.u32 %v3276, 7
        %v3278 = vsub.s32 %v3275, %v3277
        %v3279 = vrot.slane %v829, %v3278
        %v3281 = vunpack.c.l.s4 1983009808
        %v3282 = vunpack.c.0.s8 %v3281
        %v3283 = vlaneseq
        %v3284 = vshrl.u32 %v3283, 7
        %v3285 = vsub.s32 %v3282, %v3284
        %v3286 = vrot.slane %v3272, %v3285
        %v3287 = vcombine.high %v831, 0.0
        %v3289 = vunpack.c.l.s4 1983009808
        %v3290 = vunpack.c.0.s8 %v3289
        %v3291 = vlaneseq
        %v3292 = vshrl.u32 %v3291, 7
        %v3293 = vsub.s32 %v3290, %v3292
        %v3294 = vrot.slane %v831, %v3293
        %v3296 = vunpack.c.l.s4 1983009808
        %v3297 = vunpack.c.0.s8 %v3296
        %v3298 = vlaneseq
        %v3299 = vshrl.u32 %v3298, 7
        %v3300 = vsub.s32 %v3297, %v3299
        %v3301 = vrot.slane %v3287, %v3300
        %v3302 = vcombine.low %v3279, %v3294
        %v3303 = vcombine.high %v3279, %v3294
        %v3305 = vunpack.c.l.s4 1934713408
        %v3306 = vunpack.c.0.s8 %v3305
        %v3307 = vlaneseq
        %v3308 = vshrl.u32 %v3307, 7
        %v3309 = vsub.s32 %v3306, %v3308
        %v3310 = vrot.slane %v3302, %v3309
        %v3312 = vunpack.c.l.s4 1934713408
        %v3313 = vunpack.c.0.s8 %v3312
        %v3314 = vlaneseq
        %v3315 = vshrl.u32 %v3314, 7
        %v3316 = vsub.s32 %v3313, %v3315
        %v3317 = vrot.slane %v3303, %v3316
        %v3318 = vcombine.low %v3286, %v3301
        %v3319 = vcombine.high %v3286, %v3301
        %v3321 = vunpack.c.l.s4 1934713408
        %v3322 = vunpack.c.0.s8 %v3321
        %v3323 = vlaneseq
        %v3324 = vshrl.u32 %v3323, 7
        %v3325 = vsub.s32 %v3322, %v3324
        %v3326 = vrot.slane %v3318, %v3325
        %v3328 = vunpack.c.l.s4 1934713408
        %v3329 = vunpack.c.0.s8 %v3328
        %v3330 = vlaneseq
        %v3331 = vshrl.u32 %v3330, 7
        %v3332 = vsub.s32 %v3329, %v3331
        %v3333 = vrot.slane %v3319, %v3332
        %v3334 = vcombine.high %v3310, 0.0
        %v3335 = vcombine.high %v3317, 0.0
        %v3336 = vcombine.high %v3326, 0.0
        %v3337 = vcombine.high %v3333, 0.0
        %v3338 = vcombine.high %v835, 0.0
        %v3340 = vunpack.c.l.s4 1983009808
        %v3341 = vunpack.c.0.s8 %v3340
        %v3342 = vlaneseq
        %v3343 = vshrl.u32 %v3342, 7
        %v3344 = vsub.s32 %v3341, %v3343
        %v3345 = vrot.slane %v835, %v3344
        %v3347 = vunpack.c.l.s4 1983009808
        %v3348 = vunpack.c.0.s8 %v3347
        %v3349 = vlaneseq
        %v3350 = vshrl.u32 %v3349, 7
        %v3351 = vsub.s32 %v3348, %v3350
        %v3352 = vrot.slane %v3338, %v3351
        %v3353 = vcombine.high %v837, 0.0
        %v3355 = vunpack.c.l.s4 1983009808
        %v3356 = vunpack.c.0.s8 %v3355
        %v3357 = vlaneseq
        %v3358 = vshrl.u32 %v3357, 7
        %v3359 = vsub.s32 %v3356, %v3358
        %v3360 = vrot.slane %v837, %v3359
        %v3362 = vunpack.c.l.s4 1983009808
        %v3363 = vunpack.c.0.s8 %v3362
        %v3364 = vlaneseq
        %v3365 = vshrl.u32 %v3364, 7
        %v3366 = vsub.s32 %v3363, %v3365
        %v3367 = vrot.slane %v3353, %v3366
        %v3368 = vcombine.low %v3345, %v3360
        %v3369 = vcombine.high %v3345, %v3360
        %v3371 = vunpack.c.l.s4 1934713408
        %v3372 = vunpack.c.0.s8 %v3371
        %v3373 = vlaneseq
        %v3374 = vshrl.u32 %v3373, 7
        %v3375 = vsub.s32 %v3372, %v3374
        %v3376 = vrot.slane %v3368, %v3375
        %v3378 = vunpack.c.l.s4 1934713408
        %v3379 = vunpack.c.0.s8 %v3378
        %v3380 = vlaneseq
        %v3381 = vshrl.u32 %v3380, 7
        %v3382 = vsub.s32 %v3379, %v3381
        %v3383 = vrot.slane %v3369, %v3382
        %v3384 = vcombine.low %v3352, %v3367
        %v3385 = vcombine.high %v3352, %v3367
        %v3387 = vunpack.c.l.s4 1934713408
        %v3388 = vunpack.c.0.s8 %v3387
        %v3389 = vlaneseq
        %v3390 = vshrl.u32 %v3389, 7
        %v3391 = vsub.s32 %v3388, %v3390
        %v3392 = vrot.slane %v3384, %v3391
        %v3394 = vunpack.c.l.s4 1934713408
        %v3395 = vunpack.c.0.s8 %v3394
        %v3396 = vlaneseq
        %v3397 = vshrl.u32 %v3396, 7
        %v3398 = vsub.s32 %v3395, %v3397
        %v3399 = vrot.slane %v3385, %v3398
        %v3400 = vcombine.high %v3376, 0.0
        %v3401 = vcombine.high %v3383, 0.0
        %v3402 = vcombine.high %v3392, 0.0
        %v3403 = vcombine.high %v3399, 0.0
        %v3404 = vcombine.high %v841, 0.0
        %v3406 = vunpack.c.l.s4 1983009808
        %v3407 = vunpack.c.0.s8 %v3406
        %v3408 = vlaneseq
        %v3409 = vshrl.u32 %v3408, 7
        %v3410 = vsub.s32 %v3407, %v3409
        %v3411 = vrot.slane %v841, %v3410
        %v3413 = vunpack.c.l.s4 1983009808
        %v3414 = vunpack.c.0.s8 %v3413
        %v3415 = vlaneseq
        %v3416 = vshrl.u32 %v3415, 7
        %v3417 = vsub.s32 %v3414, %v3416
        %v3418 = vrot.slane %v3404, %v3417
        %v3419 = vcombine.high %v843, 0.0
        %v3421 = vunpack.c.l.s4 1983009808
        %v3422 = vunpack.c.0.s8 %v3421
        %v3423 = vlaneseq
        %v3424 = vshrl.u32 %v3423, 7
        %v3425 = vsub.s32 %v3422, %v3424
        %v3426 = vrot.slane %v843, %v3425
        %v3428 = vunpack.c.l.s4 1983009808
        %v3429 = vunpack.c.0.s8 %v3428
        %v3430 = vlaneseq
        %v3431 = vshrl.u32 %v3430, 7
        %v3432 = vsub.s32 %v3429, %v3431
        %v3433 = vrot.slane %v3419, %v3432
        %v3434 = vcombine.low %v3411, %v3426
        %v3435 = vcombine.high %v3411, %v3426
        %v3437 = vunpack.c.l.s4 1934713408
        %v3438 = vunpack.c.0.s8 %v3437
        %v3439 = vlaneseq
        %v3440 = vshrl.u32 %v3439, 7
        %v3441 = vsub.s32 %v3438, %v3440
        %v3442 = vrot.slane %v3434, %v3441
        %v3444 = vunpack.c.l.s4 1934713408
        %v3445 = vunpack.c.0.s8 %v3444
        %v3446 = vlaneseq
        %v3447 = vshrl.u32 %v3446, 7
        %v3448 = vsub.s32 %v3445, %v3447
        %v3449 = vrot.slane %v3435, %v3448
        %v3450 = vcombine.low %v3418, %v3433
        %v3451 = vcombine.high %v3418, %v3433
        %v3453 = vunpack.c.l.s4 1934713408
        %v3454 = vunpack.c.0.s8 %v3453
        %v3455 = vlaneseq
        %v3456 = vshrl.u32 %v3455, 7
        %v3457 = vsub.s32 %v3454, %v3456
        %v3458 = vrot.slane %v3450, %v3457
        %v3460 = vunpack.c.l.s4 1934713408
        %v3461 = vunpack.c.0.s8 %v3460
        %v3462 = vlaneseq
        %v3463 = vshrl.u32 %v3462, 7
        %v3464 = vsub.s32 %v3461, %v3463
        %v3465 = vrot.slane %v3451, %v3464
        %v3466 = vcombine.high %v3442, 0.0
        %v3467 = vcombine.high %v3449, 0.0
        %v3468 = vcombine.high %v3458, 0.0
        %v3469 = vcombine.high %v3465, 0.0
        %v3470 = vcombine.high %v847, 0.0
        %v3472 = vunpack.c.l.s4 1983009808
        %v3473 = vunpack.c.0.s8 %v3472
        %v3474 = vlaneseq
        %v3475 = vshrl.u32 %v3474, 7
        %v3476 = vsub.s32 %v3473, %v3475
        %v3477 = vrot.slane %v847, %v3476
        %v3479 = vunpack.c.l.s4 1983009808
        %v3480 = vunpack.c.0.s8 %v3479
        %v3481 = vlaneseq
        %v3482 = vshrl.u32 %v3481, 7
        %v3483 = vsub.s32 %v3480, %v3482
        %v3484 = vrot.slane %v3470, %v3483
        %v3485 = vcombine.high %v849, 0.0
        %v3487 = vunpack.c.l.s4 1983009808
        %v3488 = vunpack.c.0.s8 %v3487
        %v3489 = vlaneseq
        %v3490 = vshrl.u32 %v3489, 7
        %v3491 = vsub.s32 %v3488, %v3490
        %v3492 = vrot.slane %v849, %v3491
        %v3494 = vunpack.c.l.s4 1983009808
        %v3495 = vunpack.c.0.s8 %v3494
        %v3496 = vlaneseq
        %v3497 = vshrl.u32 %v3496, 7
        %v3498 = vsub.s32 %v3495, %v3497
        %v3499 = vrot.slane %v3485, %v3498
        %v3500 = vcombine.low %v3477, %v3492
        %v3501 = vcombine.high %v3477, %v3492
        %v3503 = vunpack.c.l.s4 1934713408
        %v3504 = vunpack.c.0.s8 %v3503
        %v3505 = vlaneseq
        %v3506 = vshrl.u32 %v3505, 7
        %v3507 = vsub.s32 %v3504, %v3506
        %v3508 = vrot.slane %v3500, %v3507
        %v3510 = vunpack.c.l.s4 1934713408
        %v3511 = vunpack.c.0.s8 %v3510
        %v3512 = vlaneseq
        %v3513 = vshrl.u32 %v3512, 7
        %v3514 = vsub.s32 %v3511, %v3513
        %v3515 = vrot.slane %v3501, %v3514
        %v3516 = vcombine.low %v3484, %v3499
        %v3517 = vcombine.high %v3484, %v3499
        %v3519 = vunpack.c.l.s4 1934713408
        %v3520 = vunpack.c.0.s8 %v3519
        %v3521 = vlaneseq
        %v3522 = vshrl.u32 %v3521, 7
        %v3523 = vsub.s32 %v3520, %v3522
        %v3524 = vrot.slane %v3516, %v3523
        %v3526 = vunpack.c.l.s4 1934713408
        %v3527 = vunpack.c.0.s8 %v3526
        %v3528 = vlaneseq
        %v3529 = vshrl.u32 %v3528, 7
        %v3530 = vsub.s32 %v3527, %v3529
        %v3531 = vrot.slane %v3517, %v3530
        %v3532 = vcombine.high %v3508, 0.0
        %v3533 = vcombine.high %v3515, 0.0
        %v3534 = vcombine.high %v3524, 0.0
        %v3535 = vcombine.high %v3531, 0.0
        %v3536 = vcombine.high %v853, 0.0
        %v3538 = vunpack.c.l.s4 1983009808
        %v3539 = vunpack.c.0.s8 %v3538
        %v3540 = vlaneseq
        %v3541 = vshrl.u32 %v3540, 7
        %v3542 = vsub.s32 %v3539, %v3541
        %v3543 = vrot.slane %v853, %v3542
        %v3545 = vunpack.c.l.s4 1983009808
        %v3546 = vunpack.c.0.s8 %v3545
        %v3547 = vlaneseq
        %v3548 = vshrl.u32 %v3547, 7
        %v3549 = vsub.s32 %v3546, %v3548
        %v3550 = vrot.slane %v3536, %v3549
        %v3551 = vcombine.high %v855, 0.0
        %v3553 = vunpack.c.l.s4 1983009808
        %v3554 = vunpack.c.0.s8 %v3553
        %v3555 = vlaneseq
        %v3556 = vshrl.u32 %v3555, 7
        %v3557 = vsub.s32 %v3554, %v3556
        %v3558 = vrot.slane %v855, %v3557
        %v3560 = vunpack.c.l.s4 1983009808
        %v3561 = vunpack.c.0.s8 %v3560
        %v3562 = vlaneseq
        %v3563 = vshrl.u32 %v3562, 7
        %v3564 = vsub.s32 %v3561, %v3563
        %v3565 = vrot.slane %v3551, %v3564
        %v3566 = vcombine.low %v3543, %v3558
        %v3567 = vcombine.high %v3543, %v3558
        %v3569 = vunpack.c.l.s4 1934713408
        %v3570 = vunpack.c.0.s8 %v3569
        %v3571 = vlaneseq
        %v3572 = vshrl.u32 %v3571, 7
        %v3573 = vsub.s32 %v3570, %v3572
        %v3574 = vrot.slane %v3566, %v3573
        %v3576 = vunpack.c.l.s4 1934713408
        %v3577 = vunpack.c.0.s8 %v3576
        %v3578 = vlaneseq
        %v3579 = vshrl.u32 %v3578, 7
        %v3580 = vsub.s32 %v3577, %v3579
        %v3581 = vrot.slane %v3567, %v3580
        %v3582 = vcombine.low %v3550, %v3565
        %v3583 = vcombine.high %v3550, %v3565
        %v3585 = vunpack.c.l.s4 1934713408
        %v3586 = vunpack.c.0.s8 %v3585
        %v3587 = vlaneseq
        %v3588 = vshrl.u32 %v3587, 7
        %v3589 = vsub.s32 %v3586, %v3588
        %v3590 = vrot.slane %v3582, %v3589
        %v3592 = vunpack.c.l.s4 1934713408
        %v3593 = vunpack.c.0.s8 %v3592
        %v3594 = vlaneseq
        %v3595 = vshrl.u32 %v3594, 7
        %v3596 = vsub.s32 %v3593, %v3595
        %v3597 = vrot.slane %v3583, %v3596
        %v3598 = vcombine.high %v3574, 0.0
        %v3599 = vcombine.high %v3581, 0.0
        %v3600 = vcombine.high %v3590, 0.0
        %v3601 = vcombine.high %v3597, 0.0
        %v3602 = vcombine.high %v859, 0.0
        %v3604 = vunpack.c.l.s4 1983009808
        %v3605 = vunpack.c.0.s8 %v3604
        %v3606 = vlaneseq
        %v3607 = vshrl.u32 %v3606, 7
        %v3608 = vsub.s32 %v3605, %v3607
        %v3609 = vrot.slane %v859, %v3608
        %v3611 = vunpack.c.l.s4 1983009808
        %v3612 = vunpack.c.0.s8 %v3611
        %v3613 = vlaneseq
        %v3614 = vshrl.u32 %v3613, 7
        %v3615 = vsub.s32 %v3612, %v3614
        %v3616 = vrot.slane %v3602, %v3615
        %v3617 = vcombine.high %v861, 0.0
        %v3619 = vunpack.c.l.s4 1983009808
        %v3620 = vunpack.c.0.s8 %v3619
        %v3621 = vlaneseq
        %v3622 = vshrl.u32 %v3621, 7
        %v3623 = vsub.s32 %v3620, %v3622
        %v3624 = vrot.slane %v861, %v3623
        %v3626 = vunpack.c.l.s4 1983009808
        %v3627 = vunpack.c.0.s8 %v3626
        %v3628 = vlaneseq
        %v3629 = vshrl.u32 %v3628, 7
        %v3630 = vsub.s32 %v3627, %v3629
        %v3631 = vrot.slane %v3617, %v3630
        %v3632 = vcombine.low %v3609, %v3624
        %v3633 = vcombine.high %v3609, %v3624
        %v3635 = vunpack.c.l.s4 1934713408
        %v3636 = vunpack.c.0.s8 %v3635
        %v3637 = vlaneseq
        %v3638 = vshrl.u32 %v3637, 7
        %v3639 = vsub.s32 %v3636, %v3638
        %v3640 = vrot.slane %v3632, %v3639
        %v3642 = vunpack.c.l.s4 1934713408
        %v3643 = vunpack.c.0.s8 %v3642
        %v3644 = vlaneseq
        %v3645 = vshrl.u32 %v3644, 7
        %v3646 = vsub.s32 %v3643, %v3645
        %v3647 = vrot.slane %v3633, %v3646
        %v3648 = vcombine.low %v3616, %v3631
        %v3649 = vcombine.high %v3616, %v3631
        %v3651 = vunpack.c.l.s4 1934713408
        %v3652 = vunpack.c.0.s8 %v3651
        %v3653 = vlaneseq
        %v3654 = vshrl.u32 %v3653, 7
        %v3655 = vsub.s32 %v3652, %v3654
        %v3656 = vrot.slane %v3648, %v3655
        %v3658 = vunpack.c.l.s4 1934713408
        %v3659 = vunpack.c.0.s8 %v3658
        %v3660 = vlaneseq
        %v3661 = vshrl.u32 %v3660, 7
        %v3662 = vsub.s32 %v3659, %v3661
        %v3663 = vrot.slane %v3649, %v3662
        %v3664 = vcombine.high %v3640, 0.0
        %v3665 = vcombine.high %v3647, 0.0
        %v3666 = vcombine.high %v3656, 0.0
        %v3667 = vcombine.high %v3663, 0.0
        %v3668 = vcombine.high %v865, 0.0
        %v3670 = vunpack.c.l.s4 1983009808
        %v3671 = vunpack.c.0.s8 %v3670
        %v3672 = vlaneseq
        %v3673 = vshrl.u32 %v3672, 7
        %v3674 = vsub.s32 %v3671, %v3673
        %v3675 = vrot.slane %v865, %v3674
        %v3677 = vunpack.c.l.s4 1983009808
        %v3678 = vunpack.c.0.s8 %v3677
        %v3679 = vlaneseq
        %v3680 = vshrl.u32 %v3679, 7
        %v3681 = vsub.s32 %v3678, %v3680
        %v3682 = vrot.slane %v3668, %v3681
        %v3683 = vcombine.high %v867, 0.0
        %v3685 = vunpack.c.l.s4 1983009808
        %v3686 = vunpack.c.0.s8 %v3685
        %v3687 = vlaneseq
        %v3688 = vshrl.u32 %v3687, 7
        %v3689 = vsub.s32 %v3686, %v3688
        %v3690 = vrot.slane %v867, %v3689
        %v3692 = vunpack.c.l.s4 1983009808
        %v3693 = vunpack.c.0.s8 %v3692
        %v3694 = vlaneseq
        %v3695 = vshrl.u32 %v3694, 7
        %v3696 = vsub.s32 %v3693, %v3695
        %v3697 = vrot.slane %v3683, %v3696
        %v3698 = vcombine.low %v3675, %v3690
        %v3699 = vcombine.high %v3675, %v3690
        %v3701 = vunpack.c.l.s4 1934713408
        %v3702 = vunpack.c.0.s8 %v3701
        %v3703 = vlaneseq
        %v3704 = vshrl.u32 %v3703, 7
        %v3705 = vsub.s32 %v3702, %v3704
        %v3706 = vrot.slane %v3698, %v3705
        %v3708 = vunpack.c.l.s4 1934713408
        %v3709 = vunpack.c.0.s8 %v3708
        %v3710 = vlaneseq
        %v3711 = vshrl.u32 %v3710, 7
        %v3712 = vsub.s32 %v3709, %v3711
        %v3713 = vrot.slane %v3699, %v3712
        %v3714 = vcombine.low %v3682, %v3697
        %v3715 = vcombine.high %v3682, %v3697
        %v3717 = vunpack.c.l.s4 1934713408
        %v3718 = vunpack.c.0.s8 %v3717
        %v3719 = vlaneseq
        %v3720 = vshrl.u32 %v3719, 7
        %v3721 = vsub.s32 %v3718, %v3720
        %v3722 = vrot.slane %v3714, %v3721
        %v3724 = vunpack.c.l.s4 1934713408
        %v3725 = vunpack.c.0.s8 %v3724
        %v3726 = vlaneseq
        %v3727 = vshrl.u32 %v3726, 7
        %v3728 = vsub.s32 %v3725, %v3727
        %v3729 = vrot.slane %v3715, %v3728
        %v3730 = vcombine.high %v3706, 0.0
        %v3731 = vcombine.high %v3713, 0.0
        %v3732 = vcombine.high %v3722, 0.0
        %v3733 = vcombine.high %v3729, 0.0
        %v3734 = vcombine.high %v871, 0.0
        %v3736 = vunpack.c.l.s4 1983009808
        %v3737 = vunpack.c.0.s8 %v3736
        %v3738 = vlaneseq
        %v3739 = vshrl.u32 %v3738, 7
        %v3740 = vsub.s32 %v3737, %v3739
        %v3741 = vrot.slane %v871, %v3740
        %v3743 = vunpack.c.l.s4 1983009808
        %v3744 = vunpack.c.0.s8 %v3743
        %v3745 = vlaneseq
        %v3746 = vshrl.u32 %v3745, 7
        %v3747 = vsub.s32 %v3744, %v3746
        %v3748 = vrot.slane %v3734, %v3747
        %v3749 = vcombine.high %v873, 0.0
        %v3751 = vunpack.c.l.s4 1983009808
        %v3752 = vunpack.c.0.s8 %v3751
        %v3753 = vlaneseq
        %v3754 = vshrl.u32 %v3753, 7
        %v3755 = vsub.s32 %v3752, %v3754
        %v3756 = vrot.slane %v873, %v3755
        %v3758 = vunpack.c.l.s4 1983009808
        %v3759 = vunpack.c.0.s8 %v3758
        %v3760 = vlaneseq
        %v3761 = vshrl.u32 %v3760, 7
        %v3762 = vsub.s32 %v3759, %v3761
        %v3763 = vrot.slane %v3749, %v3762
        %v3764 = vcombine.low %v3741, %v3756
        %v3765 = vcombine.high %v3741, %v3756
        %v3767 = vunpack.c.l.s4 1934713408
        %v3768 = vunpack.c.0.s8 %v3767
        %v3769 = vlaneseq
        %v3770 = vshrl.u32 %v3769, 7
        %v3771 = vsub.s32 %v3768, %v3770
        %v3772 = vrot.slane %v3764, %v3771
        %v3774 = vunpack.c.l.s4 1934713408
        %v3775 = vunpack.c.0.s8 %v3774
        %v3776 = vlaneseq
        %v3777 = vshrl.u32 %v3776, 7
        %v3778 = vsub.s32 %v3775, %v3777
        %v3779 = vrot.slane %v3765, %v3778
        %v3780 = vcombine.low %v3748, %v3763
        %v3781 = vcombine.high %v3748, %v3763
        %v3783 = vunpack.c.l.s4 1934713408
        %v3784 = vunpack.c.0.s8 %v3783
        %v3785 = vlaneseq
        %v3786 = vshrl.u32 %v3785, 7
        %v3787 = vsub.s32 %v3784, %v3786
        %v3788 = vrot.slane %v3780, %v3787
        %v3790 = vunpack.c.l.s4 1934713408
        %v3791 = vunpack.c.0.s8 %v3790
        %v3792 = vlaneseq
        %v3793 = vshrl.u32 %v3792, 7
        %v3794 = vsub.s32 %v3791, %v3793
        %v3795 = vrot.slane %v3781, %v3794
        %v3796 = vcombine.high %v3772, 0.0
        %v3797 = vcombine.high %v3779, 0.0
        %v3798 = vcombine.high %v3788, 0.0
        %v3799 = vcombine.high %v3795, 0.0
        %v3800 = vcombine.high %v877, 0.0
        %v3802 = vunpack.c.l.s4 1983009808
        %v3803 = vunpack.c.0.s8 %v3802
        %v3804 = vlaneseq
        %v3805 = vshrl.u32 %v3804, 7
        %v3806 = vsub.s32 %v3803, %v3805
        %v3807 = vrot.slane %v877, %v3806
        %v3809 = vunpack.c.l.s4 1983009808
        %v3810 = vunpack.c.0.s8 %v3809
        %v3811 = vlaneseq
        %v3812 = vshrl.u32 %v3811, 7
        %v3813 = vsub.s32 %v3810, %v3812
        %v3814 = vrot.slane %v3800, %v3813
        %v3815 = vcombine.high %v879, 0.0
        %v3817 = vunpack.c.l.s4 1983009808
        %v3818 = vunpack.c.0.s8 %v3817
        %v3819 = vlaneseq
        %v3820 = vshrl.u32 %v3819, 7
        %v3821 = vsub.s32 %v3818, %v3820
        %v3822 = vrot.slane %v879, %v3821
        %v3824 = vunpack.c.l.s4 1983009808
        %v3825 = vunpack.c.0.s8 %v3824
        %v3826 = vlaneseq
        %v3827 = vshrl.u32 %v3826, 7
        %v3828 = vsub.s32 %v3825, %v3827
        %v3829 = vrot.slane %v3815, %v3828
        %v3830 = vcombine.low %v3807, %v3822
        %v3831 = vcombine.high %v3807, %v3822
        %v3833 = vunpack.c.l.s4 1934713408
        %v3834 = vunpack.c.0.s8 %v3833
        %v3835 = vlaneseq
        %v3836 = vshrl.u32 %v3835, 7
        %v3837 = vsub.s32 %v3834, %v3836
        %v3838 = vrot.slane %v3830, %v3837
        %v3840 = vunpack.c.l.s4 1934713408
        %v3841 = vunpack.c.0.s8 %v3840
        %v3842 = vlaneseq
        %v3843 = vshrl.u32 %v3842, 7
        %v3844 = vsub.s32 %v3841, %v3843
        %v3845 = vrot.slane %v3831, %v3844
        %v3846 = vcombine.low %v3814, %v3829
        %v3847 = vcombine.high %v3814, %v3829
        %v3849 = vunpack.c.l.s4 1934713408
        %v3850 = vunpack.c.0.s8 %v3849
        %v3851 = vlaneseq
        %v3852 = vshrl.u32 %v3851, 7
        %v3853 = vsub.s32 %v3850, %v3852
        %v3854 = vrot.slane %v3846, %v3853
        %v3856 = vunpack.c.l.s4 1934713408
        %v3857 = vunpack.c.0.s8 %v3856
        %v3858 = vlaneseq
        %v3859 = vshrl.u32 %v3858, 7
        %v3860 = vsub.s32 %v3857, %v3859
        %v3861 = vrot.slane %v3847, %v3860
        %v3862 = vcombine.high %v3838, 0.0
        %v3863 = vcombine.high %v3845, 0.0
        %v3864 = vcombine.high %v3854, 0.0
        %v3865 = vcombine.high %v3861, 0.0
        %v3866 = vcombine.high %v883, 0.0
        %v3868 = vunpack.c.l.s4 1983009808
        %v3869 = vunpack.c.0.s8 %v3868
        %v3870 = vlaneseq
        %v3871 = vshrl.u32 %v3870, 7
        %v3872 = vsub.s32 %v3869, %v3871
        %v3873 = vrot.slane %v883, %v3872
        %v3875 = vunpack.c.l.s4 1983009808
        %v3876 = vunpack.c.0.s8 %v3875
        %v3877 = vlaneseq
        %v3878 = vshrl.u32 %v3877, 7
        %v3879 = vsub.s32 %v3876, %v3878
        %v3880 = vrot.slane %v3866, %v3879
        %v3881 = vcombine.high %v885, 0.0
        %v3883 = vunpack.c.l.s4 1983009808
        %v3884 = vunpack.c.0.s8 %v3883
        %v3885 = vlaneseq
        %v3886 = vshrl.u32 %v3885, 7
        %v3887 = vsub.s32 %v3884, %v3886
        %v3888 = vrot.slane %v885, %v3887
        %v3890 = vunpack.c.l.s4 1983009808
        %v3891 = vunpack.c.0.s8 %v3890
        %v3892 = vlaneseq
        %v3893 = vshrl.u32 %v3892, 7
        %v3894 = vsub.s32 %v3891, %v3893
        %v3895 = vrot.slane %v3881, %v3894
        %v3896 = vcombine.low %v3873, %v3888
        %v3897 = vcombine.high %v3873, %v3888
        %v3899 = vunpack.c.l.s4 1934713408
        %v3900 = vunpack.c.0.s8 %v3899
        %v3901 = vlaneseq
        %v3902 = vshrl.u32 %v3901, 7
        %v3903 = vsub.s32 %v3900, %v3902
        %v3904 = vrot.slane %v3896, %v3903
        %v3906 = vunpack.c.l.s4 1934713408
        %v3907 = vunpack.c.0.s8 %v3906
        %v3908 = vlaneseq
        %v3909 = vshrl.u32 %v3908, 7
        %v3910 = vsub.s32 %v3907, %v3909
        %v3911 = vrot.slane %v3897, %v3910
        %v3912 = vcombine.low %v3880, %v3895
        %v3913 = vcombine.high %v3880, %v3895
        %v3915 = vunpack.c.l.s4 1934713408
        %v3916 = vunpack.c.0.s8 %v3915
        %v3917 = vlaneseq
        %v3918 = vshrl.u32 %v3917, 7
        %v3919 = vsub.s32 %v3916, %v3918
        %v3920 = vrot.slane %v3912, %v3919
        %v3922 = vunpack.c.l.s4 1934713408
        %v3923 = vunpack.c.0.s8 %v3922
        %v3924 = vlaneseq
        %v3925 = vshrl.u32 %v3924, 7
        %v3926 = vsub.s32 %v3923, %v3925
        %v3927 = vrot.slane %v3913, %v3926
        %v3928 = vcombine.high %v3904, 0.0
        %v3929 = vcombine.high %v3911, 0.0
        %v3930 = vcombine.high %v3920, 0.0
        %v3931 = vcombine.high %v3927, 0.0
        %v3932 = vcombine.high %v889, 0.0
        %v3934 = vunpack.c.l.s4 1983009808
        %v3935 = vunpack.c.0.s8 %v3934
        %v3936 = vlaneseq
        %v3937 = vshrl.u32 %v3936, 7
        %v3938 = vsub.s32 %v3935, %v3937
        %v3939 = vrot.slane %v889, %v3938
        %v3941 = vunpack.c.l.s4 1983009808
        %v3942 = vunpack.c.0.s8 %v3941
        %v3943 = vlaneseq
        %v3944 = vshrl.u32 %v3943, 7
        %v3945 = vsub.s32 %v3942, %v3944
        %v3946 = vrot.slane %v3932, %v3945
        %v3947 = vcombine.high %v891, 0.0
        %v3949 = vunpack.c.l.s4 1983009808
        %v3950 = vunpack.c.0.s8 %v3949
        %v3951 = vlaneseq
        %v3952 = vshrl.u32 %v3951, 7
        %v3953 = vsub.s32 %v3950, %v3952
        %v3954 = vrot.slane %v891, %v3953
        %v3956 = vunpack.c.l.s4 1983009808
        %v3957 = vunpack.c.0.s8 %v3956
        %v3958 = vlaneseq
        %v3959 = vshrl.u32 %v3958, 7
        %v3960 = vsub.s32 %v3957, %v3959
        %v3961 = vrot.slane %v3947, %v3960
        %v3962 = vcombine.low %v3939, %v3954
        %v3963 = vcombine.high %v3939, %v3954
        %v3965 = vunpack.c.l.s4 1934713408
        %v3966 = vunpack.c.0.s8 %v3965
        %v3967 = vlaneseq
        %v3968 = vshrl.u32 %v3967, 7
        %v3969 = vsub.s32 %v3966, %v3968
        %v3970 = vrot.slane %v3962, %v3969
        %v3972 = vunpack.c.l.s4 1934713408
        %v3973 = vunpack.c.0.s8 %v3972
        %v3974 = vlaneseq
        %v3975 = vshrl.u32 %v3974, 7
        %v3976 = vsub.s32 %v3973, %v3975
        %v3977 = vrot.slane %v3963, %v3976
        %v3978 = vcombine.low %v3946, %v3961
        %v3979 = vcombine.high %v3946, %v3961
        %v3981 = vunpack.c.l.s4 1934713408
        %v3982 = vunpack.c.0.s8 %v3981
        %v3983 = vlaneseq
        %v3984 = vshrl.u32 %v3983, 7
        %v3985 = vsub.s32 %v3982, %v3984
        %v3986 = vrot.slane %v3978, %v3985
        %v3988 = vunpack.c.l.s4 1934713408
        %v3989 = vunpack.c.0.s8 %v3988
        %v3990 = vlaneseq
        %v3991 = vshrl.u32 %v3990, 7
        %v3992 = vsub.s32 %v3989, %v3991
        %v3993 = vrot.slane %v3979, %v3992
        %v3994 = vcombine.high %v3970, 0.0
        %v3995 = vcombine.high %v3977, 0.0
        %v3996 = vcombine.high %v3986, 0.0
        %v3997 = vcombine.high %v3993, 0.0
        %v3998 = vcombine.low %v2980, %v2987
        %v4000 = vunpack.c.l.s4 1983009808
        %v4001 = vunpack.c.0.s8 %v4000
        %v4002 = vlaneseq
        %v4003 = vshrl.u32 %v4002, 7
        %v4004 = vsub.s32 %v4001, %v4003
        %v4005 = vrot.slane %v3998, %v4004
        %v4006 = vcombine.low %v3004, %v3005
        %v4008 = vunpack.c.l.s4 1983009808
        %v4009 = vunpack.c.0.s8 %v4008
        %v4010 = vlaneseq
        %v4011 = vshrl.u32 %v4010, 7
        %v4012 = vsub.s32 %v4009, %v4011
        %v4013 = vrot.slane %v4006, %v4012
        %v4014 = vcombine.low %v2996, %v3003
        %v4016 = vunpack.c.l.s4 1983009808
        %v4017 = vunpack.c.0.s8 %v4016
        %v4018 = vlaneseq
        %v4019 = vshrl.u32 %v4018, 7
        %v4020 = vsub.s32 %v4017, %v4019
        %v4021 = vrot.slane %v4014, %v4020
        %v4022 = vcombine.low %v3006, %v3007
        %v4024 = vunpack.c.l.s4 1983009808
        %v4025 = vunpack.c.0.s8 %v4024
        %v4026 = vlaneseq
        %v4027 = vshrl.u32 %v4026, 7
        %v4028 = vsub.s32 %v4025, %v4027
        %v4029 = vrot.slane %v4022, %v4028
        %v4030 = vcombine.low %v4005, %v4013
        %v4032 = vunpack.c.l.s4 1934713408
        %v4033 = vunpack.c.0.s8 %v4032
        %v4034 = vlaneseq
        %v4035 = vshrl.u32 %v4034, 7
        %v4036 = vsub.s32 %v4033, %v4035
        %v4037 = vrot.slane %v4030, %v4036
        %v4038 = vcombine.low %v4021, %v4029
        %v4040 = vunpack.c.l.s4 1934713408
        %v4041 = vunpack.c.0.s8 %v4040
        %v4042 = vlaneseq
        %v4043 = vshrl.u32 %v4042, 7
        %v4044 = vsub.s32 %v4041, %v4043
        %v4045 = vrot.slane %v4038, %v4044
        %v4046 = vcombine.low %v4037, %v4045
        %v4047 = vcombine.high %v4037, %v4045
        %v4048 = vcombine.low %v3046, %v3053
        %v4050 = vunpack.c.l.s4 1983009808
        %v4051 = vunpack.c.0.s8 %v4050
        %v4052 = vlaneseq
        %v4053 = vshrl.u32 %v4052, 7
        %v4054 = vsub.s32 %v4051, %v4053
        %v4055 = vrot.slane %v4048, %v4054
        %v4056 = vcombine.low %v3070, %v3071
        %v4058 = vunpack.c.l.s4 1983009808
        %v4059 = vunpack.c.0.s8 %v4058
        %v4060 = vlaneseq
        %v4061 = vshrl.u32 %v4060, 7
        %v4062 = vsub.s32 %v4059, %v4061
        %v4063 = vrot.slane %v4056, %v4062
        %v4064 = vcombine.low %v3062, %v3069
        %v4066 = vunpack.c.l.s4 1983009808
        %v4067 = vunpack.c.0.s8 %v4066
        %v4068 = vlaneseq
        %v4069 = vshrl.u32 %v4068, 7
        %v4070 = vsub.s32 %v4067, %v4069
        %v4071 = vrot.slane %v4064, %v4070
        %v4072 = vcombine.low %v3072, %v3073
        %v4074 = vunpack.c.l.s4 1983009808
        %v4075 = vunpack.c.0.s8 %v4074
        %v4076 = vlaneseq
        %v4077 = vshrl.u32 %v4076, 7
        %v4078 = vsub.s32 %v4075, %v4077
        %v4079 = vrot.slane %v4072, %v4078
        %v4080 = vcombine.low %v4055, %v4063
        %v4082 = vunpack.c.l.s4 1934713408
        %v4083 = vunpack.c.0.s8 %v4082
        %v4084 = vlaneseq
        %v4085 = vshrl.u32 %v4084, 7
        %v4086 = vsub.s32 %v4083, %v4085
        %v4087 = vrot.slane %v4080, %v4086
        %v4088 = vcombine.low %v4071, %v4079
        %v4090 = vunpack.c.l.s4 1934713408
        %v4091 = vunpack.c.0.s8 %v4090
        %v4092 = vlaneseq
        %v4093 = vshrl.u32 %v4092, 7
        %v4094 = vsub.s32 %v4091, %v4093
        %v4095 = vrot.slane %v4088, %v4094
        %v4096 = vcombine.low %v4087, %v4095
        %v4097 = vcombine.high %v4087, %v4095
        %v4098 = vcombine.low %v3112, %v3119
        %v4100 = vunpack.c.l.s4 1983009808
        %v4101 = vunpack.c.0.s8 %v4100
        %v4102 = vlaneseq
        %v4103 = vshrl.u32 %v4102, 7
        %v4104 = vsub.s32 %v4101, %v4103
        %v4105 = vrot.slane %v4098, %v4104
        %v4106 = vcombine.low %v3136, %v3137
        %v4108 = vunpack.c.l.s4 1983009808
        %v4109 = vunpack.c.0.s8 %v4108
        %v4110 = vlaneseq
        %v4111 = vshrl.u32 %v4110, 7
        %v4112 = vsub.s32 %v4109, %v4111
        %v4113 = vrot.slane %v4106, %v4112
        %v4114 = vcombine.low %v3128, %v3135
        %v4116 = vunpack.c.l.s4 1983009808
        %v4117 = vunpack.c.0.s8 %v4116
        %v4118 = vlaneseq
        %v4119 = vshrl.u32 %v4118, 7
        %v4120 = vsub.s32 %v4117, %v4119
        %v4121 = vrot.slane %v4114, %v4120
        %v4122 = vcombine.low %v3138, %v3139
        %v4124 = vunpack.c.l.s4 1983009808
        %v4125 = vunpack.c.0.s8 %v4124
        %v4126 = vlaneseq
        %v4127 = vshrl.u32 %v4126, 7
        %v4128 = vsub.s32 %v4125, %v4127
        %v4129 = vrot.slane %v4122, %v4128
        %v4130 = vcombine.low %v4105, %v4113
        %v4132 = vunpack.c.l.s4 1934713408
        %v4133 = vunpack.c.0.s8 %v4132
        %v4134 = vlaneseq
        %v4135 = vshrl.u32 %v4134, 7
        %v4136 = vsub.s32 %v4133, %v4135
        %v4137 = vrot.slane %v4130, %v4136
        %v4138 = vcombine.low %v4121, %v4129
        %v4140 = vunpack.c.l.s4 1934713408
        %v4141 = vunpack.c.0.s8 %v4140
        %v4142 = vlaneseq
        %v4143 = vshrl.u32 %v4142, 7
        %v4144 = vsub.s32 %v4141, %v4143
        %v4145 = vrot.slane %v4138, %v4144
        %v4146 = vcombine.low %v4137, %v4145
        %v4147 = vcombine.high %v4137, %v4145
        %v4148 = vcombine.low %v3178, %v3185
        %v4150 = vunpack.c.l.s4 1983009808
        %v4151 = vunpack.c.0.s8 %v4150
        %v4152 = vlaneseq
        %v4153 = vshrl.u32 %v4152, 7
        %v4154 = vsub.s32 %v4151, %v4153
        %v4155 = vrot.slane %v4148, %v4154
        %v4156 = vcombine.low %v3202, %v3203
        %v4158 = vunpack.c.l.s4 1983009808
        %v4159 = vunpack.c.0.s8 %v4158
        %v4160 = vlaneseq
        %v4161 = vshrl.u32 %v4160, 7
        %v4162 = vsub.s32 %v4159, %v4161
        %v4163 = vrot.slane %v4156, %v4162
        %v4164 = vcombine.low %v3194, %v3201
        %v4166 = vunpack.c.l.s4 1983009808
        %v4167 = vunpack.c.0.s8 %v4166
        %v4168 = vlaneseq
        %v4169 = vshrl.u32 %v4168, 7
        %v4170 = vsub.s32 %v4167, %v4169
        %v4171 = vrot.slane %v4164, %v4170
        %v4172 = vcombine.low %v3204, %v3205
        %v4174 = vunpack.c.l.s4 1983009808
        %v4175 = vunpack.c.0.s8 %v4174
        %v4176 = vlaneseq
        %v4177 = vshrl.u32 %v4176, 7
        %v4178 = vsub.s32 %v4175, %v4177
        %v4179 = vrot.slane %v4172, %v4178
        %v4180 = vcombine.low %v4155, %v4163
        %v4182 = vunpack.c.l.s4 1934713408
        %v4183 = vunpack.c.0.s8 %v4182
        %v4184 = vlaneseq
        %v4185 = vshrl.u32 %v4184, 7
        %v4186 = vsub.s32 %v4183, %v4185
        %v4187 = vrot.slane %v4180, %v4186
        %v4188 = vcombine.low %v4171, %v4179
        %v4190 = vunpack.c.l.s4 1934713408
        %v4191 = vunpack.c.0.s8 %v4190
        %v4192 = vlaneseq
        %v4193 = vshrl.u32 %v4192, 7
        %v4194 = vsub.s32 %v4191, %v4193
        %v4195 = vrot.slane %v4188, %v4194
        %v4196 = vcombine.low %v4187, %v4195
        %v4197 = vcombine.high %v4187, %v4195
        %v4198 = vcombine.low %v3244, %v3251
        %v4200 = vunpack.c.l.s4 1983009808
        %v4201 = vunpack.c.0.s8 %v4200
        %v4202 = vlaneseq
        %v4203 = vshrl.u32 %v4202, 7
        %v4204 = vsub.s32 %v4201, %v4203
        %v4205 = vrot.slane %v4198, %v4204
        %v4206 = vcombine.low %v3268, %v3269
        %v4208 = vunpack.c.l.s4 1983009808
        %v4209 = vunpack.c.0.s8 %v4208
        %v4210 = vlaneseq
        %v4211 = vshrl.u32 %v4210, 7
        %v4212 = vsub.s32 %v4209, %v4211
        %v4213 = vrot.slane %v4206, %v4212
        %v4214 = vcombine.low %v3260, %v3267
        %v4216 = vunpack.c.l.s4 1983009808
        %v4217 = vunpack.c.0.s8 %v4216
        %v4218 = vlaneseq
        %v4219 = vshrl.u32 %v4218, 7
        %v4220 = vsub.s32 %v4217, %v4219
        %v4221 = vrot.slane %v4214, %v4220
        %v4222 = vcombine.low %v3270, %v3271
        %v4224 = vunpack.c.l.s4 1983009808
        %v4225 = vunpack.c.0.s8 %v4224
        %v4226 = vlaneseq
        %v4227 = vshrl.u32 %v4226, 7
        %v4228 = vsub.s32 %v4225, %v4227
        %v4229 = vrot.slane %v4222, %v4228
        %v4230 = vcombine.low %v4205, %v4213
        %v4232 = vunpack.c.l.s4 1934713408
        %v4233 = vunpack.c.0.s8 %v4232
        %v4234 = vlaneseq
        %v4235 = vshrl.u32 %v4234, 7
        %v4236 = vsub.s32 %v4233, %v4235
        %v4237 = vrot.slane %v4230, %v4236
        %v4238 = vcombine.low %v4221, %v4229
        %v4240 = vunpack.c.l.s4 1934713408
        %v4241 = vunpack.c.0.s8 %v4240
        %v4242 = vlaneseq
        %v4243 = vshrl.u32 %v4242, 7
        %v4244 = vsub.s32 %v4241, %v4243
        %v4245 = vrot.slane %v4238, %v4244
        %v4246 = vcombine.low %v4237, %v4245
        %v4247 = vcombine.high %v4237, %v4245
        %v4248 = vcombine.low %v3310, %v3317
        %v4250 = vunpack.c.l.s4 1983009808
        %v4251 = vunpack.c.0.s8 %v4250
        %v4252 = vlaneseq
        %v4253 = vshrl.u32 %v4252, 7
        %v4254 = vsub.s32 %v4251, %v4253
        %v4255 = vrot.slane %v4248, %v4254
        %v4256 = vcombine.low %v3334, %v3335
        %v4258 = vunpack.c.l.s4 1983009808
        %v4259 = vunpack.c.0.s8 %v4258
        %v4260 = vlaneseq
        %v4261 = vshrl.u32 %v4260, 7
        %v4262 = vsub.s32 %v4259, %v4261
        %v4263 = vrot.slane %v4256, %v4262
        %v4264 = vcombine.low %v3326, %v3333
        %v4266 = vunpack.c.l.s4 1983009808
        %v4267 = vunpack.c.0.s8 %v4266
        %v4268 = vlaneseq
        %v4269 = vshrl.u32 %v4268, 7
        %v4270 = vsub.s32 %v4267, %v4269
        %v4271 = vrot.slane %v4264, %v4270
        %v4272 = vcombine.low %v3336, %v3337
        %v4274 = vunpack.c.l.s4 1983009808
        %v4275 = vunpack.c.0.s8 %v4274
        %v4276 = vlaneseq
        %v4277 = vshrl.u32 %v4276, 7
        %v4278 = vsub.s32 %v4275, %v4277
        %v4279 = vrot.slane %v4272, %v4278
        %v4280 = vcombine.low %v4255, %v4263
        %v4282 = vunpack.c.l.s4 1934713408
        %v4283 = vunpack.c.0.s8 %v4282
        %v4284 = vlaneseq
        %v4285 = vshrl.u32 %v4284, 7
        %v4286 = vsub.s32 %v4283, %v4285
        %v4287 = vrot.slane %v4280, %v4286
        %v4288 = vcombine.low %v4271, %v4279
        %v4290 = vunpack.c.l.s4 1934713408
        %v4291 = vunpack.c.0.s8 %v4290
        %v4292 = vlaneseq
        %v4293 = vshrl.u32 %v4292, 7
        %v4294 = vsub.s32 %v4291, %v4293
        %v4295 = vrot.slane %v4288, %v4294
        %v4296 = vcombine.low %v4287, %v4295
        %v4297 = vcombine.high %v4287, %v4295
        %v4298 = vcombine.low %v3376, %v3383
        %v4300 = vunpack.c.l.s4 1983009808
        %v4301 = vunpack.c.0.s8 %v4300
        %v4302 = vlaneseq
        %v4303 = vshrl.u32 %v4302, 7
        %v4304 = vsub.s32 %v4301, %v4303
        %v4305 = vrot.slane %v4298, %v4304
        %v4306 = vcombine.low %v3400, %v3401
        %v4308 = vunpack.c.l.s4 1983009808
        %v4309 = vunpack.c.0.s8 %v4308
        %v4310 = vlaneseq
        %v4311 = vshrl.u32 %v4310, 7
        %v4312 = vsub.s32 %v4309, %v4311
        %v4313 = vrot.slane %v4306, %v4312
        %v4314 = vcombine.low %v3392, %v3399
        %v4316 = vunpack.c.l.s4 1983009808
        %v4317 = vunpack.c.0.s8 %v4316
        %v4318 = vlaneseq
        %v4319 = vshrl.u32 %v4318, 7
        %v4320 = vsub.s32 %v4317, %v4319
        %v4321 = vrot.slane %v4314, %v4320
        %v4322 = vcombine.low %v3402, %v3403
        %v4324 = vunpack.c.l.s4 1983009808
        %v4325 = vunpack.c.0.s8 %v4324
        %v4326 = vlaneseq
        %v4327 = vshrl.u32 %v4326, 7
        %v4328 = vsub.s32 %v4325, %v4327
        %v4329 = vrot.slane %v4322, %v4328
        %v4330 = vcombine.low %v4305, %v4313
        %v4332 = vunpack.c.l.s4 1934713408
        %v4333 = vunpack.c.0.s8 %v4332
        %v4334 = vlaneseq
        %v4335 = vshrl.u32 %v4334, 7
        %v4336 = vsub.s32 %v4333, %v4335
        %v4337 = vrot.slane %v4330, %v4336
        %v4338 = vcombine.low %v4321, %v4329
        %v4340 = vunpack.c.l.s4 1934713408
        %v4341 = vunpack.c.0.s8 %v4340
        %v4342 = vlaneseq
        %v4343 = vshrl.u32 %v4342, 7
        %v4344 = vsub.s32 %v4341, %v4343
        %v4345 = vrot.slane %v4338, %v4344
        %v4346 = vcombine.low %v4337, %v4345
        %v4347 = vcombine.high %v4337, %v4345
        %v4348 = vcombine.low %v3442, %v3449
        %v4350 = vunpack.c.l.s4 1983009808
        %v4351 = vunpack.c.0.s8 %v4350
        %v4352 = vlaneseq
        %v4353 = vshrl.u32 %v4352, 7
        %v4354 = vsub.s32 %v4351, %v4353
        %v4355 = vrot.slane %v4348, %v4354
        %v4356 = vcombine.low %v3466, %v3467
        %v4358 = vunpack.c.l.s4 1983009808
        %v4359 = vunpack.c.0.s8 %v4358
        %v4360 = vlaneseq
        %v4361 = vshrl.u32 %v4360, 7
        %v4362 = vsub.s32 %v4359, %v4361
        %v4363 = vrot.slane %v4356, %v4362
        %v4364 = vcombine.low %v3458, %v3465
        %v4366 = vunpack.c.l.s4 1983009808
        %v4367 = vunpack.c.0.s8 %v4366
        %v4368 = vlaneseq
        %v4369 = vshrl.u32 %v4368, 7
        %v4370 = vsub.s32 %v4367, %v4369
        %v4371 = vrot.slane %v4364, %v4370
        %v4372 = vcombine.low %v3468, %v3469
        %v4374 = vunpack.c.l.s4 1983009808
        %v4375 = vunpack.c.0.s8 %v4374
        %v4376 = vlaneseq
        %v4377 = vshrl.u32 %v4376, 7
        %v4378 = vsub.s32 %v4375, %v4377
        %v4379 = vrot.slane %v4372, %v4378
        %v4380 = vcombine.low %v4355, %v4363
        %v4382 = vunpack.c.l.s4 1934713408
        %v4383 = vunpack.c.0.s8 %v4382
        %v4384 = vlaneseq
        %v4385 = vshrl.u32 %v4384, 7
        %v4386 = vsub.s32 %v4383, %v4385
        %v4387 = vrot.slane %v4380, %v4386
        %v4388 = vcombine.low %v4371, %v4379
        %v4390 = vunpack.c.l.s4 1934713408
        %v4391 = vunpack.c.0.s8 %v4390
        %v4392 = vlaneseq
        %v4393 = vshrl.u32 %v4392, 7
        %v4394 = vsub.s32 %v4391, %v4393
        %v4395 = vrot.slane %v4388, %v4394
        %v4396 = vcombine.low %v4387, %v4395
        %v4397 = vcombine.high %v4387, %v4395
        %v4398 = vcombine.low %v3508, %v3515
        %v4400 = vunpack.c.l.s4 1983009808
        %v4401 = vunpack.c.0.s8 %v4400
        %v4402 = vlaneseq
        %v4403 = vshrl.u32 %v4402, 7
        %v4404 = vsub.s32 %v4401, %v4403
        %v4405 = vrot.slane %v4398, %v4404
        %v4406 = vcombine.low %v3532, %v3533
        %v4408 = vunpack.c.l.s4 1983009808
        %v4409 = vunpack.c.0.s8 %v4408
        %v4410 = vlaneseq
        %v4411 = vshrl.u32 %v4410, 7
        %v4412 = vsub.s32 %v4409, %v4411
        %v4413 = vrot.slane %v4406, %v4412
        %v4414 = vcombine.low %v3524, %v3531
        %v4416 = vunpack.c.l.s4 1983009808
        %v4417 = vunpack.c.0.s8 %v4416
        %v4418 = vlaneseq
        %v4419 = vshrl.u32 %v4418, 7
        %v4420 = vsub.s32 %v4417, %v4419
        %v4421 = vrot.slane %v4414, %v4420
        %v4422 = vcombine.low %v3534, %v3535
        %v4424 = vunpack.c.l.s4 1983009808
        %v4425 = vunpack.c.0.s8 %v4424
        %v4426 = vlaneseq
        %v4427 = vshrl.u32 %v4426, 7
        %v4428 = vsub.s32 %v4425, %v4427
        %v4429 = vrot.slane %v4422, %v4428
        %v4430 = vcombine.low %v4405, %v4413
        %v4432 = vunpack.c.l.s4 1934713408
        %v4433 = vunpack.c.0.s8 %v4432
        %v4434 = vlaneseq
        %v4435 = vshrl.u32 %v4434, 7
        %v4436 = vsub.s32 %v4433, %v4435
        %v4437 = vrot.slane %v4430, %v4436
        %v4438 = vcombine.low %v4421, %v4429
        %v4440 = vunpack.c.l.s4 1934713408
        %v4441 = vunpack.c.0.s8 %v4440
        %v4442 = vlaneseq
        %v4443 = vshrl.u32 %v4442, 7
        %v4444 = vsub.s32 %v4441, %v4443
        %v4445 = vrot.slane %v4438, %v4444
        %v4446 = vcombine.low %v4437, %v4445
        %v4447 = vcombine.high %v4437, %v4445
        %v4448 = vcombine.low %v3574, %v3581
        %v4450 = vunpack.c.l.s4 1983009808
        %v4451 = vunpack.c.0.s8 %v4450
        %v4452 = vlaneseq
        %v4453 = vshrl.u32 %v4452, 7
        %v4454 = vsub.s32 %v4451, %v4453
        %v4455 = vrot.slane %v4448, %v4454
        %v4456 = vcombine.low %v3598, %v3599
        %v4458 = vunpack.c.l.s4 1983009808
        %v4459 = vunpack.c.0.s8 %v4458
        %v4460 = vlaneseq
        %v4461 = vshrl.u32 %v4460, 7
        %v4462 = vsub.s32 %v4459, %v4461
        %v4463 = vrot.slane %v4456, %v4462
        %v4464 = vcombine.low %v3590, %v3597
        %v4466 = vunpack.c.l.s4 1983009808
        %v4467 = vunpack.c.0.s8 %v4466
        %v4468 = vlaneseq
        %v4469 = vshrl.u32 %v4468, 7
        %v4470 = vsub.s32 %v4467, %v4469
        %v4471 = vrot.slane %v4464, %v4470
        %v4472 = vcombine.low %v3600, %v3601
        %v4474 = vunpack.c.l.s4 1983009808
        %v4475 = vunpack.c.0.s8 %v4474
        %v4476 = vlaneseq
        %v4477 = vshrl.u32 %v4476, 7
        %v4478 = vsub.s32 %v4475, %v4477
        %v4479 = vrot.slane %v4472, %v4478
        %v4480 = vcombine.low %v4455, %v4463
        %v4482 = vunpack.c.l.s4 1934713408
        %v4483 = vunpack.c.0.s8 %v4482
        %v4484 = vlaneseq
        %v4485 = vshrl.u32 %v4484, 7
        %v4486 = vsub.s32 %v4483, %v4485
        %v4487 = vrot.slane %v4480, %v4486
        %v4488 = vcombine.low %v4471, %v4479
        %v4490 = vunpack.c.l.s4 1934713408
        %v4491 = vunpack.c.0.s8 %v4490
        %v4492 = vlaneseq
        %v4493 = vshrl.u32 %v4492, 7
        %v4494 = vsub.s32 %v4491, %v4493
        %v4495 = vrot.slane %v4488, %v4494
        %v4496 = vcombine.low %v4487, %v4495
        %v4497 = vcombine.high %v4487, %v4495
        %v4498 = vcombine.low %v3640, %v3647
        %v4500 = vunpack.c.l.s4 1983009808
        %v4501 = vunpack.c.0.s8 %v4500
        %v4502 = vlaneseq
        %v4503 = vshrl.u32 %v4502, 7
        %v4504 = vsub.s32 %v4501, %v4503
        %v4505 = vrot.slane %v4498, %v4504
        %v4506 = vcombine.low %v3664, %v3665
        %v4508 = vunpack.c.l.s4 1983009808
        %v4509 = vunpack.c.0.s8 %v4508
        %v4510 = vlaneseq
        %v4511 = vshrl.u32 %v4510, 7
        %v4512 = vsub.s32 %v4509, %v4511
        %v4513 = vrot.slane %v4506, %v4512
        %v4514 = vcombine.low %v3656, %v3663
        %v4516 = vunpack.c.l.s4 1983009808
        %v4517 = vunpack.c.0.s8 %v4516
        %v4518 = vlaneseq
        %v4519 = vshrl.u32 %v4518, 7
        %v4520 = vsub.s32 %v4517, %v4519
        %v4521 = vrot.slane %v4514, %v4520
        %v4522 = vcombine.low %v3666, %v3667
        %v4524 = vunpack.c.l.s4 1983009808
        %v4525 = vunpack.c.0.s8 %v4524
        %v4526 = vlaneseq
        %v4527 = vshrl.u32 %v4526, 7
        %v4528 = vsub.s32 %v4525, %v4527
        %v4529 = vrot.slane %v4522, %v4528
        %v4530 = vcombine.low %v4505, %v4513
        %v4532 = vunpack.c.l.s4 1934713408
        %v4533 = vunpack.c.0.s8 %v4532
        %v4534 = vlaneseq
        %v4535 = vshrl.u32 %v4534, 7
        %v4536 = vsub.s32 %v4533, %v4535
        %v4537 = vrot.slane %v4530, %v4536
        %v4538 = vcombine.low %v4521, %v4529
        %v4540 = vunpack.c.l.s4 1934713408
        %v4541 = vunpack.c.0.s8 %v4540
        %v4542 = vlaneseq
        %v4543 = vshrl.u32 %v4542, 7
        %v4544 = vsub.s32 %v4541, %v4543
        %v4545 = vrot.slane %v4538, %v4544
        %v4546 = vcombine.low %v4537, %v4545
        %v4547 = vcombine.high %v4537, %v4545
        %v4548 = vcombine.low %v3706, %v3713
        %v4550 = vunpack.c.l.s4 1983009808
        %v4551 = vunpack.c.0.s8 %v4550
        %v4552 = vlaneseq
        %v4553 = vshrl.u32 %v4552, 7
        %v4554 = vsub.s32 %v4551, %v4553
        %v4555 = vrot.slane %v4548, %v4554
        %v4556 = vcombine.low %v3730, %v3731
        %v4558 = vunpack.c.l.s4 1983009808
        %v4559 = vunpack.c.0.s8 %v4558
        %v4560 = vlaneseq
        %v4561 = vshrl.u32 %v4560, 7
        %v4562 = vsub.s32 %v4559, %v4561
        %v4563 = vrot.slane %v4556, %v4562
        %v4564 = vcombine.low %v3722, %v3729
        %v4566 = vunpack.c.l.s4 1983009808
        %v4567 = vunpack.c.0.s8 %v4566
        %v4568 = vlaneseq
        %v4569 = vshrl.u32 %v4568, 7
        %v4570 = vsub.s32 %v4567, %v4569
        %v4571 = vrot.slane %v4564, %v4570
        %v4572 = vcombine.low %v3732, %v3733
        %v4574 = vunpack.c.l.s4 1983009808
        %v4575 = vunpack.c.0.s8 %v4574
        %v4576 = vlaneseq
        %v4577 = vshrl.u32 %v4576, 7
        %v4578 = vsub.s32 %v4575, %v4577
        %v4579 = vrot.slane %v4572, %v4578
        %v4580 = vcombine.low %v4555, %v4563
        %v4582 = vunpack.c.l.s4 1934713408
        %v4583 = vunpack.c.0.s8 %v4582
        %v4584 = vlaneseq
        %v4585 = vshrl.u32 %v4584, 7
        %v4586 = vsub.s32 %v4583, %v4585
        %v4587 = vrot.slane %v4580, %v4586
        %v4588 = vcombine.low %v4571, %v4579
        %v4590 = vunpack.c.l.s4 1934713408
        %v4591 = vunpack.c.0.s8 %v4590
        %v4592 = vlaneseq
        %v4593 = vshrl.u32 %v4592, 7
        %v4594 = vsub.s32 %v4591, %v4593
        %v4595 = vrot.slane %v4588, %v4594
        %v4596 = vcombine.low %v4587, %v4595
        %v4597 = vcombine.high %v4587, %v4595
        %v4598 = vcombine.low %v3772, %v3779
        %v4600 = vunpack.c.l.s4 1983009808
        %v4601 = vunpack.c.0.s8 %v4600
        %v4602 = vlaneseq
        %v4603 = vshrl.u32 %v4602, 7
        %v4604 = vsub.s32 %v4601, %v4603
        %v4605 = vrot.slane %v4598, %v4604
        %v4606 = vcombine.low %v3796, %v3797
        %v4608 = vunpack.c.l.s4 1983009808
        %v4609 = vunpack.c.0.s8 %v4608
        %v4610 = vlaneseq
        %v4611 = vshrl.u32 %v4610, 7
        %v4612 = vsub.s32 %v4609, %v4611
        %v4613 = vrot.slane %v4606, %v4612
        %v4614 = vcombine.low %v3788, %v3795
        %v4616 = vunpack.c.l.s4 1983009808
        %v4617 = vunpack.c.0.s8 %v4616
        %v4618 = vlaneseq
        %v4619 = vshrl.u32 %v4618, 7
        %v4620 = vsub.s32 %v4617, %v4619
        %v4621 = vrot.slane %v4614, %v4620
        %v4622 = vcombine.low %v3798, %v3799
        %v4624 = vunpack.c.l.s4 1983009808
        %v4625 = vunpack.c.0.s8 %v4624
        %v4626 = vlaneseq
        %v4627 = vshrl.u32 %v4626, 7
        %v4628 = vsub.s32 %v4625, %v4627
        %v4629 = vrot.slane %v4622, %v4628
        %v4630 = vcombine.low %v4605, %v4613
        %v4632 = vunpack.c.l.s4 1934713408
        %v4633 = vunpack.c.0.s8 %v4632
        %v4634 = vlaneseq
        %v4635 = vshrl.u32 %v4634, 7
        %v4636 = vsub.s32 %v4633, %v4635
        %v4637 = vrot.slane %v4630, %v4636
        %v4638 = vcombine.low %v4621, %v4629
        %v4640 = vunpack.c.l.s4 1934713408
        %v4641 = vunpack.c.0.s8 %v4640
        %v4642 = vlaneseq
        %v4643 = vshrl.u32 %v4642, 7
        %v4644 = vsub.s32 %v4641, %v4643
        %v4645 = vrot.slane %v4638, %v4644
        %v4646 = vcombine.low %v4637, %v4645
        %v4647 = vcombine.high %v4637, %v4645
        %v4648 = vcombine.low %v3838, %v3845
        %v4650 = vunpack.c.l.s4 1983009808
        %v4651 = vunpack.c.0.s8 %v4650
        %v4652 = vlaneseq
        %v4653 = vshrl.u32 %v4652, 7
        %v4654 = vsub.s32 %v4651, %v4653
        %v4655 = vrot.slane %v4648, %v4654
        %v4656 = vcombine.low %v3862, %v3863
        %v4658 = vunpack.c.l.s4 1983009808
        %v4659 = vunpack.c.0.s8 %v4658
        %v4660 = vlaneseq
        %v4661 = vshrl.u32 %v4660, 7
        %v4662 = vsub.s32 %v4659, %v4661
        %v4663 = vrot.slane %v4656, %v4662
        %v4664 = vcombine.low %v3854, %v3861
        %v4666 = vunpack.c.l.s4 1983009808
        %v4667 = vunpack.c.0.s8 %v4666
        %v4668 = vlaneseq
        %v4669 = vshrl.u32 %v4668, 7
        %v4670 = vsub.s32 %v4667, %v4669
        %v4671 = vrot.slane %v4664, %v4670
        %v4672 = vcombine.low %v3864, %v3865
        %v4674 = vunpack.c.l.s4 1983009808
        %v4675 = vunpack.c.0.s8 %v4674
        %v4676 = vlaneseq
        %v4677 = vshrl.u32 %v4676, 7
        %v4678 = vsub.s32 %v4675, %v4677
        %v4679 = vrot.slane %v4672, %v4678
        %v4680 = vcombine.low %v4655, %v4663
        %v4682 = vunpack.c.l.s4 1934713408
        %v4683 = vunpack.c.0.s8 %v4682
        %v4684 = vlaneseq
        %v4685 = vshrl.u32 %v4684, 7
        %v4686 = vsub.s32 %v4683, %v4685
        %v4687 = vrot.slane %v4680, %v4686
        %v4688 = vcombine.low %v4671, %v4679
        %v4690 = vunpack.c.l.s4 1934713408
        %v4691 = vunpack.c.0.s8 %v4690
        %v4692 = vlaneseq
        %v4693 = vshrl.u32 %v4692, 7
        %v4694 = vsub.s32 %v4691, %v4693
        %v4695 = vrot.slane %v4688, %v4694
        %v4696 = vcombine.low %v4687, %v4695
        %v4697 = vcombine.high %v4687, %v4695
        %v4698 = vcombine.low %v3904, %v3911
        %v4700 = vunpack.c.l.s4 1983009808
        %v4701 = vunpack.c.0.s8 %v4700
        %v4702 = vlaneseq
        %v4703 = vshrl.u32 %v4702, 7
        %v4704 = vsub.s32 %v4701, %v4703
        %v4705 = vrot.slane %v4698, %v4704
        %v4706 = vcombine.low %v3928, %v3929
        %v4708 = vunpack.c.l.s4 1983009808
        %v4709 = vunpack.c.0.s8 %v4708
        %v4710 = vlaneseq
        %v4711 = vshrl.u32 %v4710, 7
        %v4712 = vsub.s32 %v4709, %v4711
        %v4713 = vrot.slane %v4706, %v4712
        %v4714 = vcombine.low %v3920, %v3927
        %v4716 = vunpack.c.l.s4 1983009808
        %v4717 = vunpack.c.0.s8 %v4716
        %v4718 = vlaneseq
        %v4719 = vshrl.u32 %v4718, 7
        %v4720 = vsub.s32 %v4717, %v4719
        %v4721 = vrot.slane %v4714, %v4720
        %v4722 = vcombine.low %v3930, %v3931
        %v4724 = vunpack.c.l.s4 1983009808
        %v4725 = vunpack.c.0.s8 %v4724
        %v4726 = vlaneseq
        %v4727 = vshrl.u32 %v4726, 7
        %v4728 = vsub.s32 %v4725, %v4727
        %v4729 = vrot.slane %v4722, %v4728
        %v4730 = vcombine.low %v4705, %v4713
        %v4732 = vunpack.c.l.s4 1934713408
        %v4733 = vunpack.c.0.s8 %v4732
        %v4734 = vlaneseq
        %v4735 = vshrl.u32 %v4734, 7
        %v4736 = vsub.s32 %v4733, %v4735
        %v4737 = vrot.slane %v4730, %v4736
        %v4738 = vcombine.low %v4721, %v4729
        %v4740 = vunpack.c.l.s4 1934713408
        %v4741 = vunpack.c.0.s8 %v4740
        %v4742 = vlaneseq
        %v4743 = vshrl.u32 %v4742, 7
        %v4744 = vsub.s32 %v4741, %v4743
        %v4745 = vrot.slane %v4738, %v4744
        %v4746 = vcombine.low %v4737, %v4745
        %v4747 = vcombine.high %v4737, %v4745
        %v4748 = vcombine.low %v3970, %v3977
        %v4750 = vunpack.c.l.s4 1983009808
        %v4751 = vunpack.c.0.s8 %v4750
        %v4752 = vlaneseq
        %v4753 = vshrl.u32 %v4752, 7
        %v4754 = vsub.s32 %v4751, %v4753
        %v4755 = vrot.slane %v4748, %v4754
        %v4756 = vcombine.low %v3994, %v3995
        %v4758 = vunpack.c.l.s4 1983009808
        %v4759 = vunpack.c.0.s8 %v4758
        %v4760 = vlaneseq
        %v4761 = vshrl.u32 %v4760, 7
        %v4762 = vsub.s32 %v4759, %v4761
        %v4763 = vrot.slane %v4756, %v4762
        %v4764 = vcombine.low %v3986, %v3993
        %v4766 = vunpack.c.l.s4 1983009808
        %v4767 = vunpack.c.0.s8 %v4766
        %v4768 = vlaneseq
        %v4769 = vshrl.u32 %v4768, 7
        %v4770 = vsub.s32 %v4767, %v4769
        %v4771 = vrot.slane %v4764, %v4770
        %v4772 = vcombine.low %v3996, %v3997
        %v4774 = vunpack.c.l.s4 1983009808
        %v4775 = vunpack.c.0.s8 %v4774
        %v4776 = vlaneseq
        %v4777 = vshrl.u32 %v4776, 7
        %v4778 = vsub.s32 %v4775, %v4777
        %v4779 = vrot.slane %v4772, %v4778
        %v4780 = vcombine.low %v4755, %v4763
        %v4782 = vunpack.c.l.s4 1934713408
        %v4783 = vunpack.c.0.s8 %v4782
        %v4784 = vlaneseq
        %v4785 = vshrl.u32 %v4784, 7
        %v4786 = vsub.s32 %v4783, %v4785
        %v4787 = vrot.slane %v4780, %v4786
        %v4788 = vcombine.low %v4771, %v4779
        %v4790 = vunpack.c.l.s4 1934713408
        %v4791 = vunpack.c.0.s8 %v4790
        %v4792 = vlaneseq
        %v4793 = vshrl.u32 %v4792, 7
        %v4794 = vsub.s32 %v4791, %v4793
        %v4795 = vrot.slane %v4788, %v4794
        %v4796 = vcombine.low %v4787, %v4795
        %v4797 = vcombine.high %v4787, %v4795
        %4798 = vst [vmem:[%s303] sm:$0xff] %v4046
        %4799 = vst [vmem:[%s303 + $0x8] sm:$0xff] %v4096
        %4800 = vst [vmem:[%s303 + $0x10] sm:$0xff] %v4146
        %4801 = vst [vmem:[%s303 + $0x18] sm:$0xff] %v4196
        %4802 = vst [vmem:[%s303 + $0x20] sm:$0xff] %v4246
        %4803 = vst [vmem:[%s303 + $0x28] sm:$0xff] %v4296
        %4804 = vst [vmem:[%s303 + $0x30] sm:$0xff] %v4346
        %4805 = vst [vmem:[%s303 + $0x38] sm:$0xff] %v4396
        %4806 = vst [vmem:[%s303 + $0x40] sm:$0xff] %v4446
        %4807 = vst [vmem:[%s303 + $0x48] sm:$0xff] %v4496
        %4808 = vst [vmem:[%s303 + $0x50] sm:$0xff] %v4546
        %4809 = vst [vmem:[%s303 + $0x58] sm:$0xff] %v4596
        %4810 = vst [vmem:[%s303 + $0x60] sm:$0xff] %v4646
        %4811 = vst [vmem:[%s303 + $0x68] sm:$0xff] %v4696
        %4812 = vst [vmem:[%s303 + $0x70] sm:$0xff] %v4746
        %4813 = vst [vmem:[%s303 + $0x78] sm:$0xff] %v4796
        %4814 = vst [vmem:[%s303 + $0x80] sm:$0xff] %v4047
        %4815 = vst [vmem:[%s303 + $0x88] sm:$0xff] %v4097
        %4816 = vst [vmem:[%s303 + $0x90] sm:$0xff] %v4147
        %4817 = vst [vmem:[%s303 + $0x98] sm:$0xff] %v4197
        %4818 = vst [vmem:[%s303 + $0xa0] sm:$0xff] %v4247
        %4819 = vst [vmem:[%s303 + $0xa8] sm:$0xff] %v4297
        %4820 = vst [vmem:[%s303 + $0xb0] sm:$0xff] %v4347
        %4821 = vst [vmem:[%s303 + $0xb8] sm:$0xff] %v4397
        %4822 = vst [vmem:[%s303 + $0xc0] sm:$0xff] %v4447
        %4823 = vst [vmem:[%s303 + $0xc8] sm:$0xff] %v4497
        %4824 = vst [vmem:[%s303 + $0xd0] sm:$0xff] %v4547
        %4825 = vst [vmem:[%s303 + $0xd8] sm:$0xff] %v4597
        %4826 = vst [vmem:[%s303 + $0xe0] sm:$0xff] %v4647
        %4827 = vst [vmem:[%s303 + $0xe8] sm:$0xff] %v4697
        %4828 = vst [vmem:[%s303 + $0xf0] sm:$0xff] %v4747
        %4829 = vst [vmem:[%s303 + $0xf8] sm:$0xff] %v4797
        %v4830 = vcombine.high %v960, 0.0
        %v4832 = vunpack.c.l.s4 1983009808
        %v4833 = vunpack.c.0.s8 %v4832
        %v4834 = vlaneseq
        %v4835 = vshrl.u32 %v4834, 7
        %v4836 = vsub.s32 %v4833, %v4835
        %v4837 = vrot.slane %v960, %v4836
        %v4839 = vunpack.c.l.s4 1983009808
        %v4840 = vunpack.c.0.s8 %v4839
        %v4841 = vlaneseq
        %v4842 = vshrl.u32 %v4841, 7
        %v4843 = vsub.s32 %v4840, %v4842
        %v4844 = vrot.slane %v4830, %v4843
        %v4845 = vcombine.high %v962, 0.0
        %v4847 = vunpack.c.l.s4 1983009808
        %v4848 = vunpack.c.0.s8 %v4847
        %v4849 = vlaneseq
        %v4850 = vshrl.u32 %v4849, 7
        %v4851 = vsub.s32 %v4848, %v4850
        %v4852 = vrot.slane %v962, %v4851
        %v4854 = vunpack.c.l.s4 1983009808
        %v4855 = vunpack.c.0.s8 %v4854
        %v4856 = vlaneseq
        %v4857 = vshrl.u32 %v4856, 7
        %v4858 = vsub.s32 %v4855, %v4857
        %v4859 = vrot.slane %v4845, %v4858
        %v4860 = vcombine.low %v4837, %v4852
        %v4861 = vcombine.high %v4837, %v4852
        %v4863 = vunpack.c.l.s4 1934713408
        %v4864 = vunpack.c.0.s8 %v4863
        %v4865 = vlaneseq
        %v4866 = vshrl.u32 %v4865, 7
        %v4867 = vsub.s32 %v4864, %v4866
        %v4868 = vrot.slane %v4860, %v4867
        %v4870 = vunpack.c.l.s4 1934713408
        %v4871 = vunpack.c.0.s8 %v4870
        %v4872 = vlaneseq
        %v4873 = vshrl.u32 %v4872, 7
        %v4874 = vsub.s32 %v4871, %v4873
        %v4875 = vrot.slane %v4861, %v4874
        %v4876 = vcombine.low %v4844, %v4859
        %v4877 = vcombine.high %v4844, %v4859
        %v4879 = vunpack.c.l.s4 1934713408
        %v4880 = vunpack.c.0.s8 %v4879
        %v4881 = vlaneseq
        %v4882 = vshrl.u32 %v4881, 7
        %v4883 = vsub.s32 %v4880, %v4882
        %v4884 = vrot.slane %v4876, %v4883
        %v4886 = vunpack.c.l.s4 1934713408
        %v4887 = vunpack.c.0.s8 %v4886
        %v4888 = vlaneseq
        %v4889 = vshrl.u32 %v4888, 7
        %v4890 = vsub.s32 %v4887, %v4889
        %v4891 = vrot.slane %v4877, %v4890
        %v4892 = vcombine.high %v4868, 0.0
        %v4893 = vcombine.high %v4875, 0.0
        %v4894 = vcombine.high %v4884, 0.0
        %v4895 = vcombine.high %v4891, 0.0
        %v4896 = vcombine.high %v966, 0.0
        %v4898 = vunpack.c.l.s4 1983009808
        %v4899 = vunpack.c.0.s8 %v4898
        %v4900 = vlaneseq
        %v4901 = vshrl.u32 %v4900, 7
        %v4902 = vsub.s32 %v4899, %v4901
        %v4903 = vrot.slane %v966, %v4902
        %v4905 = vunpack.c.l.s4 1983009808
        %v4906 = vunpack.c.0.s8 %v4905
        %v4907 = vlaneseq
        %v4908 = vshrl.u32 %v4907, 7
        %v4909 = vsub.s32 %v4906, %v4908
        %v4910 = vrot.slane %v4896, %v4909
        %v4911 = vcombine.high %v968, 0.0
        %v4913 = vunpack.c.l.s4 1983009808
        %v4914 = vunpack.c.0.s8 %v4913
        %v4915 = vlaneseq
        %v4916 = vshrl.u32 %v4915, 7
        %v4917 = vsub.s32 %v4914, %v4916
        %v4918 = vrot.slane %v968, %v4917
        %v4920 = vunpack.c.l.s4 1983009808
        %v4921 = vunpack.c.0.s8 %v4920
        %v4922 = vlaneseq
        %v4923 = vshrl.u32 %v4922, 7
        %v4924 = vsub.s32 %v4921, %v4923
        %v4925 = vrot.slane %v4911, %v4924
        %v4926 = vcombine.low %v4903, %v4918
        %v4927 = vcombine.high %v4903, %v4918
        %v4929 = vunpack.c.l.s4 1934713408
        %v4930 = vunpack.c.0.s8 %v4929
        %v4931 = vlaneseq
        %v4932 = vshrl.u32 %v4931, 7
        %v4933 = vsub.s32 %v4930, %v4932
        %v4934 = vrot.slane %v4926, %v4933
        %v4936 = vunpack.c.l.s4 1934713408
        %v4937 = vunpack.c.0.s8 %v4936
        %v4938 = vlaneseq
        %v4939 = vshrl.u32 %v4938, 7
        %v4940 = vsub.s32 %v4937, %v4939
        %v4941 = vrot.slane %v4927, %v4940
        %v4942 = vcombine.low %v4910, %v4925
        %v4943 = vcombine.high %v4910, %v4925
        %v4945 = vunpack.c.l.s4 1934713408
        %v4946 = vunpack.c.0.s8 %v4945
        %v4947 = vlaneseq
        %v4948 = vshrl.u32 %v4947, 7
        %v4949 = vsub.s32 %v4946, %v4948
        %v4950 = vrot.slane %v4942, %v4949
        %v4952 = vunpack.c.l.s4 1934713408
        %v4953 = vunpack.c.0.s8 %v4952
        %v4954 = vlaneseq
        %v4955 = vshrl.u32 %v4954, 7
        %v4956 = vsub.s32 %v4953, %v4955
        %v4957 = vrot.slane %v4943, %v4956
        %v4958 = vcombine.high %v4934, 0.0
        %v4959 = vcombine.high %v4941, 0.0
        %v4960 = vcombine.high %v4950, 0.0
        %v4961 = vcombine.high %v4957, 0.0
        %v4962 = vcombine.high %v972, 0.0
        %v4964 = vunpack.c.l.s4 1983009808
        %v4965 = vunpack.c.0.s8 %v4964
        %v4966 = vlaneseq
        %v4967 = vshrl.u32 %v4966, 7
        %v4968 = vsub.s32 %v4965, %v4967
        %v4969 = vrot.slane %v972, %v4968
        %v4971 = vunpack.c.l.s4 1983009808
        %v4972 = vunpack.c.0.s8 %v4971
        %v4973 = vlaneseq
        %v4974 = vshrl.u32 %v4973, 7
        %v4975 = vsub.s32 %v4972, %v4974
        %v4976 = vrot.slane %v4962, %v4975
        %v4977 = vcombine.high %v974, 0.0
        %v4979 = vunpack.c.l.s4 1983009808
        %v4980 = vunpack.c.0.s8 %v4979
        %v4981 = vlaneseq
        %v4982 = vshrl.u32 %v4981, 7
        %v4983 = vsub.s32 %v4980, %v4982
        %v4984 = vrot.slane %v974, %v4983
        %v4986 = vunpack.c.l.s4 1983009808
        %v4987 = vunpack.c.0.s8 %v4986
        %v4988 = vlaneseq
        %v4989 = vshrl.u32 %v4988, 7
        %v4990 = vsub.s32 %v4987, %v4989
        %v4991 = vrot.slane %v4977, %v4990
        %v4992 = vcombine.low %v4969, %v4984
        %v4993 = vcombine.high %v4969, %v4984
        %v4995 = vunpack.c.l.s4 1934713408
        %v4996 = vunpack.c.0.s8 %v4995
        %v4997 = vlaneseq
        %v4998 = vshrl.u32 %v4997, 7
        %v4999 = vsub.s32 %v4996, %v4998
        %v5000 = vrot.slane %v4992, %v4999
        %v5002 = vunpack.c.l.s4 1934713408
        %v5003 = vunpack.c.0.s8 %v5002
        %v5004 = vlaneseq
        %v5005 = vshrl.u32 %v5004, 7
        %v5006 = vsub.s32 %v5003, %v5005
        %v5007 = vrot.slane %v4993, %v5006
        %v5008 = vcombine.low %v4976, %v4991
        %v5009 = vcombine.high %v4976, %v4991
        %v5011 = vunpack.c.l.s4 1934713408
        %v5012 = vunpack.c.0.s8 %v5011
        %v5013 = vlaneseq
        %v5014 = vshrl.u32 %v5013, 7
        %v5015 = vsub.s32 %v5012, %v5014
        %v5016 = vrot.slane %v5008, %v5015
        %v5018 = vunpack.c.l.s4 1934713408
        %v5019 = vunpack.c.0.s8 %v5018
        %v5020 = vlaneseq
        %v5021 = vshrl.u32 %v5020, 7
        %v5022 = vsub.s32 %v5019, %v5021
        %v5023 = vrot.slane %v5009, %v5022
        %v5024 = vcombine.high %v5000, 0.0
        %v5025 = vcombine.high %v5007, 0.0
        %v5026 = vcombine.high %v5016, 0.0
        %v5027 = vcombine.high %v5023, 0.0
        %v5028 = vcombine.high %v978, 0.0
        %v5030 = vunpack.c.l.s4 1983009808
        %v5031 = vunpack.c.0.s8 %v5030
        %v5032 = vlaneseq
        %v5033 = vshrl.u32 %v5032, 7
        %v5034 = vsub.s32 %v5031, %v5033
        %v5035 = vrot.slane %v978, %v5034
        %v5037 = vunpack.c.l.s4 1983009808
        %v5038 = vunpack.c.0.s8 %v5037
        %v5039 = vlaneseq
        %v5040 = vshrl.u32 %v5039, 7
        %v5041 = vsub.s32 %v5038, %v5040
        %v5042 = vrot.slane %v5028, %v5041
        %v5043 = vcombine.high %v980, 0.0
        %v5045 = vunpack.c.l.s4 1983009808
        %v5046 = vunpack.c.0.s8 %v5045
        %v5047 = vlaneseq
        %v5048 = vshrl.u32 %v5047, 7
        %v5049 = vsub.s32 %v5046, %v5048
        %v5050 = vrot.slane %v980, %v5049
        %v5052 = vunpack.c.l.s4 1983009808
        %v5053 = vunpack.c.0.s8 %v5052
        %v5054 = vlaneseq
        %v5055 = vshrl.u32 %v5054, 7
        %v5056 = vsub.s32 %v5053, %v5055
        %v5057 = vrot.slane %v5043, %v5056
        %v5058 = vcombine.low %v5035, %v5050
        %v5059 = vcombine.high %v5035, %v5050
        %v5061 = vunpack.c.l.s4 1934713408
        %v5062 = vunpack.c.0.s8 %v5061
        %v5063 = vlaneseq
        %v5064 = vshrl.u32 %v5063, 7
        %v5065 = vsub.s32 %v5062, %v5064
        %v5066 = vrot.slane %v5058, %v5065
        %v5068 = vunpack.c.l.s4 1934713408
        %v5069 = vunpack.c.0.s8 %v5068
        %v5070 = vlaneseq
        %v5071 = vshrl.u32 %v5070, 7
        %v5072 = vsub.s32 %v5069, %v5071
        %v5073 = vrot.slane %v5059, %v5072
        %v5074 = vcombine.low %v5042, %v5057
        %v5075 = vcombine.high %v5042, %v5057
        %v5077 = vunpack.c.l.s4 1934713408
        %v5078 = vunpack.c.0.s8 %v5077
        %v5079 = vlaneseq
        %v5080 = vshrl.u32 %v5079, 7
        %v5081 = vsub.s32 %v5078, %v5080
        %v5082 = vrot.slane %v5074, %v5081
        %v5084 = vunpack.c.l.s4 1934713408
        %v5085 = vunpack.c.0.s8 %v5084
        %v5086 = vlaneseq
        %v5087 = vshrl.u32 %v5086, 7
        %v5088 = vsub.s32 %v5085, %v5087
        %v5089 = vrot.slane %v5075, %v5088
        %v5090 = vcombine.high %v5066, 0.0
        %v5091 = vcombine.high %v5073, 0.0
        %v5092 = vcombine.high %v5082, 0.0
        %v5093 = vcombine.high %v5089, 0.0
        %v5094 = vcombine.high %v984, 0.0
        %v5096 = vunpack.c.l.s4 1983009808
        %v5097 = vunpack.c.0.s8 %v5096
        %v5098 = vlaneseq
        %v5099 = vshrl.u32 %v5098, 7
        %v5100 = vsub.s32 %v5097, %v5099
        %v5101 = vrot.slane %v984, %v5100
        %v5103 = vunpack.c.l.s4 1983009808
        %v5104 = vunpack.c.0.s8 %v5103
        %v5105 = vlaneseq
        %v5106 = vshrl.u32 %v5105, 7
        %v5107 = vsub.s32 %v5104, %v5106
        %v5108 = vrot.slane %v5094, %v5107
        %v5109 = vcombine.high %v986, 0.0
        %v5111 = vunpack.c.l.s4 1983009808
        %v5112 = vunpack.c.0.s8 %v5111
        %v5113 = vlaneseq
        %v5114 = vshrl.u32 %v5113, 7
        %v5115 = vsub.s32 %v5112, %v5114
        %v5116 = vrot.slane %v986, %v5115
        %v5118 = vunpack.c.l.s4 1983009808
        %v5119 = vunpack.c.0.s8 %v5118
        %v5120 = vlaneseq
        %v5121 = vshrl.u32 %v5120, 7
        %v5122 = vsub.s32 %v5119, %v5121
        %v5123 = vrot.slane %v5109, %v5122
        %v5124 = vcombine.low %v5101, %v5116
        %v5125 = vcombine.high %v5101, %v5116
        %v5127 = vunpack.c.l.s4 1934713408
        %v5128 = vunpack.c.0.s8 %v5127
        %v5129 = vlaneseq
        %v5130 = vshrl.u32 %v5129, 7
        %v5131 = vsub.s32 %v5128, %v5130
        %v5132 = vrot.slane %v5124, %v5131
        %v5134 = vunpack.c.l.s4 1934713408
        %v5135 = vunpack.c.0.s8 %v5134
        %v5136 = vlaneseq
        %v5137 = vshrl.u32 %v5136, 7
        %v5138 = vsub.s32 %v5135, %v5137
        %v5139 = vrot.slane %v5125, %v5138
        %v5140 = vcombine.low %v5108, %v5123
        %v5141 = vcombine.high %v5108, %v5123
        %v5143 = vunpack.c.l.s4 1934713408
        %v5144 = vunpack.c.0.s8 %v5143
        %v5145 = vlaneseq
        %v5146 = vshrl.u32 %v5145, 7
        %v5147 = vsub.s32 %v5144, %v5146
        %v5148 = vrot.slane %v5140, %v5147
        %v5150 = vunpack.c.l.s4 1934713408
        %v5151 = vunpack.c.0.s8 %v5150
        %v5152 = vlaneseq
        %v5153 = vshrl.u32 %v5152, 7
        %v5154 = vsub.s32 %v5151, %v5153
        %v5155 = vrot.slane %v5141, %v5154
        %v5156 = vcombine.high %v5132, 0.0
        %v5157 = vcombine.high %v5139, 0.0
        %v5158 = vcombine.high %v5148, 0.0
        %v5159 = vcombine.high %v5155, 0.0
        %v5160 = vcombine.high %v990, 0.0
        %v5162 = vunpack.c.l.s4 1983009808
        %v5163 = vunpack.c.0.s8 %v5162
        %v5164 = vlaneseq
        %v5165 = vshrl.u32 %v5164, 7
        %v5166 = vsub.s32 %v5163, %v5165
        %v5167 = vrot.slane %v990, %v5166
        %v5169 = vunpack.c.l.s4 1983009808
        %v5170 = vunpack.c.0.s8 %v5169
        %v5171 = vlaneseq
        %v5172 = vshrl.u32 %v5171, 7
        %v5173 = vsub.s32 %v5170, %v5172
        %v5174 = vrot.slane %v5160, %v5173
        %v5175 = vcombine.high %v992, 0.0
        %v5177 = vunpack.c.l.s4 1983009808
        %v5178 = vunpack.c.0.s8 %v5177
        %v5179 = vlaneseq
        %v5180 = vshrl.u32 %v5179, 7
        %v5181 = vsub.s32 %v5178, %v5180
        %v5182 = vrot.slane %v992, %v5181
        %v5184 = vunpack.c.l.s4 1983009808
        %v5185 = vunpack.c.0.s8 %v5184
        %v5186 = vlaneseq
        %v5187 = vshrl.u32 %v5186, 7
        %v5188 = vsub.s32 %v5185, %v5187
        %v5189 = vrot.slane %v5175, %v5188
        %v5190 = vcombine.low %v5167, %v5182
        %v5191 = vcombine.high %v5167, %v5182
        %v5193 = vunpack.c.l.s4 1934713408
        %v5194 = vunpack.c.0.s8 %v5193
        %v5195 = vlaneseq
        %v5196 = vshrl.u32 %v5195, 7
        %v5197 = vsub.s32 %v5194, %v5196
        %v5198 = vrot.slane %v5190, %v5197
        %v5200 = vunpack.c.l.s4 1934713408
        %v5201 = vunpack.c.0.s8 %v5200
        %v5202 = vlaneseq
        %v5203 = vshrl.u32 %v5202, 7
        %v5204 = vsub.s32 %v5201, %v5203
        %v5205 = vrot.slane %v5191, %v5204
        %v5206 = vcombine.low %v5174, %v5189
        %v5207 = vcombine.high %v5174, %v5189
        %v5209 = vunpack.c.l.s4 1934713408
        %v5210 = vunpack.c.0.s8 %v5209
        %v5211 = vlaneseq
        %v5212 = vshrl.u32 %v5211, 7
        %v5213 = vsub.s32 %v5210, %v5212
        %v5214 = vrot.slane %v5206, %v5213
        %v5216 = vunpack.c.l.s4 1934713408
        %v5217 = vunpack.c.0.s8 %v5216
        %v5218 = vlaneseq
        %v5219 = vshrl.u32 %v5218, 7
        %v5220 = vsub.s32 %v5217, %v5219
        %v5221 = vrot.slane %v5207, %v5220
        %v5222 = vcombine.high %v5198, 0.0
        %v5223 = vcombine.high %v5205, 0.0
        %v5224 = vcombine.high %v5214, 0.0
        %v5225 = vcombine.high %v5221, 0.0
        %v5226 = vcombine.high %v996, 0.0
        %v5228 = vunpack.c.l.s4 1983009808
        %v5229 = vunpack.c.0.s8 %v5228
        %v5230 = vlaneseq
        %v5231 = vshrl.u32 %v5230, 7
        %v5232 = vsub.s32 %v5229, %v5231
        %v5233 = vrot.slane %v996, %v5232
        %v5235 = vunpack.c.l.s4 1983009808
        %v5236 = vunpack.c.0.s8 %v5235
        %v5237 = vlaneseq
        %v5238 = vshrl.u32 %v5237, 7
        %v5239 = vsub.s32 %v5236, %v5238
        %v5240 = vrot.slane %v5226, %v5239
        %v5241 = vcombine.high %v998, 0.0
        %v5243 = vunpack.c.l.s4 1983009808
        %v5244 = vunpack.c.0.s8 %v5243
        %v5245 = vlaneseq
        %v5246 = vshrl.u32 %v5245, 7
        %v5247 = vsub.s32 %v5244, %v5246
        %v5248 = vrot.slane %v998, %v5247
        %v5250 = vunpack.c.l.s4 1983009808
        %v5251 = vunpack.c.0.s8 %v5250
        %v5252 = vlaneseq
        %v5253 = vshrl.u32 %v5252, 7
        %v5254 = vsub.s32 %v5251, %v5253
        %v5255 = vrot.slane %v5241, %v5254
        %v5256 = vcombine.low %v5233, %v5248
        %v5257 = vcombine.high %v5233, %v5248
        %v5259 = vunpack.c.l.s4 1934713408
        %v5260 = vunpack.c.0.s8 %v5259
        %v5261 = vlaneseq
        %v5262 = vshrl.u32 %v5261, 7
        %v5263 = vsub.s32 %v5260, %v5262
        %v5264 = vrot.slane %v5256, %v5263
        %v5266 = vunpack.c.l.s4 1934713408
        %v5267 = vunpack.c.0.s8 %v5266
        %v5268 = vlaneseq
        %v5269 = vshrl.u32 %v5268, 7
        %v5270 = vsub.s32 %v5267, %v5269
        %v5271 = vrot.slane %v5257, %v5270
        %v5272 = vcombine.low %v5240, %v5255
        %v5273 = vcombine.high %v5240, %v5255
        %v5275 = vunpack.c.l.s4 1934713408
        %v5276 = vunpack.c.0.s8 %v5275
        %v5277 = vlaneseq
        %v5278 = vshrl.u32 %v5277, 7
        %v5279 = vsub.s32 %v5276, %v5278
        %v5280 = vrot.slane %v5272, %v5279
        %v5282 = vunpack.c.l.s4 1934713408
        %v5283 = vunpack.c.0.s8 %v5282
        %v5284 = vlaneseq
        %v5285 = vshrl.u32 %v5284, 7
        %v5286 = vsub.s32 %v5283, %v5285
        %v5287 = vrot.slane %v5273, %v5286
        %v5288 = vcombine.high %v5264, 0.0
        %v5289 = vcombine.high %v5271, 0.0
        %v5290 = vcombine.high %v5280, 0.0
        %v5291 = vcombine.high %v5287, 0.0
        %v5292 = vcombine.high %v1002, 0.0
        %v5294 = vunpack.c.l.s4 1983009808
        %v5295 = vunpack.c.0.s8 %v5294
        %v5296 = vlaneseq
        %v5297 = vshrl.u32 %v5296, 7
        %v5298 = vsub.s32 %v5295, %v5297
        %v5299 = vrot.slane %v1002, %v5298
        %v5301 = vunpack.c.l.s4 1983009808
        %v5302 = vunpack.c.0.s8 %v5301
        %v5303 = vlaneseq
        %v5304 = vshrl.u32 %v5303, 7
        %v5305 = vsub.s32 %v5302, %v5304
        %v5306 = vrot.slane %v5292, %v5305
        %v5307 = vcombine.high %v1004, 0.0
        %v5309 = vunpack.c.l.s4 1983009808
        %v5310 = vunpack.c.0.s8 %v5309
        %v5311 = vlaneseq
        %v5312 = vshrl.u32 %v5311, 7
        %v5313 = vsub.s32 %v5310, %v5312
        %v5314 = vrot.slane %v1004, %v5313
        %v5316 = vunpack.c.l.s4 1983009808
        %v5317 = vunpack.c.0.s8 %v5316
        %v5318 = vlaneseq
        %v5319 = vshrl.u32 %v5318, 7
        %v5320 = vsub.s32 %v5317, %v5319
        %v5321 = vrot.slane %v5307, %v5320
        %v5322 = vcombine.low %v5299, %v5314
        %v5323 = vcombine.high %v5299, %v5314
        %v5325 = vunpack.c.l.s4 1934713408
        %v5326 = vunpack.c.0.s8 %v5325
        %v5327 = vlaneseq
        %v5328 = vshrl.u32 %v5327, 7
        %v5329 = vsub.s32 %v5326, %v5328
        %v5330 = vrot.slane %v5322, %v5329
        %v5332 = vunpack.c.l.s4 1934713408
        %v5333 = vunpack.c.0.s8 %v5332
        %v5334 = vlaneseq
        %v5335 = vshrl.u32 %v5334, 7
        %v5336 = vsub.s32 %v5333, %v5335
        %v5337 = vrot.slane %v5323, %v5336
        %v5338 = vcombine.low %v5306, %v5321
        %v5339 = vcombine.high %v5306, %v5321
        %v5341 = vunpack.c.l.s4 1934713408
        %v5342 = vunpack.c.0.s8 %v5341
        %v5343 = vlaneseq
        %v5344 = vshrl.u32 %v5343, 7
        %v5345 = vsub.s32 %v5342, %v5344
        %v5346 = vrot.slane %v5338, %v5345
        %v5348 = vunpack.c.l.s4 1934713408
        %v5349 = vunpack.c.0.s8 %v5348
        %v5350 = vlaneseq
        %v5351 = vshrl.u32 %v5350, 7
        %v5352 = vsub.s32 %v5349, %v5351
        %v5353 = vrot.slane %v5339, %v5352
        %v5354 = vcombine.high %v5330, 0.0
        %v5355 = vcombine.high %v5337, 0.0
        %v5356 = vcombine.high %v5346, 0.0
        %v5357 = vcombine.high %v5353, 0.0
        %v5358 = vcombine.high %v1008, 0.0
        %v5360 = vunpack.c.l.s4 1983009808
        %v5361 = vunpack.c.0.s8 %v5360
        %v5362 = vlaneseq
        %v5363 = vshrl.u32 %v5362, 7
        %v5364 = vsub.s32 %v5361, %v5363
        %v5365 = vrot.slane %v1008, %v5364
        %v5367 = vunpack.c.l.s4 1983009808
        %v5368 = vunpack.c.0.s8 %v5367
        %v5369 = vlaneseq
        %v5370 = vshrl.u32 %v5369, 7
        %v5371 = vsub.s32 %v5368, %v5370
        %v5372 = vrot.slane %v5358, %v5371
        %v5373 = vcombine.high %v1010, 0.0
        %v5375 = vunpack.c.l.s4 1983009808
        %v5376 = vunpack.c.0.s8 %v5375
        %v5377 = vlaneseq
        %v5378 = vshrl.u32 %v5377, 7
        %v5379 = vsub.s32 %v5376, %v5378
        %v5380 = vrot.slane %v1010, %v5379
        %v5382 = vunpack.c.l.s4 1983009808
        %v5383 = vunpack.c.0.s8 %v5382
        %v5384 = vlaneseq
        %v5385 = vshrl.u32 %v5384, 7
        %v5386 = vsub.s32 %v5383, %v5385
        %v5387 = vrot.slane %v5373, %v5386
        %v5388 = vcombine.low %v5365, %v5380
        %v5389 = vcombine.high %v5365, %v5380
        %v5391 = vunpack.c.l.s4 1934713408
        %v5392 = vunpack.c.0.s8 %v5391
        %v5393 = vlaneseq
        %v5394 = vshrl.u32 %v5393, 7
        %v5395 = vsub.s32 %v5392, %v5394
        %v5396 = vrot.slane %v5388, %v5395
        %v5398 = vunpack.c.l.s4 1934713408
        %v5399 = vunpack.c.0.s8 %v5398
        %v5400 = vlaneseq
        %v5401 = vshrl.u32 %v5400, 7
        %v5402 = vsub.s32 %v5399, %v5401
        %v5403 = vrot.slane %v5389, %v5402
        %v5404 = vcombine.low %v5372, %v5387
        %v5405 = vcombine.high %v5372, %v5387
        %v5407 = vunpack.c.l.s4 1934713408
        %v5408 = vunpack.c.0.s8 %v5407
        %v5409 = vlaneseq
        %v5410 = vshrl.u32 %v5409, 7
        %v5411 = vsub.s32 %v5408, %v5410
        %v5412 = vrot.slane %v5404, %v5411
        %v5414 = vunpack.c.l.s4 1934713408
        %v5415 = vunpack.c.0.s8 %v5414
        %v5416 = vlaneseq
        %v5417 = vshrl.u32 %v5416, 7
        %v5418 = vsub.s32 %v5415, %v5417
        %v5419 = vrot.slane %v5405, %v5418
        %v5420 = vcombine.high %v5396, 0.0
        %v5421 = vcombine.high %v5403, 0.0
        %v5422 = vcombine.high %v5412, 0.0
        %v5423 = vcombine.high %v5419, 0.0
        %v5424 = vcombine.high %v1014, 0.0
        %v5426 = vunpack.c.l.s4 1983009808
        %v5427 = vunpack.c.0.s8 %v5426
        %v5428 = vlaneseq
        %v5429 = vshrl.u32 %v5428, 7
        %v5430 = vsub.s32 %v5427, %v5429
        %v5431 = vrot.slane %v1014, %v5430
        %v5433 = vunpack.c.l.s4 1983009808
        %v5434 = vunpack.c.0.s8 %v5433
        %v5435 = vlaneseq
        %v5436 = vshrl.u32 %v5435, 7
        %v5437 = vsub.s32 %v5434, %v5436
        %v5438 = vrot.slane %v5424, %v5437
        %v5439 = vcombine.high %v1016, 0.0
        %v5441 = vunpack.c.l.s4 1983009808
        %v5442 = vunpack.c.0.s8 %v5441
        %v5443 = vlaneseq
        %v5444 = vshrl.u32 %v5443, 7
        %v5445 = vsub.s32 %v5442, %v5444
        %v5446 = vrot.slane %v1016, %v5445
        %v5448 = vunpack.c.l.s4 1983009808
        %v5449 = vunpack.c.0.s8 %v5448
        %v5450 = vlaneseq
        %v5451 = vshrl.u32 %v5450, 7
        %v5452 = vsub.s32 %v5449, %v5451
        %v5453 = vrot.slane %v5439, %v5452
        %v5454 = vcombine.low %v5431, %v5446
        %v5455 = vcombine.high %v5431, %v5446
        %v5457 = vunpack.c.l.s4 1934713408
        %v5458 = vunpack.c.0.s8 %v5457
        %v5459 = vlaneseq
        %v5460 = vshrl.u32 %v5459, 7
        %v5461 = vsub.s32 %v5458, %v5460
        %v5462 = vrot.slane %v5454, %v5461
        %v5464 = vunpack.c.l.s4 1934713408
        %v5465 = vunpack.c.0.s8 %v5464
        %v5466 = vlaneseq
        %v5467 = vshrl.u32 %v5466, 7
        %v5468 = vsub.s32 %v5465, %v5467
        %v5469 = vrot.slane %v5455, %v5468
        %v5470 = vcombine.low %v5438, %v5453
        %v5471 = vcombine.high %v5438, %v5453
        %v5473 = vunpack.c.l.s4 1934713408
        %v5474 = vunpack.c.0.s8 %v5473
        %v5475 = vlaneseq
        %v5476 = vshrl.u32 %v5475, 7
        %v5477 = vsub.s32 %v5474, %v5476
        %v5478 = vrot.slane %v5470, %v5477
        %v5480 = vunpack.c.l.s4 1934713408
        %v5481 = vunpack.c.0.s8 %v5480
        %v5482 = vlaneseq
        %v5483 = vshrl.u32 %v5482, 7
        %v5484 = vsub.s32 %v5481, %v5483
        %v5485 = vrot.slane %v5471, %v5484
        %v5486 = vcombine.high %v5462, 0.0
        %v5487 = vcombine.high %v5469, 0.0
        %v5488 = vcombine.high %v5478, 0.0
        %v5489 = vcombine.high %v5485, 0.0
        %v5490 = vcombine.high %v1020, 0.0
        %v5492 = vunpack.c.l.s4 1983009808
        %v5493 = vunpack.c.0.s8 %v5492
        %v5494 = vlaneseq
        %v5495 = vshrl.u32 %v5494, 7
        %v5496 = vsub.s32 %v5493, %v5495
        %v5497 = vrot.slane %v1020, %v5496
        %v5499 = vunpack.c.l.s4 1983009808
        %v5500 = vunpack.c.0.s8 %v5499
        %v5501 = vlaneseq
        %v5502 = vshrl.u32 %v5501, 7
        %v5503 = vsub.s32 %v5500, %v5502
        %v5504 = vrot.slane %v5490, %v5503
        %v5505 = vcombine.high %v1022, 0.0
        %v5507 = vunpack.c.l.s4 1983009808
        %v5508 = vunpack.c.0.s8 %v5507
        %v5509 = vlaneseq
        %v5510 = vshrl.u32 %v5509, 7
        %v5511 = vsub.s32 %v5508, %v5510
        %v5512 = vrot.slane %v1022, %v5511
        %v5514 = vunpack.c.l.s4 1983009808
        %v5515 = vunpack.c.0.s8 %v5514
        %v5516 = vlaneseq
        %v5517 = vshrl.u32 %v5516, 7
        %v5518 = vsub.s32 %v5515, %v5517
        %v5519 = vrot.slane %v5505, %v5518
        %v5520 = vcombine.low %v5497, %v5512
        %v5521 = vcombine.high %v5497, %v5512
        %v5523 = vunpack.c.l.s4 1934713408
        %v5524 = vunpack.c.0.s8 %v5523
        %v5525 = vlaneseq
        %v5526 = vshrl.u32 %v5525, 7
        %v5527 = vsub.s32 %v5524, %v5526
        %v5528 = vrot.slane %v5520, %v5527
        %v5530 = vunpack.c.l.s4 1934713408
        %v5531 = vunpack.c.0.s8 %v5530
        %v5532 = vlaneseq
        %v5533 = vshrl.u32 %v5532, 7
        %v5534 = vsub.s32 %v5531, %v5533
        %v5535 = vrot.slane %v5521, %v5534
        %v5536 = vcombine.low %v5504, %v5519
        %v5537 = vcombine.high %v5504, %v5519
        %v5539 = vunpack.c.l.s4 1934713408
        %v5540 = vunpack.c.0.s8 %v5539
        %v5541 = vlaneseq
        %v5542 = vshrl.u32 %v5541, 7
        %v5543 = vsub.s32 %v5540, %v5542
        %v5544 = vrot.slane %v5536, %v5543
        %v5546 = vunpack.c.l.s4 1934713408
        %v5547 = vunpack.c.0.s8 %v5546
        %v5548 = vlaneseq
        %v5549 = vshrl.u32 %v5548, 7
        %v5550 = vsub.s32 %v5547, %v5549
        %v5551 = vrot.slane %v5537, %v5550
        %v5552 = vcombine.high %v5528, 0.0
        %v5553 = vcombine.high %v5535, 0.0
        %v5554 = vcombine.high %v5544, 0.0
        %v5555 = vcombine.high %v5551, 0.0
        %v5556 = vcombine.high %v1026, 0.0
        %v5558 = vunpack.c.l.s4 1983009808
        %v5559 = vunpack.c.0.s8 %v5558
        %v5560 = vlaneseq
        %v5561 = vshrl.u32 %v5560, 7
        %v5562 = vsub.s32 %v5559, %v5561
        %v5563 = vrot.slane %v1026, %v5562
        %v5565 = vunpack.c.l.s4 1983009808
        %v5566 = vunpack.c.0.s8 %v5565
        %v5567 = vlaneseq
        %v5568 = vshrl.u32 %v5567, 7
        %v5569 = vsub.s32 %v5566, %v5568
        %v5570 = vrot.slane %v5556, %v5569
        %v5571 = vcombine.high %v1028, 0.0
        %v5573 = vunpack.c.l.s4 1983009808
        %v5574 = vunpack.c.0.s8 %v5573
        %v5575 = vlaneseq
        %v5576 = vshrl.u32 %v5575, 7
        %v5577 = vsub.s32 %v5574, %v5576
        %v5578 = vrot.slane %v1028, %v5577
        %v5580 = vunpack.c.l.s4 1983009808
        %v5581 = vunpack.c.0.s8 %v5580
        %v5582 = vlaneseq
        %v5583 = vshrl.u32 %v5582, 7
        %v5584 = vsub.s32 %v5581, %v5583
        %v5585 = vrot.slane %v5571, %v5584
        %v5586 = vcombine.low %v5563, %v5578
        %v5587 = vcombine.high %v5563, %v5578
        %v5589 = vunpack.c.l.s4 1934713408
        %v5590 = vunpack.c.0.s8 %v5589
        %v5591 = vlaneseq
        %v5592 = vshrl.u32 %v5591, 7
        %v5593 = vsub.s32 %v5590, %v5592
        %v5594 = vrot.slane %v5586, %v5593
        %v5596 = vunpack.c.l.s4 1934713408
        %v5597 = vunpack.c.0.s8 %v5596
        %v5598 = vlaneseq
        %v5599 = vshrl.u32 %v5598, 7
        %v5600 = vsub.s32 %v5597, %v5599
        %v5601 = vrot.slane %v5587, %v5600
        %v5602 = vcombine.low %v5570, %v5585
        %v5603 = vcombine.high %v5570, %v5585
        %v5605 = vunpack.c.l.s4 1934713408
        %v5606 = vunpack.c.0.s8 %v5605
        %v5607 = vlaneseq
        %v5608 = vshrl.u32 %v5607, 7
        %v5609 = vsub.s32 %v5606, %v5608
        %v5610 = vrot.slane %v5602, %v5609
        %v5612 = vunpack.c.l.s4 1934713408
        %v5613 = vunpack.c.0.s8 %v5612
        %v5614 = vlaneseq
        %v5615 = vshrl.u32 %v5614, 7
        %v5616 = vsub.s32 %v5613, %v5615
        %v5617 = vrot.slane %v5603, %v5616
        %v5618 = vcombine.high %v5594, 0.0
        %v5619 = vcombine.high %v5601, 0.0
        %v5620 = vcombine.high %v5610, 0.0
        %v5621 = vcombine.high %v5617, 0.0
        %v5622 = vcombine.high %v1032, 0.0
        %v5624 = vunpack.c.l.s4 1983009808
        %v5625 = vunpack.c.0.s8 %v5624
        %v5626 = vlaneseq
        %v5627 = vshrl.u32 %v5626, 7
        %v5628 = vsub.s32 %v5625, %v5627
        %v5629 = vrot.slane %v1032, %v5628
        %v5631 = vunpack.c.l.s4 1983009808
        %v5632 = vunpack.c.0.s8 %v5631
        %v5633 = vlaneseq
        %v5634 = vshrl.u32 %v5633, 7
        %v5635 = vsub.s32 %v5632, %v5634
        %v5636 = vrot.slane %v5622, %v5635
        %v5637 = vcombine.high %v1034, 0.0
        %v5639 = vunpack.c.l.s4 1983009808
        %v5640 = vunpack.c.0.s8 %v5639
        %v5641 = vlaneseq
        %v5642 = vshrl.u32 %v5641, 7
        %v5643 = vsub.s32 %v5640, %v5642
        %v5644 = vrot.slane %v1034, %v5643
        %v5646 = vunpack.c.l.s4 1983009808
        %v5647 = vunpack.c.0.s8 %v5646
        %v5648 = vlaneseq
        %v5649 = vshrl.u32 %v5648, 7
        %v5650 = vsub.s32 %v5647, %v5649
        %v5651 = vrot.slane %v5637, %v5650
        %v5652 = vcombine.low %v5629, %v5644
        %v5653 = vcombine.high %v5629, %v5644
        %v5655 = vunpack.c.l.s4 1934713408
        %v5656 = vunpack.c.0.s8 %v5655
        %v5657 = vlaneseq
        %v5658 = vshrl.u32 %v5657, 7
        %v5659 = vsub.s32 %v5656, %v5658
        %v5660 = vrot.slane %v5652, %v5659
        %v5662 = vunpack.c.l.s4 1934713408
        %v5663 = vunpack.c.0.s8 %v5662
        %v5664 = vlaneseq
        %v5665 = vshrl.u32 %v5664, 7
        %v5666 = vsub.s32 %v5663, %v5665
        %v5667 = vrot.slane %v5653, %v5666
        %v5668 = vcombine.low %v5636, %v5651
        %v5669 = vcombine.high %v5636, %v5651
        %v5671 = vunpack.c.l.s4 1934713408
        %v5672 = vunpack.c.0.s8 %v5671
        %v5673 = vlaneseq
        %v5674 = vshrl.u32 %v5673, 7
        %v5675 = vsub.s32 %v5672, %v5674
        %v5676 = vrot.slane %v5668, %v5675
        %v5678 = vunpack.c.l.s4 1934713408
        %v5679 = vunpack.c.0.s8 %v5678
        %v5680 = vlaneseq
        %v5681 = vshrl.u32 %v5680, 7
        %v5682 = vsub.s32 %v5679, %v5681
        %v5683 = vrot.slane %v5669, %v5682
        %v5684 = vcombine.high %v5660, 0.0
        %v5685 = vcombine.high %v5667, 0.0
        %v5686 = vcombine.high %v5676, 0.0
        %v5687 = vcombine.high %v5683, 0.0
        %v5688 = vcombine.high %v1038, 0.0
        %v5690 = vunpack.c.l.s4 1983009808
        %v5691 = vunpack.c.0.s8 %v5690
        %v5692 = vlaneseq
        %v5693 = vshrl.u32 %v5692, 7
        %v5694 = vsub.s32 %v5691, %v5693
        %v5695 = vrot.slane %v1038, %v5694
        %v5697 = vunpack.c.l.s4 1983009808
        %v5698 = vunpack.c.0.s8 %v5697
        %v5699 = vlaneseq
        %v5700 = vshrl.u32 %v5699, 7
        %v5701 = vsub.s32 %v5698, %v5700
        %v5702 = vrot.slane %v5688, %v5701
        %v5703 = vcombine.high %v1040, 0.0
        %v5705 = vunpack.c.l.s4 1983009808
        %v5706 = vunpack.c.0.s8 %v5705
        %v5707 = vlaneseq
        %v5708 = vshrl.u32 %v5707, 7
        %v5709 = vsub.s32 %v5706, %v5708
        %v5710 = vrot.slane %v1040, %v5709
        %v5712 = vunpack.c.l.s4 1983009808
        %v5713 = vunpack.c.0.s8 %v5712
        %v5714 = vlaneseq
        %v5715 = vshrl.u32 %v5714, 7
        %v5716 = vsub.s32 %v5713, %v5715
        %v5717 = vrot.slane %v5703, %v5716
        %v5718 = vcombine.low %v5695, %v5710
        %v5719 = vcombine.high %v5695, %v5710
        %v5721 = vunpack.c.l.s4 1934713408
        %v5722 = vunpack.c.0.s8 %v5721
        %v5723 = vlaneseq
        %v5724 = vshrl.u32 %v5723, 7
        %v5725 = vsub.s32 %v5722, %v5724
        %v5726 = vrot.slane %v5718, %v5725
        %v5728 = vunpack.c.l.s4 1934713408
        %v5729 = vunpack.c.0.s8 %v5728
        %v5730 = vlaneseq
        %v5731 = vshrl.u32 %v5730, 7
        %v5732 = vsub.s32 %v5729, %v5731
        %v5733 = vrot.slane %v5719, %v5732
        %v5734 = vcombine.low %v5702, %v5717
        %v5735 = vcombine.high %v5702, %v5717
        %v5737 = vunpack.c.l.s4 1934713408
        %v5738 = vunpack.c.0.s8 %v5737
        %v5739 = vlaneseq
        %v5740 = vshrl.u32 %v5739, 7
        %v5741 = vsub.s32 %v5738, %v5740
        %v5742 = vrot.slane %v5734, %v5741
        %v5744 = vunpack.c.l.s4 1934713408
        %v5745 = vunpack.c.0.s8 %v5744
        %v5746 = vlaneseq
        %v5747 = vshrl.u32 %v5746, 7
        %v5748 = vsub.s32 %v5745, %v5747
        %v5749 = vrot.slane %v5735, %v5748
        %v5750 = vcombine.high %v5726, 0.0
        %v5751 = vcombine.high %v5733, 0.0
        %v5752 = vcombine.high %v5742, 0.0
        %v5753 = vcombine.high %v5749, 0.0
        %v5754 = vcombine.high %v1044, 0.0
        %v5756 = vunpack.c.l.s4 1983009808
        %v5757 = vunpack.c.0.s8 %v5756
        %v5758 = vlaneseq
        %v5759 = vshrl.u32 %v5758, 7
        %v5760 = vsub.s32 %v5757, %v5759
        %v5761 = vrot.slane %v1044, %v5760
        %v5763 = vunpack.c.l.s4 1983009808
        %v5764 = vunpack.c.0.s8 %v5763
        %v5765 = vlaneseq
        %v5766 = vshrl.u32 %v5765, 7
        %v5767 = vsub.s32 %v5764, %v5766
        %v5768 = vrot.slane %v5754, %v5767
        %v5769 = vcombine.high %v1046, 0.0
        %v5771 = vunpack.c.l.s4 1983009808
        %v5772 = vunpack.c.0.s8 %v5771
        %v5773 = vlaneseq
        %v5774 = vshrl.u32 %v5773, 7
        %v5775 = vsub.s32 %v5772, %v5774
        %v5776 = vrot.slane %v1046, %v5775
        %v5778 = vunpack.c.l.s4 1983009808
        %v5779 = vunpack.c.0.s8 %v5778
        %v5780 = vlaneseq
        %v5781 = vshrl.u32 %v5780, 7
        %v5782 = vsub.s32 %v5779, %v5781
        %v5783 = vrot.slane %v5769, %v5782
        %v5784 = vcombine.low %v5761, %v5776
        %v5785 = vcombine.high %v5761, %v5776
        %v5787 = vunpack.c.l.s4 1934713408
        %v5788 = vunpack.c.0.s8 %v5787
        %v5789 = vlaneseq
        %v5790 = vshrl.u32 %v5789, 7
        %v5791 = vsub.s32 %v5788, %v5790
        %v5792 = vrot.slane %v5784, %v5791
        %v5794 = vunpack.c.l.s4 1934713408
        %v5795 = vunpack.c.0.s8 %v5794
        %v5796 = vlaneseq
        %v5797 = vshrl.u32 %v5796, 7
        %v5798 = vsub.s32 %v5795, %v5797
        %v5799 = vrot.slane %v5785, %v5798
        %v5800 = vcombine.low %v5768, %v5783
        %v5801 = vcombine.high %v5768, %v5783
        %v5803 = vunpack.c.l.s4 1934713408
        %v5804 = vunpack.c.0.s8 %v5803
        %v5805 = vlaneseq
        %v5806 = vshrl.u32 %v5805, 7
        %v5807 = vsub.s32 %v5804, %v5806
        %v5808 = vrot.slane %v5800, %v5807
        %v5810 = vunpack.c.l.s4 1934713408
        %v5811 = vunpack.c.0.s8 %v5810
        %v5812 = vlaneseq
        %v5813 = vshrl.u32 %v5812, 7
        %v5814 = vsub.s32 %v5811, %v5813
        %v5815 = vrot.slane %v5801, %v5814
        %v5816 = vcombine.high %v5792, 0.0
        %v5817 = vcombine.high %v5799, 0.0
        %v5818 = vcombine.high %v5808, 0.0
        %v5819 = vcombine.high %v5815, 0.0
        %v5820 = vcombine.high %v1050, 0.0
        %v5822 = vunpack.c.l.s4 1983009808
        %v5823 = vunpack.c.0.s8 %v5822
        %v5824 = vlaneseq
        %v5825 = vshrl.u32 %v5824, 7
        %v5826 = vsub.s32 %v5823, %v5825
        %v5827 = vrot.slane %v1050, %v5826
        %v5829 = vunpack.c.l.s4 1983009808
        %v5830 = vunpack.c.0.s8 %v5829
        %v5831 = vlaneseq
        %v5832 = vshrl.u32 %v5831, 7
        %v5833 = vsub.s32 %v5830, %v5832
        %v5834 = vrot.slane %v5820, %v5833
        %v5835 = vcombine.high %v1052, 0.0
        %v5837 = vunpack.c.l.s4 1983009808
        %v5838 = vunpack.c.0.s8 %v5837
        %v5839 = vlaneseq
        %v5840 = vshrl.u32 %v5839, 7
        %v5841 = vsub.s32 %v5838, %v5840
        %v5842 = vrot.slane %v1052, %v5841
        %v5844 = vunpack.c.l.s4 1983009808
        %v5845 = vunpack.c.0.s8 %v5844
        %v5846 = vlaneseq
        %v5847 = vshrl.u32 %v5846, 7
        %v5848 = vsub.s32 %v5845, %v5847
        %v5849 = vrot.slane %v5835, %v5848
        %v5850 = vcombine.low %v5827, %v5842
        %v5851 = vcombine.high %v5827, %v5842
        %v5853 = vunpack.c.l.s4 1934713408
        %v5854 = vunpack.c.0.s8 %v5853
        %v5855 = vlaneseq
        %v5856 = vshrl.u32 %v5855, 7
        %v5857 = vsub.s32 %v5854, %v5856
        %v5858 = vrot.slane %v5850, %v5857
        %v5860 = vunpack.c.l.s4 1934713408
        %v5861 = vunpack.c.0.s8 %v5860
        %v5862 = vlaneseq
        %v5863 = vshrl.u32 %v5862, 7
        %v5864 = vsub.s32 %v5861, %v5863
        %v5865 = vrot.slane %v5851, %v5864
        %v5866 = vcombine.low %v5834, %v5849
        %v5867 = vcombine.high %v5834, %v5849
        %v5869 = vunpack.c.l.s4 1934713408
        %v5870 = vunpack.c.0.s8 %v5869
        %v5871 = vlaneseq
        %v5872 = vshrl.u32 %v5871, 7
        %v5873 = vsub.s32 %v5870, %v5872
        %v5874 = vrot.slane %v5866, %v5873
        %v5876 = vunpack.c.l.s4 1934713408
        %v5877 = vunpack.c.0.s8 %v5876
        %v5878 = vlaneseq
        %v5879 = vshrl.u32 %v5878, 7
        %v5880 = vsub.s32 %v5877, %v5879
        %v5881 = vrot.slane %v5867, %v5880
        %v5882 = vcombine.high %v5858, 0.0
        %v5883 = vcombine.high %v5865, 0.0
        %v5884 = vcombine.high %v5874, 0.0
        %v5885 = vcombine.high %v5881, 0.0
        %v5886 = vcombine.low %v4868, %v4875
        %v5888 = vunpack.c.l.s4 1983009808
        %v5889 = vunpack.c.0.s8 %v5888
        %v5890 = vlaneseq
        %v5891 = vshrl.u32 %v5890, 7
        %v5892 = vsub.s32 %v5889, %v5891
        %v5893 = vrot.slane %v5886, %v5892
        %v5894 = vcombine.low %v4892, %v4893
        %v5896 = vunpack.c.l.s4 1983009808
        %v5897 = vunpack.c.0.s8 %v5896
        %v5898 = vlaneseq
        %v5899 = vshrl.u32 %v5898, 7
        %v5900 = vsub.s32 %v5897, %v5899
        %v5901 = vrot.slane %v5894, %v5900
        %v5902 = vcombine.low %v4884, %v4891
        %v5904 = vunpack.c.l.s4 1983009808
        %v5905 = vunpack.c.0.s8 %v5904
        %v5906 = vlaneseq
        %v5907 = vshrl.u32 %v5906, 7
        %v5908 = vsub.s32 %v5905, %v5907
        %v5909 = vrot.slane %v5902, %v5908
        %v5910 = vcombine.low %v4894, %v4895
        %v5912 = vunpack.c.l.s4 1983009808
        %v5913 = vunpack.c.0.s8 %v5912
        %v5914 = vlaneseq
        %v5915 = vshrl.u32 %v5914, 7
        %v5916 = vsub.s32 %v5913, %v5915
        %v5917 = vrot.slane %v5910, %v5916
        %v5918 = vcombine.low %v5893, %v5901
        %v5920 = vunpack.c.l.s4 1934713408
        %v5921 = vunpack.c.0.s8 %v5920
        %v5922 = vlaneseq
        %v5923 = vshrl.u32 %v5922, 7
        %v5924 = vsub.s32 %v5921, %v5923
        %v5925 = vrot.slane %v5918, %v5924
        %v5926 = vcombine.low %v5909, %v5917
        %v5928 = vunpack.c.l.s4 1934713408
        %v5929 = vunpack.c.0.s8 %v5928
        %v5930 = vlaneseq
        %v5931 = vshrl.u32 %v5930, 7
        %v5932 = vsub.s32 %v5929, %v5931
        %v5933 = vrot.slane %v5926, %v5932
        %v5934 = vcombine.low %v5925, %v5933
        %v5935 = vcombine.high %v5925, %v5933
        %v5936 = vcombine.low %v4934, %v4941
        %v5938 = vunpack.c.l.s4 1983009808
        %v5939 = vunpack.c.0.s8 %v5938
        %v5940 = vlaneseq
        %v5941 = vshrl.u32 %v5940, 7
        %v5942 = vsub.s32 %v5939, %v5941
        %v5943 = vrot.slane %v5936, %v5942
        %v5944 = vcombine.low %v4958, %v4959
        %v5946 = vunpack.c.l.s4 1983009808
        %v5947 = vunpack.c.0.s8 %v5946
        %v5948 = vlaneseq
        %v5949 = vshrl.u32 %v5948, 7
        %v5950 = vsub.s32 %v5947, %v5949
        %v5951 = vrot.slane %v5944, %v5950
        %v5952 = vcombine.low %v4950, %v4957
        %v5954 = vunpack.c.l.s4 1983009808
        %v5955 = vunpack.c.0.s8 %v5954
        %v5956 = vlaneseq
        %v5957 = vshrl.u32 %v5956, 7
        %v5958 = vsub.s32 %v5955, %v5957
        %v5959 = vrot.slane %v5952, %v5958
        %v5960 = vcombine.low %v4960, %v4961
        %v5962 = vunpack.c.l.s4 1983009808
        %v5963 = vunpack.c.0.s8 %v5962
        %v5964 = vlaneseq
        %v5965 = vshrl.u32 %v5964, 7
        %v5966 = vsub.s32 %v5963, %v5965
        %v5967 = vrot.slane %v5960, %v5966
        %v5968 = vcombine.low %v5943, %v5951
        %v5970 = vunpack.c.l.s4 1934713408
        %v5971 = vunpack.c.0.s8 %v5970
        %v5972 = vlaneseq
        %v5973 = vshrl.u32 %v5972, 7
        %v5974 = vsub.s32 %v5971, %v5973
        %v5975 = vrot.slane %v5968, %v5974
        %v5976 = vcombine.low %v5959, %v5967
        %v5978 = vunpack.c.l.s4 1934713408
        %v5979 = vunpack.c.0.s8 %v5978
        %v5980 = vlaneseq
        %v5981 = vshrl.u32 %v5980, 7
        %v5982 = vsub.s32 %v5979, %v5981
        %v5983 = vrot.slane %v5976, %v5982
        %v5984 = vcombine.low %v5975, %v5983
        %v5985 = vcombine.high %v5975, %v5983
        %v5986 = vcombine.low %v5000, %v5007
        %v5988 = vunpack.c.l.s4 1983009808
        %v5989 = vunpack.c.0.s8 %v5988
        %v5990 = vlaneseq
        %v5991 = vshrl.u32 %v5990, 7
        %v5992 = vsub.s32 %v5989, %v5991
        %v5993 = vrot.slane %v5986, %v5992
        %v5994 = vcombine.low %v5024, %v5025
        %v5996 = vunpack.c.l.s4 1983009808
        %v5997 = vunpack.c.0.s8 %v5996
        %v5998 = vlaneseq
        %v5999 = vshrl.u32 %v5998, 7
        %v6000 = vsub.s32 %v5997, %v5999
        %v6001 = vrot.slane %v5994, %v6000
        %v6002 = vcombine.low %v5016, %v5023
        %v6004 = vunpack.c.l.s4 1983009808
        %v6005 = vunpack.c.0.s8 %v6004
        %v6006 = vlaneseq
        %v6007 = vshrl.u32 %v6006, 7
        %v6008 = vsub.s32 %v6005, %v6007
        %v6009 = vrot.slane %v6002, %v6008
        %v6010 = vcombine.low %v5026, %v5027
        %v6012 = vunpack.c.l.s4 1983009808
        %v6013 = vunpack.c.0.s8 %v6012
        %v6014 = vlaneseq
        %v6015 = vshrl.u32 %v6014, 7
        %v6016 = vsub.s32 %v6013, %v6015
        %v6017 = vrot.slane %v6010, %v6016
        %v6018 = vcombine.low %v5993, %v6001
        %v6020 = vunpack.c.l.s4 1934713408
        %v6021 = vunpack.c.0.s8 %v6020
        %v6022 = vlaneseq
        %v6023 = vshrl.u32 %v6022, 7
        %v6024 = vsub.s32 %v6021, %v6023
        %v6025 = vrot.slane %v6018, %v6024
        %v6026 = vcombine.low %v6009, %v6017
        %v6028 = vunpack.c.l.s4 1934713408
        %v6029 = vunpack.c.0.s8 %v6028
        %v6030 = vlaneseq
        %v6031 = vshrl.u32 %v6030, 7
        %v6032 = vsub.s32 %v6029, %v6031
        %v6033 = vrot.slane %v6026, %v6032
        %v6034 = vcombine.low %v6025, %v6033
        %v6035 = vcombine.high %v6025, %v6033
        %v6036 = vcombine.low %v5066, %v5073
        %v6038 = vunpack.c.l.s4 1983009808
        %v6039 = vunpack.c.0.s8 %v6038
        %v6040 = vlaneseq
        %v6041 = vshrl.u32 %v6040, 7
        %v6042 = vsub.s32 %v6039, %v6041
        %v6043 = vrot.slane %v6036, %v6042
        %v6044 = vcombine.low %v5090, %v5091
        %v6046 = vunpack.c.l.s4 1983009808
        %v6047 = vunpack.c.0.s8 %v6046
        %v6048 = vlaneseq
        %v6049 = vshrl.u32 %v6048, 7
        %v6050 = vsub.s32 %v6047, %v6049
        %v6051 = vrot.slane %v6044, %v6050
        %v6052 = vcombine.low %v5082, %v5089
        %v6054 = vunpack.c.l.s4 1983009808
        %v6055 = vunpack.c.0.s8 %v6054
        %v6056 = vlaneseq
        %v6057 = vshrl.u32 %v6056, 7
        %v6058 = vsub.s32 %v6055, %v6057
        %v6059 = vrot.slane %v6052, %v6058
        %v6060 = vcombine.low %v5092, %v5093
        %v6062 = vunpack.c.l.s4 1983009808
        %v6063 = vunpack.c.0.s8 %v6062
        %v6064 = vlaneseq
        %v6065 = vshrl.u32 %v6064, 7
        %v6066 = vsub.s32 %v6063, %v6065
        %v6067 = vrot.slane %v6060, %v6066
        %v6068 = vcombine.low %v6043, %v6051
        %v6070 = vunpack.c.l.s4 1934713408
        %v6071 = vunpack.c.0.s8 %v6070
        %v6072 = vlaneseq
        %v6073 = vshrl.u32 %v6072, 7
        %v6074 = vsub.s32 %v6071, %v6073
        %v6075 = vrot.slane %v6068, %v6074
        %v6076 = vcombine.low %v6059, %v6067
        %v6078 = vunpack.c.l.s4 1934713408
        %v6079 = vunpack.c.0.s8 %v6078
        %v6080 = vlaneseq
        %v6081 = vshrl.u32 %v6080, 7
        %v6082 = vsub.s32 %v6079, %v6081
        %v6083 = vrot.slane %v6076, %v6082
        %v6084 = vcombine.low %v6075, %v6083
        %v6085 = vcombine.high %v6075, %v6083
        %v6086 = vcombine.low %v5132, %v5139
        %v6088 = vunpack.c.l.s4 1983009808
        %v6089 = vunpack.c.0.s8 %v6088
        %v6090 = vlaneseq
        %v6091 = vshrl.u32 %v6090, 7
        %v6092 = vsub.s32 %v6089, %v6091
        %v6093 = vrot.slane %v6086, %v6092
        %v6094 = vcombine.low %v5156, %v5157
        %v6096 = vunpack.c.l.s4 1983009808
        %v6097 = vunpack.c.0.s8 %v6096
        %v6098 = vlaneseq
        %v6099 = vshrl.u32 %v6098, 7
        %v6100 = vsub.s32 %v6097, %v6099
        %v6101 = vrot.slane %v6094, %v6100
        %v6102 = vcombine.low %v5148, %v5155
        %v6104 = vunpack.c.l.s4 1983009808
        %v6105 = vunpack.c.0.s8 %v6104
        %v6106 = vlaneseq
        %v6107 = vshrl.u32 %v6106, 7
        %v6108 = vsub.s32 %v6105, %v6107
        %v6109 = vrot.slane %v6102, %v6108
        %v6110 = vcombine.low %v5158, %v5159
        %v6112 = vunpack.c.l.s4 1983009808
        %v6113 = vunpack.c.0.s8 %v6112
        %v6114 = vlaneseq
        %v6115 = vshrl.u32 %v6114, 7
        %v6116 = vsub.s32 %v6113, %v6115
        %v6117 = vrot.slane %v6110, %v6116
        %v6118 = vcombine.low %v6093, %v6101
        %v6120 = vunpack.c.l.s4 1934713408
        %v6121 = vunpack.c.0.s8 %v6120
        %v6122 = vlaneseq
        %v6123 = vshrl.u32 %v6122, 7
        %v6124 = vsub.s32 %v6121, %v6123
        %v6125 = vrot.slane %v6118, %v6124
        %v6126 = vcombine.low %v6109, %v6117
        %v6128 = vunpack.c.l.s4 1934713408
        %v6129 = vunpack.c.0.s8 %v6128
        %v6130 = vlaneseq
        %v6131 = vshrl.u32 %v6130, 7
        %v6132 = vsub.s32 %v6129, %v6131
        %v6133 = vrot.slane %v6126, %v6132
        %v6134 = vcombine.low %v6125, %v6133
        %v6135 = vcombine.high %v6125, %v6133
        %v6136 = vcombine.low %v5198, %v5205
        %v6138 = vunpack.c.l.s4 1983009808
        %v6139 = vunpack.c.0.s8 %v6138
        %v6140 = vlaneseq
        %v6141 = vshrl.u32 %v6140, 7
        %v6142 = vsub.s32 %v6139, %v6141
        %v6143 = vrot.slane %v6136, %v6142
        %v6144 = vcombine.low %v5222, %v5223
        %v6146 = vunpack.c.l.s4 1983009808
        %v6147 = vunpack.c.0.s8 %v6146
        %v6148 = vlaneseq
        %v6149 = vshrl.u32 %v6148, 7
        %v6150 = vsub.s32 %v6147, %v6149
        %v6151 = vrot.slane %v6144, %v6150
        %v6152 = vcombine.low %v5214, %v5221
        %v6154 = vunpack.c.l.s4 1983009808
        %v6155 = vunpack.c.0.s8 %v6154
        %v6156 = vlaneseq
        %v6157 = vshrl.u32 %v6156, 7
        %v6158 = vsub.s32 %v6155, %v6157
        %v6159 = vrot.slane %v6152, %v6158
        %v6160 = vcombine.low %v5224, %v5225
        %v6162 = vunpack.c.l.s4 1983009808
        %v6163 = vunpack.c.0.s8 %v6162
        %v6164 = vlaneseq
        %v6165 = vshrl.u32 %v6164, 7
        %v6166 = vsub.s32 %v6163, %v6165
        %v6167 = vrot.slane %v6160, %v6166
        %v6168 = vcombine.low %v6143, %v6151
        %v6170 = vunpack.c.l.s4 1934713408
        %v6171 = vunpack.c.0.s8 %v6170
        %v6172 = vlaneseq
        %v6173 = vshrl.u32 %v6172, 7
        %v6174 = vsub.s32 %v6171, %v6173
        %v6175 = vrot.slane %v6168, %v6174
        %v6176 = vcombine.low %v6159, %v6167
        %v6178 = vunpack.c.l.s4 1934713408
        %v6179 = vunpack.c.0.s8 %v6178
        %v6180 = vlaneseq
        %v6181 = vshrl.u32 %v6180, 7
        %v6182 = vsub.s32 %v6179, %v6181
        %v6183 = vrot.slane %v6176, %v6182
        %v6184 = vcombine.low %v6175, %v6183
        %v6185 = vcombine.high %v6175, %v6183
        %v6186 = vcombine.low %v5264, %v5271
        %v6188 = vunpack.c.l.s4 1983009808
        %v6189 = vunpack.c.0.s8 %v6188
        %v6190 = vlaneseq
        %v6191 = vshrl.u32 %v6190, 7
        %v6192 = vsub.s32 %v6189, %v6191
        %v6193 = vrot.slane %v6186, %v6192
        %v6194 = vcombine.low %v5288, %v5289
        %v6196 = vunpack.c.l.s4 1983009808
        %v6197 = vunpack.c.0.s8 %v6196
        %v6198 = vlaneseq
        %v6199 = vshrl.u32 %v6198, 7
        %v6200 = vsub.s32 %v6197, %v6199
        %v6201 = vrot.slane %v6194, %v6200
        %v6202 = vcombine.low %v5280, %v5287
        %v6204 = vunpack.c.l.s4 1983009808
        %v6205 = vunpack.c.0.s8 %v6204
        %v6206 = vlaneseq
        %v6207 = vshrl.u32 %v6206, 7
        %v6208 = vsub.s32 %v6205, %v6207
        %v6209 = vrot.slane %v6202, %v6208
        %v6210 = vcombine.low %v5290, %v5291
        %v6212 = vunpack.c.l.s4 1983009808
        %v6213 = vunpack.c.0.s8 %v6212
        %v6214 = vlaneseq
        %v6215 = vshrl.u32 %v6214, 7
        %v6216 = vsub.s32 %v6213, %v6215
        %v6217 = vrot.slane %v6210, %v6216
        %v6218 = vcombine.low %v6193, %v6201
        %v6220 = vunpack.c.l.s4 1934713408
        %v6221 = vunpack.c.0.s8 %v6220
        %v6222 = vlaneseq
        %v6223 = vshrl.u32 %v6222, 7
        %v6224 = vsub.s32 %v6221, %v6223
        %v6225 = vrot.slane %v6218, %v6224
        %v6226 = vcombine.low %v6209, %v6217
        %v6228 = vunpack.c.l.s4 1934713408
        %v6229 = vunpack.c.0.s8 %v6228
        %v6230 = vlaneseq
        %v6231 = vshrl.u32 %v6230, 7
        %v6232 = vsub.s32 %v6229, %v6231
        %v6233 = vrot.slane %v6226, %v6232
        %v6234 = vcombine.low %v6225, %v6233
        %v6235 = vcombine.high %v6225, %v6233
        %v6236 = vcombine.low %v5330, %v5337
        %v6238 = vunpack.c.l.s4 1983009808
        %v6239 = vunpack.c.0.s8 %v6238
        %v6240 = vlaneseq
        %v6241 = vshrl.u32 %v6240, 7
        %v6242 = vsub.s32 %v6239, %v6241
        %v6243 = vrot.slane %v6236, %v6242
        %v6244 = vcombine.low %v5354, %v5355
        %v6246 = vunpack.c.l.s4 1983009808
        %v6247 = vunpack.c.0.s8 %v6246
        %v6248 = vlaneseq
        %v6249 = vshrl.u32 %v6248, 7
        %v6250 = vsub.s32 %v6247, %v6249
        %v6251 = vrot.slane %v6244, %v6250
        %v6252 = vcombine.low %v5346, %v5353
        %v6254 = vunpack.c.l.s4 1983009808
        %v6255 = vunpack.c.0.s8 %v6254
        %v6256 = vlaneseq
        %v6257 = vshrl.u32 %v6256, 7
        %v6258 = vsub.s32 %v6255, %v6257
        %v6259 = vrot.slane %v6252, %v6258
        %v6260 = vcombine.low %v5356, %v5357
        %v6262 = vunpack.c.l.s4 1983009808
        %v6263 = vunpack.c.0.s8 %v6262
        %v6264 = vlaneseq
        %v6265 = vshrl.u32 %v6264, 7
        %v6266 = vsub.s32 %v6263, %v6265
        %v6267 = vrot.slane %v6260, %v6266
        %v6268 = vcombine.low %v6243, %v6251
        %v6270 = vunpack.c.l.s4 1934713408
        %v6271 = vunpack.c.0.s8 %v6270
        %v6272 = vlaneseq
        %v6273 = vshrl.u32 %v6272, 7
        %v6274 = vsub.s32 %v6271, %v6273
        %v6275 = vrot.slane %v6268, %v6274
        %v6276 = vcombine.low %v6259, %v6267
        %v6278 = vunpack.c.l.s4 1934713408
        %v6279 = vunpack.c.0.s8 %v6278
        %v6280 = vlaneseq
        %v6281 = vshrl.u32 %v6280, 7
        %v6282 = vsub.s32 %v6279, %v6281
        %v6283 = vrot.slane %v6276, %v6282
        %v6284 = vcombine.low %v6275, %v6283
        %v6285 = vcombine.high %v6275, %v6283
        %v6286 = vcombine.low %v5396, %v5403
        %v6288 = vunpack.c.l.s4 1983009808
        %v6289 = vunpack.c.0.s8 %v6288
        %v6290 = vlaneseq
        %v6291 = vshrl.u32 %v6290, 7
        %v6292 = vsub.s32 %v6289, %v6291
        %v6293 = vrot.slane %v6286, %v6292
        %v6294 = vcombine.low %v5420, %v5421
        %v6296 = vunpack.c.l.s4 1983009808
        %v6297 = vunpack.c.0.s8 %v6296
        %v6298 = vlaneseq
        %v6299 = vshrl.u32 %v6298, 7
        %v6300 = vsub.s32 %v6297, %v6299
        %v6301 = vrot.slane %v6294, %v6300
        %v6302 = vcombine.low %v5412, %v5419
        %v6304 = vunpack.c.l.s4 1983009808
        %v6305 = vunpack.c.0.s8 %v6304
        %v6306 = vlaneseq
        %v6307 = vshrl.u32 %v6306, 7
        %v6308 = vsub.s32 %v6305, %v6307
        %v6309 = vrot.slane %v6302, %v6308
        %v6310 = vcombine.low %v5422, %v5423
        %v6312 = vunpack.c.l.s4 1983009808
        %v6313 = vunpack.c.0.s8 %v6312
        %v6314 = vlaneseq
        %v6315 = vshrl.u32 %v6314, 7
        %v6316 = vsub.s32 %v6313, %v6315
        %v6317 = vrot.slane %v6310, %v6316
        %v6318 = vcombine.low %v6293, %v6301
        %v6320 = vunpack.c.l.s4 1934713408
        %v6321 = vunpack.c.0.s8 %v6320
        %v6322 = vlaneseq
        %v6323 = vshrl.u32 %v6322, 7
        %v6324 = vsub.s32 %v6321, %v6323
        %v6325 = vrot.slane %v6318, %v6324
        %v6326 = vcombine.low %v6309, %v6317
        %v6328 = vunpack.c.l.s4 1934713408
        %v6329 = vunpack.c.0.s8 %v6328
        %v6330 = vlaneseq
        %v6331 = vshrl.u32 %v6330, 7
        %v6332 = vsub.s32 %v6329, %v6331
        %v6333 = vrot.slane %v6326, %v6332
        %v6334 = vcombine.low %v6325, %v6333
        %v6335 = vcombine.high %v6325, %v6333
        %v6336 = vcombine.low %v5462, %v5469
        %v6338 = vunpack.c.l.s4 1983009808
        %v6339 = vunpack.c.0.s8 %v6338
        %v6340 = vlaneseq
        %v6341 = vshrl.u32 %v6340, 7
        %v6342 = vsub.s32 %v6339, %v6341
        %v6343 = vrot.slane %v6336, %v6342
        %v6344 = vcombine.low %v5486, %v5487
        %v6346 = vunpack.c.l.s4 1983009808
        %v6347 = vunpack.c.0.s8 %v6346
        %v6348 = vlaneseq
        %v6349 = vshrl.u32 %v6348, 7
        %v6350 = vsub.s32 %v6347, %v6349
        %v6351 = vrot.slane %v6344, %v6350
        %v6352 = vcombine.low %v5478, %v5485
        %v6354 = vunpack.c.l.s4 1983009808
        %v6355 = vunpack.c.0.s8 %v6354
        %v6356 = vlaneseq
        %v6357 = vshrl.u32 %v6356, 7
        %v6358 = vsub.s32 %v6355, %v6357
        %v6359 = vrot.slane %v6352, %v6358
        %v6360 = vcombine.low %v5488, %v5489
        %v6362 = vunpack.c.l.s4 1983009808
        %v6363 = vunpack.c.0.s8 %v6362
        %v6364 = vlaneseq
        %v6365 = vshrl.u32 %v6364, 7
        %v6366 = vsub.s32 %v6363, %v6365
        %v6367 = vrot.slane %v6360, %v6366
        %v6368 = vcombine.low %v6343, %v6351
        %v6370 = vunpack.c.l.s4 1934713408
        %v6371 = vunpack.c.0.s8 %v6370
        %v6372 = vlaneseq
        %v6373 = vshrl.u32 %v6372, 7
        %v6374 = vsub.s32 %v6371, %v6373
        %v6375 = vrot.slane %v6368, %v6374
        %v6376 = vcombine.low %v6359, %v6367
        %v6378 = vunpack.c.l.s4 1934713408
        %v6379 = vunpack.c.0.s8 %v6378
        %v6380 = vlaneseq
        %v6381 = vshrl.u32 %v6380, 7
        %v6382 = vsub.s32 %v6379, %v6381
        %v6383 = vrot.slane %v6376, %v6382
        %v6384 = vcombine.low %v6375, %v6383
        %v6385 = vcombine.high %v6375, %v6383
        %v6386 = vcombine.low %v5528, %v5535
        %v6388 = vunpack.c.l.s4 1983009808
        %v6389 = vunpack.c.0.s8 %v6388
        %v6390 = vlaneseq
        %v6391 = vshrl.u32 %v6390, 7
        %v6392 = vsub.s32 %v6389, %v6391
        %v6393 = vrot.slane %v6386, %v6392
        %v6394 = vcombine.low %v5552, %v5553
        %v6396 = vunpack.c.l.s4 1983009808
        %v6397 = vunpack.c.0.s8 %v6396
        %v6398 = vlaneseq
        %v6399 = vshrl.u32 %v6398, 7
        %v6400 = vsub.s32 %v6397, %v6399
        %v6401 = vrot.slane %v6394, %v6400
        %v6402 = vcombine.low %v5544, %v5551
        %v6404 = vunpack.c.l.s4 1983009808
        %v6405 = vunpack.c.0.s8 %v6404
        %v6406 = vlaneseq
        %v6407 = vshrl.u32 %v6406, 7
        %v6408 = vsub.s32 %v6405, %v6407
        %v6409 = vrot.slane %v6402, %v6408
        %v6410 = vcombine.low %v5554, %v5555
        %v6412 = vunpack.c.l.s4 1983009808
        %v6413 = vunpack.c.0.s8 %v6412
        %v6414 = vlaneseq
        %v6415 = vshrl.u32 %v6414, 7
        %v6416 = vsub.s32 %v6413, %v6415
        %v6417 = vrot.slane %v6410, %v6416
        %v6418 = vcombine.low %v6393, %v6401
        %v6420 = vunpack.c.l.s4 1934713408
        %v6421 = vunpack.c.0.s8 %v6420
        %v6422 = vlaneseq
        %v6423 = vshrl.u32 %v6422, 7
        %v6424 = vsub.s32 %v6421, %v6423
        %v6425 = vrot.slane %v6418, %v6424
        %v6426 = vcombine.low %v6409, %v6417
        %v6428 = vunpack.c.l.s4 1934713408
        %v6429 = vunpack.c.0.s8 %v6428
        %v6430 = vlaneseq
        %v6431 = vshrl.u32 %v6430, 7
        %v6432 = vsub.s32 %v6429, %v6431
        %v6433 = vrot.slane %v6426, %v6432
        %v6434 = vcombine.low %v6425, %v6433
        %v6435 = vcombine.high %v6425, %v6433
        %v6436 = vcombine.low %v5594, %v5601
        %v6438 = vunpack.c.l.s4 1983009808
        %v6439 = vunpack.c.0.s8 %v6438
        %v6440 = vlaneseq
        %v6441 = vshrl.u32 %v6440, 7
        %v6442 = vsub.s32 %v6439, %v6441
        %v6443 = vrot.slane %v6436, %v6442
        %v6444 = vcombine.low %v5618, %v5619
        %v6446 = vunpack.c.l.s4 1983009808
        %v6447 = vunpack.c.0.s8 %v6446
        %v6448 = vlaneseq
        %v6449 = vshrl.u32 %v6448, 7
        %v6450 = vsub.s32 %v6447, %v6449
        %v6451 = vrot.slane %v6444, %v6450
        %v6452 = vcombine.low %v5610, %v5617
        %v6454 = vunpack.c.l.s4 1983009808
        %v6455 = vunpack.c.0.s8 %v6454
        %v6456 = vlaneseq
        %v6457 = vshrl.u32 %v6456, 7
        %v6458 = vsub.s32 %v6455, %v6457
        %v6459 = vrot.slane %v6452, %v6458
        %v6460 = vcombine.low %v5620, %v5621
        %v6462 = vunpack.c.l.s4 1983009808
        %v6463 = vunpack.c.0.s8 %v6462
        %v6464 = vlaneseq
        %v6465 = vshrl.u32 %v6464, 7
        %v6466 = vsub.s32 %v6463, %v6465
        %v6467 = vrot.slane %v6460, %v6466
        %v6468 = vcombine.low %v6443, %v6451
        %v6470 = vunpack.c.l.s4 1934713408
        %v6471 = vunpack.c.0.s8 %v6470
        %v6472 = vlaneseq
        %v6473 = vshrl.u32 %v6472, 7
        %v6474 = vsub.s32 %v6471, %v6473
        %v6475 = vrot.slane %v6468, %v6474
        %v6476 = vcombine.low %v6459, %v6467
        %v6478 = vunpack.c.l.s4 1934713408
        %v6479 = vunpack.c.0.s8 %v6478
        %v6480 = vlaneseq
        %v6481 = vshrl.u32 %v6480, 7
        %v6482 = vsub.s32 %v6479, %v6481
        %v6483 = vrot.slane %v6476, %v6482
        %v6484 = vcombine.low %v6475, %v6483
        %v6485 = vcombine.high %v6475, %v6483
        %v6486 = vcombine.low %v5660, %v5667
        %v6488 = vunpack.c.l.s4 1983009808
        %v6489 = vunpack.c.0.s8 %v6488
        %v6490 = vlaneseq
        %v6491 = vshrl.u32 %v6490, 7
        %v6492 = vsub.s32 %v6489, %v6491
        %v6493 = vrot.slane %v6486, %v6492
        %v6494 = vcombine.low %v5684, %v5685
        %v6496 = vunpack.c.l.s4 1983009808
        %v6497 = vunpack.c.0.s8 %v6496
        %v6498 = vlaneseq
        %v6499 = vshrl.u32 %v6498, 7
        %v6500 = vsub.s32 %v6497, %v6499
        %v6501 = vrot.slane %v6494, %v6500
        %v6502 = vcombine.low %v5676, %v5683
        %v6504 = vunpack.c.l.s4 1983009808
        %v6505 = vunpack.c.0.s8 %v6504
        %v6506 = vlaneseq
        %v6507 = vshrl.u32 %v6506, 7
        %v6508 = vsub.s32 %v6505, %v6507
        %v6509 = vrot.slane %v6502, %v6508
        %v6510 = vcombine.low %v5686, %v5687
        %v6512 = vunpack.c.l.s4 1983009808
        %v6513 = vunpack.c.0.s8 %v6512
        %v6514 = vlaneseq
        %v6515 = vshrl.u32 %v6514, 7
        %v6516 = vsub.s32 %v6513, %v6515
        %v6517 = vrot.slane %v6510, %v6516
        %v6518 = vcombine.low %v6493, %v6501
        %v6520 = vunpack.c.l.s4 1934713408
        %v6521 = vunpack.c.0.s8 %v6520
        %v6522 = vlaneseq
        %v6523 = vshrl.u32 %v6522, 7
        %v6524 = vsub.s32 %v6521, %v6523
        %v6525 = vrot.slane %v6518, %v6524
        %v6526 = vcombine.low %v6509, %v6517
        %v6528 = vunpack.c.l.s4 1934713408
        %v6529 = vunpack.c.0.s8 %v6528
        %v6530 = vlaneseq
        %v6531 = vshrl.u32 %v6530, 7
        %v6532 = vsub.s32 %v6529, %v6531
        %v6533 = vrot.slane %v6526, %v6532
        %v6534 = vcombine.low %v6525, %v6533
        %v6535 = vcombine.high %v6525, %v6533
        %v6536 = vcombine.low %v5726, %v5733
        %v6538 = vunpack.c.l.s4 1983009808
        %v6539 = vunpack.c.0.s8 %v6538
        %v6540 = vlaneseq
        %v6541 = vshrl.u32 %v6540, 7
        %v6542 = vsub.s32 %v6539, %v6541
        %v6543 = vrot.slane %v6536, %v6542
        %v6544 = vcombine.low %v5750, %v5751
        %v6546 = vunpack.c.l.s4 1983009808
        %v6547 = vunpack.c.0.s8 %v6546
        %v6548 = vlaneseq
        %v6549 = vshrl.u32 %v6548, 7
        %v6550 = vsub.s32 %v6547, %v6549
        %v6551 = vrot.slane %v6544, %v6550
        %v6552 = vcombine.low %v5742, %v5749
        %v6554 = vunpack.c.l.s4 1983009808
        %v6555 = vunpack.c.0.s8 %v6554
        %v6556 = vlaneseq
        %v6557 = vshrl.u32 %v6556, 7
        %v6558 = vsub.s32 %v6555, %v6557
        %v6559 = vrot.slane %v6552, %v6558
        %v6560 = vcombine.low %v5752, %v5753
        %v6562 = vunpack.c.l.s4 1983009808
        %v6563 = vunpack.c.0.s8 %v6562
        %v6564 = vlaneseq
        %v6565 = vshrl.u32 %v6564, 7
        %v6566 = vsub.s32 %v6563, %v6565
        %v6567 = vrot.slane %v6560, %v6566
        %v6568 = vcombine.low %v6543, %v6551
        %v6570 = vunpack.c.l.s4 1934713408
        %v6571 = vunpack.c.0.s8 %v6570
        %v6572 = vlaneseq
        %v6573 = vshrl.u32 %v6572, 7
        %v6574 = vsub.s32 %v6571, %v6573
        %v6575 = vrot.slane %v6568, %v6574
        %v6576 = vcombine.low %v6559, %v6567
        %v6578 = vunpack.c.l.s4 1934713408
        %v6579 = vunpack.c.0.s8 %v6578
        %v6580 = vlaneseq
        %v6581 = vshrl.u32 %v6580, 7
        %v6582 = vsub.s32 %v6579, %v6581
        %v6583 = vrot.slane %v6576, %v6582
        %v6584 = vcombine.low %v6575, %v6583
        %v6585 = vcombine.high %v6575, %v6583
        %v6586 = vcombine.low %v5792, %v5799
        %v6588 = vunpack.c.l.s4 1983009808
        %v6589 = vunpack.c.0.s8 %v6588
        %v6590 = vlaneseq
        %v6591 = vshrl.u32 %v6590, 7
        %v6592 = vsub.s32 %v6589, %v6591
        %v6593 = vrot.slane %v6586, %v6592
        %v6594 = vcombine.low %v5816, %v5817
        %v6596 = vunpack.c.l.s4 1983009808
        %v6597 = vunpack.c.0.s8 %v6596
        %v6598 = vlaneseq
        %v6599 = vshrl.u32 %v6598, 7
        %v6600 = vsub.s32 %v6597, %v6599
        %v6601 = vrot.slane %v6594, %v6600
        %v6602 = vcombine.low %v5808, %v5815
        %v6604 = vunpack.c.l.s4 1983009808
        %v6605 = vunpack.c.0.s8 %v6604
        %v6606 = vlaneseq
        %v6607 = vshrl.u32 %v6606, 7
        %v6608 = vsub.s32 %v6605, %v6607
        %v6609 = vrot.slane %v6602, %v6608
        %v6610 = vcombine.low %v5818, %v5819
        %v6612 = vunpack.c.l.s4 1983009808
        %v6613 = vunpack.c.0.s8 %v6612
        %v6614 = vlaneseq
        %v6615 = vshrl.u32 %v6614, 7
        %v6616 = vsub.s32 %v6613, %v6615
        %v6617 = vrot.slane %v6610, %v6616
        %v6618 = vcombine.low %v6593, %v6601
        %v6620 = vunpack.c.l.s4 1934713408
        %v6621 = vunpack.c.0.s8 %v6620
        %v6622 = vlaneseq
        %v6623 = vshrl.u32 %v6622, 7
        %v6624 = vsub.s32 %v6621, %v6623
        %v6625 = vrot.slane %v6618, %v6624
        %v6626 = vcombine.low %v6609, %v6617
        %v6628 = vunpack.c.l.s4 1934713408
        %v6629 = vunpack.c.0.s8 %v6628
        %v6630 = vlaneseq
        %v6631 = vshrl.u32 %v6630, 7
        %v6632 = vsub.s32 %v6629, %v6631
        %v6633 = vrot.slane %v6626, %v6632
        %v6634 = vcombine.low %v6625, %v6633
        %v6635 = vcombine.high %v6625, %v6633
        %v6636 = vcombine.low %v5858, %v5865
        %v6638 = vunpack.c.l.s4 1983009808
        %v6639 = vunpack.c.0.s8 %v6638
        %v6640 = vlaneseq
        %v6641 = vshrl.u32 %v6640, 7
        %v6642 = vsub.s32 %v6639, %v6641
        %v6643 = vrot.slane %v6636, %v6642
        %v6644 = vcombine.low %v5882, %v5883
        %v6646 = vunpack.c.l.s4 1983009808
        %v6647 = vunpack.c.0.s8 %v6646
        %v6648 = vlaneseq
        %v6649 = vshrl.u32 %v6648, 7
        %v6650 = vsub.s32 %v6647, %v6649
        %v6651 = vrot.slane %v6644, %v6650
        %v6652 = vcombine.low %v5874, %v5881
        %v6654 = vunpack.c.l.s4 1983009808
        %v6655 = vunpack.c.0.s8 %v6654
        %v6656 = vlaneseq
        %v6657 = vshrl.u32 %v6656, 7
        %v6658 = vsub.s32 %v6655, %v6657
        %v6659 = vrot.slane %v6652, %v6658
        %v6660 = vcombine.low %v5884, %v5885
        %v6662 = vunpack.c.l.s4 1983009808
        %v6663 = vunpack.c.0.s8 %v6662
        %v6664 = vlaneseq
        %v6665 = vshrl.u32 %v6664, 7
        %v6666 = vsub.s32 %v6663, %v6665
        %v6667 = vrot.slane %v6660, %v6666
        %v6668 = vcombine.low %v6643, %v6651
        %v6670 = vunpack.c.l.s4 1934713408
        %v6671 = vunpack.c.0.s8 %v6670
        %v6672 = vlaneseq
        %v6673 = vshrl.u32 %v6672, 7
        %v6674 = vsub.s32 %v6671, %v6673
        %v6675 = vrot.slane %v6668, %v6674
        %v6676 = vcombine.low %v6659, %v6667
        %v6678 = vunpack.c.l.s4 1934713408
        %v6679 = vunpack.c.0.s8 %v6678
        %v6680 = vlaneseq
        %v6681 = vshrl.u32 %v6680, 7
        %v6682 = vsub.s32 %v6679, %v6681
        %v6683 = vrot.slane %v6676, %v6682
        %v6684 = vcombine.low %v6675, %v6683
        %v6685 = vcombine.high %v6675, %v6683
        %6686 = vst [vmem:[%s310] sm:$0xff] %v5934
        %6687 = vst [vmem:[%s310 + $0x8] sm:$0xff] %v5984
        %6688 = vst [vmem:[%s310 + $0x10] sm:$0xff] %v6034
        %6689 = vst [vmem:[%s310 + $0x18] sm:$0xff] %v6084
        %6690 = vst [vmem:[%s310 + $0x20] sm:$0xff] %v6134
        %6691 = vst [vmem:[%s310 + $0x28] sm:$0xff] %v6184
        %6692 = vst [vmem:[%s310 + $0x30] sm:$0xff] %v6234
        %6693 = vst [vmem:[%s310 + $0x38] sm:$0xff] %v6284
        %6694 = vst [vmem:[%s310 + $0x40] sm:$0xff] %v6334
        %6695 = vst [vmem:[%s310 + $0x48] sm:$0xff] %v6384
        %6696 = vst [vmem:[%s310 + $0x50] sm:$0xff] %v6434
        %6697 = vst [vmem:[%s310 + $0x58] sm:$0xff] %v6484
        %6698 = vst [vmem:[%s310 + $0x60] sm:$0xff] %v6534
        %6699 = vst [vmem:[%s310 + $0x68] sm:$0xff] %v6584
        %6700 = vst [vmem:[%s310 + $0x70] sm:$0xff] %v6634
        %6701 = vst [vmem:[%s310 + $0x78] sm:$0xff] %v6684
        %6702 = vst [vmem:[%s310 + $0x80] sm:$0xff] %v5935
        %6703 = vst [vmem:[%s310 + $0x88] sm:$0xff] %v5985
        %6704 = vst [vmem:[%s310 + $0x90] sm:$0xff] %v6035
        %6705 = vst [vmem:[%s310 + $0x98] sm:$0xff] %v6085
        %6706 = vst [vmem:[%s310 + $0xa0] sm:$0xff] %v6135
        %6707 = vst [vmem:[%s310 + $0xa8] sm:$0xff] %v6185
        %6708 = vst [vmem:[%s310 + $0xb0] sm:$0xff] %v6235
        %6709 = vst [vmem:[%s310 + $0xb8] sm:$0xff] %v6285
        %6710 = vst [vmem:[%s310 + $0xc0] sm:$0xff] %v6335
        %6711 = vst [vmem:[%s310 + $0xc8] sm:$0xff] %v6385
        %6712 = vst [vmem:[%s310 + $0xd0] sm:$0xff] %v6435
        %6713 = vst [vmem:[%s310 + $0xd8] sm:$0xff] %v6485
        %6714 = vst [vmem:[%s310 + $0xe0] sm:$0xff] %v6535
        %6715 = vst [vmem:[%s310 + $0xe8] sm:$0xff] %v6585
        %6716 = vst [vmem:[%s310 + $0xf0] sm:$0xff] %v6635
        %6717 = vst [vmem:[%s310 + $0xf8] sm:$0xff] %v6685
        %s6718 = sand.u32 %s119, 1
        %s6719 = scalar_lea.sflag [#allocation4], %s6718
        %s6720 = sand.u32 %s119, 1
        %s6721 = smul.addr %s6720, 256
        %s6722 = scalar_lea.vmem [#allocation8], %s6721
        %s6723 = sand.u32 %s27, 1
        %s6724 = scalar_lea.sflag [#allocation10], %s6723
        %s6725 = sand.u32 %s147, 1
        %s6726 = smul.addr %s6725, 256
        %s6727 = scalar_lea.vmem [#allocation9], %s6726
        %s6728 = sand.u32 %s27, 1
        %s6729 = scalar_lea.sflag [#allocation10], %s6728
        %s6730 = sand.u32 %s175, 1
        %s6731 = smul.addr %s6730, 256
        %s6732 = scalar_lea.vmem [#allocation11], %s6731
        // Predicated region
        $region45: #{tpu_custom_call.1} parent=31 // pred_check
          %p6733 = pneg %p129
        $region46: #{tpu_custom_call.1} parent=31 // pred_check_branch
          %6735 = sbr.rel (%p6733) target = $region48
        $region47: #{tpu_custom_call.1} parent=31 // pred_region
          #allocation13 [shape = 'u32[6]{0}', space=smem, size = 0x18, scoped, tag = 'DMA stride descriptor']
          %s6736 = smul.u32 16, %s32
          %s6738 = ssub.s32 4096, 4096
          %6739 = vsyncadd %s6719, %s6738
          %s6740 = smul.addr %s31, 64
          %s6741 = sadd.s32 %s6736, %s6740
          %s6742 = smul.addr %s6741, 128
          %s6743 = scalar_lea.hbm %s3, %s6742
          %s6745 = sshll.u32 1, 14
          %s6746 = sxor.u32 4294967295, %s6745
          %s6749 = sshll.u32 7, 18
          %s6750 = sxor.u32 4294967295, %s6749
          %s6751 = sand.u32 0, %s6750
          %s6753 = sor.u32 %s6751, 0
          %s6754 = sshll.u32 %s6722, 4
          %s6755 = int_to_ptr.vmem [resolvable:$true] %s6754
          %6761 = sst [smem:[#allocation13]] 2048
          %s6762 = scalar_lea.smem [#allocation13], 1
          %6763 = sst [smem:[%s6762]] 4096
          %s6764 = scalar_lea.smem [#allocation13], 2
          %6765 = sst [smem:[%s6764]] 16
          %s6766 = scalar_lea.smem [#allocation13], 3
          %6767 = sst [smem:[%s6766]] 128
          %s6768 = scalar_lea.smem [#allocation13], 4
          %6769 = sst [smem:[%s6768]] 128
          %s6770 = scalar_lea.smem [#allocation13], 5
          %6771 = sst [smem:[%s6770]] 8
          %6773 = dma.general %s6755, 4096, %s6743, %s6719, 131072, [#allocation13], %s6753, 0
        $region48: #{tpu_custom_call.1} parent=31 // pred_fallthru
          _
        // Predicated region
        $region49: #{tpu_custom_call.1} parent=31 // pred_check
          %p6774 = pneg %p157
        $region50: #{tpu_custom_call.1} parent=31 // pred_check_branch
          %6776 = sbr.rel (%p6774) target = $region52
        $region51: #{tpu_custom_call.1} parent=31 // pred_region
          #allocation15 [shape = 'u32[6]{0}', space=smem, size = 0x18, scoped, tag = 'DMA stride descriptor']
          %s6777 = smul.u32 16, %s32
          %s6779 = ssub.s32 4096, 4096
          %6780 = vsyncadd %s6724, %s6779
          %s6781 = smul.addr %s31, 64
          %s6782 = sadd.s32 %s6777, %s6781
          %s6783 = smul.addr %s6782, 128
          %s6784 = scalar_lea.hbm %s4, %s6783
          %s6786 = sshll.u32 1, 14
          %s6787 = sxor.u32 4294967295, %s6786
          %s6790 = sshll.u32 7, 18
          %s6791 = sxor.u32 4294967295, %s6790
          %s6792 = sand.u32 0, %s6791
          %s6794 = sor.u32 %s6792, 0
          %s6795 = sshll.u32 %s6727, 4
          %s6796 = int_to_ptr.vmem [resolvable:$true] %s6795
          %6802 = sst [smem:[#allocation15]] 2048
          %s6803 = scalar_lea.smem [#allocation15], 1
          %6804 = sst [smem:[%s6803]] 4096
          %s6805 = scalar_lea.smem [#allocation15], 2
          %6806 = sst [smem:[%s6805]] 16
          %s6807 = scalar_lea.smem [#allocation15], 3
          %6808 = sst [smem:[%s6807]] 128
          %s6809 = scalar_lea.smem [#allocation15], 4
          %6810 = sst [smem:[%s6809]] 128
          %s6811 = scalar_lea.smem [#allocation15], 5
          %6812 = sst [smem:[%s6811]] 8
          %6814 = dma.general %s6796, 4096, %s6784, %s6724, 131072, [#allocation15], %s6794, 0
        $region52: #{tpu_custom_call.1} parent=31 // pred_fallthru
          _
        // Predicated region
        $region53: #{tpu_custom_call.1} parent=31 // pred_check
          %p6815 = pneg %p185
        $region54: #{tpu_custom_call.1} parent=31 // pred_check_branch
          %6817 = sbr.rel (%p6815) target = $region56
        $region55: #{tpu_custom_call.1} parent=31 // pred_region
          #allocation17 [shape = 'u32[6]{0}', space=smem, size = 0x18, scoped, tag = 'DMA stride descriptor']
          %s6818 = smul.u32 16, %s32
          %s6820 = ssub.s32 4096, 4096
          %6821 = vsyncadd %s6729, %s6820
          %s6822 = smul.addr %s31, 64
          %s6823 = sadd.s32 %s6818, %s6822
          %s6824 = smul.addr %s6823, 128
          %s6825 = scalar_lea.hbm %s5, %s6824
          %s6827 = sshll.u32 1, 14
          %s6828 = sxor.u32 4294967295, %s6827
          %s6831 = sshll.u32 7, 18
          %s6832 = sxor.u32 4294967295, %s6831
          %s6833 = sand.u32 0, %s6832
          %s6835 = sor.u32 %s6833, 0
          %s6836 = sshll.u32 %s6732, 4
          %s6837 = int_to_ptr.vmem [resolvable:$true] %s6836
          %6843 = sst [smem:[#allocation17]] 2048
          %s6844 = scalar_lea.smem [#allocation17], 1
          %6845 = sst [smem:[%s6844]] 4096
          %s6846 = scalar_lea.smem [#allocation17], 2
          %6847 = sst [smem:[%s6846]] 16
          %s6848 = scalar_lea.smem [#allocation17], 3
          %6849 = sst [smem:[%s6848]] 128
          %s6850 = scalar_lea.smem [#allocation17], 4
          %6851 = sst [smem:[%s6850]] 128
          %s6852 = scalar_lea.smem [#allocation17], 5
          %6853 = sst [smem:[%s6852]] 8
          %6855 = dma.general %s6837, 4096, %s6825, %s6729, 131072, [#allocation17], %s6835, 0
        $region56: #{tpu_custom_call.1} parent=31 // pred_fallthru
          _
      $region32: #{tpu_custom_call.1} parent=5 // pred_fallthru
        _
      %p6856 = scmp.le.s32.totalorder 2, %s22
      // Predicated region
      $region57: #{tpu_custom_call.1} parent=5 // pred_check
        %p6857 = pneg %p6856
      $region58: #{tpu_custom_call.1} parent=5 // pred_check_branch
        %6859 = sbr.rel (%p6857) target = $region60
      $region59: #{tpu_custom_call.1} parent=5 // pred_region
        %s6860 = ssub.s32 %s22, 2
        // Predicated region
        $region61: #{tpu_custom_call.1} parent=59 // pred_check
          %p6861 = pneg %p135
        $region62: #{tpu_custom_call.1} parent=59 // pred_check_branch
          %6863 = sbr.rel (%p6861) target = $region64
        $region63: #{tpu_custom_call.1} parent=59 // pred_region
          %s6864 = sand.u32 %s120, 1
          %s6865 = scalar_lea.sflag [#allocation4], %s6864
          %s6866 = sand.u32 %s120, 1
          %s6867 = smul.addr %s6866, 256
          %s6868 = scalar_lea.vmem [#allocation8], %s6867
          %6869 = dma.done %s6865, 4096
        $region64: #{tpu_custom_call.1} parent=59 // pred_fallthru
          _
        // Predicated region
        $region65: #{tpu_custom_call.1} parent=59 // pred_check
          %p6870 = pneg %p163
        $region66: #{tpu_custom_call.1} parent=59 // pred_check_branch
          %6872 = sbr.rel (%p6870) target = $region68
        $region67: #{tpu_custom_call.1} parent=59 // pred_region
          %s6873 = sand.u32 %s28, 1
          %s6874 = scalar_lea.sflag [#allocation10], %s6873
          %s6875 = sand.u32 %s148, 1
          %s6876 = smul.addr %s6875, 256
          %s6877 = scalar_lea.vmem [#allocation9], %s6876
          %6878 = dma.done %s6874, 4096
        $region68: #{tpu_custom_call.1} parent=59 // pred_fallthru
          _
        // Predicated region
        $region69: #{tpu_custom_call.1} parent=59 // pred_check
          %p6879 = pneg %p191
        $region70: #{tpu_custom_call.1} parent=59 // pred_check_branch
          %6881 = sbr.rel (%p6879) target = $region72
        $region71: #{tpu_custom_call.1} parent=59 // pred_region
          %s6882 = sand.u32 %s28, 1
          %s6883 = scalar_lea.sflag [#allocation10], %s6882
          %s6884 = sand.u32 %s176, 1
          %s6885 = smul.addr %s6884, 256
          %s6886 = scalar_lea.vmem [#allocation11], %s6885
          %6887 = dma.done %s6883, 4096
        $region72: #{tpu_custom_call.1} parent=59 // pred_fallthru
          _
      $region60: #{tpu_custom_call.1} parent=5 // pred_fallthru
        _
    $region6: #{tpu_custom_call.1} parent=1 // loop_footer
      %s26 = sadd.s32 1, %s22
    $region7: #{tpu_custom_call.1} parent=1 // loop_footer_branch
      %21 = sbr.rel target = $region3
    $region8: #{tpu_custom_call.1} parent=1 // loop_exit
      _
    %6888 = vsyncpa [#allocation3], 1
    %s6889 = scalar_lea.sflag [#allocation3], 1
    %6890 = vsyncpa %s6889, 1
    %6891 = vsyncpa [#allocation6], 1
    %6892 = vsyncpa [#allocation4], 1
    %s6893 = scalar_lea.sflag [#allocation4], 1
    %6894 = vsyncpa %s6893, 1
    %6895 = vsyncpa [#allocation10], 1
    %s6896 = scalar_lea.sflag [#allocation10], 1
    %6897 = vsyncpa %s6896, 1

</llo_original>
